<compile_context>
chip_gen: v7x
topology: tpu7x:2x2x1
jax: 0.10.0
libtpu: 0.0.40
codegen_flags: <defaults>
</compile_context>

<pallas_src>
import functools
from typing import NamedTuple

import jax
import jax.numpy as jnp
from jax.experimental import pallas as pl
from jax.experimental.pallas import tpu as pltpu


def _round_up(x, m):
    return ((x + m - 1) // m) * m


# ---------------------------------------------------------------------------
# Kernel 1: single-pass axis sums.
#   x (N, C, D, H, W) f32  ->  (N,C,D,H), (N,C,D,W), (N,C,H,W) bf16
# One grid step per (n, c); x is read from HBM exactly once.
# ---------------------------------------------------------------------------
def _axis_sums_kernel(x_ref, dh_ref, dw_ref, hw_ref):
    xv = x_ref[...]                                            # (D, H, W) f32
    dh_ref[...] = jnp.sum(xv, axis=-1).astype(dh_ref.dtype)    # sum over W
    dw_ref[...] = jnp.sum(xv, axis=-2).astype(dw_ref.dtype)    # sum over H
    hw_ref[...] = jnp.sum(xv, axis=0).astype(hw_ref.dtype)     # sum over D


def axis_sums3(x):
    N, C, D, H, W = x.shape
    return pl.pallas_call(
        _axis_sums_kernel,
        out_shape=(
            jax.ShapeDtypeStruct((N, C, D, H), jnp.bfloat16),
            jax.ShapeDtypeStruct((N, C, D, W), jnp.bfloat16),
            jax.ShapeDtypeStruct((N, C, H, W), jnp.bfloat16),
        ),
        grid_spec=pltpu.PrefetchScalarGridSpec(
            num_scalar_prefetch=0,
            grid=(N, C),
            in_specs=[
                pl.BlockSpec((None, None, D, H, W),
                             lambda n, c: (n, c, 0, 0, 0)),
            ],
            out_specs=[
                pl.BlockSpec((None, None, D, H), lambda n, c: (n, c, 0, 0)),
                pl.BlockSpec((None, None, D, W), lambda n, c: (n, c, 0, 0)),
                pl.BlockSpec((None, None, H, W), lambda n, c: (n, c, 0, 0)),
            ],
        ),
        compiler_params=pltpu.CompilerParams(
            dimension_semantics=("parallel", "parallel"),
        ),
    )(x)


# ---------------------------------------------------------------------------
# Kernel 2: all three 2D convolutions, one pallas_call, grid over batch.
# Per conv (static python metadata):
#   x_i   : (N, C, L_i)       bf16 -- zero-padded plane, flattened row-major
#   w_i   : (kh_i*kw_i, O, C) bf16 -- one (O, C) tap per kernel offset
#   out_i : (N, O, Mout_i)    f32  -- conv evaluated at EVERY flat column
# The window for tap (di, dj) over flat columns [0, Mout) is the contiguous
# slice x_i[:, di*Wp + dj : di*Wp + dj + Mout]; valid output (oh, ow) lives at
# flat column oh*sh*Wp + ow*sw and is extracted cheaply in XLA afterwards.
# ---------------------------------------------------------------------------
def _fused_conv_kernel(x_dh, x_dw, x_hw, w_dh, w_dw, w_hw,
                       o_dh, o_dw, o_hw, *, metas):
    triples = ((x_dh, w_dh, o_dh), (x_dw, w_dw, o_dw), (x_hw, w_hw, o_hw))
    for (x_ref, w_ref, o_ref), (kh, kw, wp, mout) in zip(triples, metas):
        acc = jnp.zeros(o_ref.shape, jnp.float32)
        for di in range(kh):
            for dj in range(kw):
                s = di * wp + dj
                window = x_ref[:, s:s + mout]             # (C, Mout) bf16
                tap = w_ref[di * kw + dj]                 # (O, C)    bf16
                acc = acc + jnp.dot(tap, window,
                                    preferred_element_type=jnp.float32)
        o_ref[...] = acc


class _ConvMeta(NamedTuple):
    kh: int
    kw: int
    Wp: int
    Mout: int
    OH: int
    OW: int
    rows: int
    sh: int
    sw: int


def _prep_conv(plane_bf16, weight, stride, padding):
    """Pad + flatten one summed plane; reshape its weight to (kh*kw, O, C)."""
    N, C, H2, W2 = plane_bf16.shape
    O, Cw, kh, kw = weight.shape
    assert Cw == C
    sh, sw = stride
    ph, pw = padding
    Hp, Wp = H2 + 2 * ph, W2 + 2 * pw
    OH = (Hp - kh) // sh + 1
    OW = (Wp - kw) // sw + 1
    rows = (OH - 1) * sh + 1
    # Over-computed flat output width, rounded to the 128-lane tile.
    Mout = _round_up(rows * Wp, 128)
    # Flat length so every in-kernel slice stays in bounds.
    L = _round_up(max(Hp * Wp, (kh - 1) * Wp + (kw - 1) + Mout), 128)

    xp = jnp.pad(plane_bf16, ((0, 0), (0, 0), (ph, ph), (pw, pw)))
    xf = xp.reshape(N, C, Hp * Wp)
    xf = jnp.pad(xf, ((0, 0), (0, 0), (0, L - Hp * Wp)))
    wm = jnp.transpose(weight, (2, 3, 0, 1)).reshape(kh * kw, O, C)
    wm = wm.astype(jnp.bfloat16)
    return xf, wm, _ConvMeta(kh, kw, Wp, Mout, OH, OW, rows, sh, sw)


def _fused_conv_call(xfs, wms, metas):
    N, C, _ = xfs[0].shape
    O = wms[0].shape[1]
    kernel = functools.partial(
        _fused_conv_kernel,
        metas=tuple((m.kh, m.kw, m.Wp, m.Mout) for m in metas))

    in_specs = (
        [pl.BlockSpec((None, C, int(xf.shape[2])), lambda n: (n, 0, 0))
         for xf in xfs]
        + [pl.BlockSpec(tuple(int(d) for d in wm.shape), lambda n: (0, 0, 0))
           for wm in wms])
    out_shape = tuple(jax.ShapeDtypeStruct((N, O, m.Mout), jnp.float32)
                      for m in metas)
    out_specs = [pl.BlockSpec((None, O, m.Mout), lambda n: (n, 0, 0))
                 for m in metas]

    flops = 2 * N * sum(O * C * m.kh * m.kw * m.Mout for m in metas)
    bytes_accessed = (sum(int(xf.size) * 2 for xf in xfs)
                      + sum(int(wm.size) * 2 for wm in wms)
                      + sum(N * O * m.Mout * 4 for m in metas))

    return pl.pallas_call(
        kernel,
        out_shape=out_shape,
        grid_spec=pltpu.PrefetchScalarGridSpec(
            num_scalar_prefetch=0,
            grid=(N,),
            in_specs=in_specs,
            out_specs=out_specs,
        ),
        compiler_params=pltpu.CompilerParams(
            dimension_semantics=("parallel",),
            # One whole (C, L) plane per step; explicit, generation-safe limit.
            vmem_limit_bytes=32 * 1024 * 1024,
        ),
        cost_estimate=pl.CostEstimate(
            flops=flops, transcendentals=0, bytes_accessed=bytes_accessed),
    )(*xfs, *wms)


def _extract_valid(flat_out, meta):
    """(N, O, Mout) over-computed columns -> (N, O, OH, OW) conv output."""
    N, O, _ = flat_out.shape
    o4 = flat_out[:, :, :meta.rows * meta.Wp].reshape(N, O, meta.rows, meta.Wp)
    return o4[:, :, ::meta.sh, ::meta.sw][:, :, :meta.OH, :meta.OW]


# ---------------------------------------------------------------------------
# CustomConv3d forward (mirrors the PyTorch module, bias=False, dil=1, grp=1)
# ---------------------------------------------------------------------------
def custom_conv3d_forward(x, w_dh, w_dw, w_hw, stride, padding):
    # Single pass over x for the three axis sums (bf16 planes).
    p_dh, p_dw, p_hw = axis_sums3(x)

    plane_specs = [
        (p_dh, w_dh, (stride[0], stride[1]), (padding[0], padding[1])),
        (p_dw, w_dw, (stride[0], stride[2]), (padding[0], padding[2])),
        (p_hw, w_hw, (stride[1], stride[2]), (padding[1], padding[2])),
    ]
    xfs, wms, metas = [], [], []
    for plane, wgt, st, pd in plane_specs:
        xf, wm, meta = _prep_conv(plane, wgt, st, pd)
        xfs.append(xf)
        wms.append(wm)
        metas.append(meta)

    flat_outs = _fused_conv_call(xfs, wms, metas)
    outdh, outdw, outhw = (_extract_valid(f, m)
                           for f, m in zip(flat_outs, metas))

    # out = outdh.unsqueeze(-1) + outdw.unsqueeze(-2) + outhw.unsqueeze(-3)
    # (the slices/reshapes above + this broadcast-add fuse into one XLA fusion)
    return (outdh[..., :, :, None]
            + outdw[..., :, None, :]
            + outhw[..., None, :, :])                 # (N, O, D', H', W')


# ---------------------------------------------------------------------------
# Reference (pure JAX, f32, no Pallas) for a correctness check
# ---------------------------------------------------------------------------
def _ref_conv2d(x, w, stride, padding):
    return jax.lax.conv_general_dilated(
        x, w, window_strides=stride,
        padding=[(padding[0], padding[0]), (padding[1], padding[1])],
        dimension_numbers=("NCHW", "OIHW", "NCHW"),
    )


def _ref_forward(x, w_dh, w_dw, w_hw, stride, padding):
    outdh = _ref_conv2d(x.sum(axis=-1), w_dh, (stride[0], stride[1]),
                        (padding[0], padding[1]))
    outdw = _ref_conv2d(x.sum(axis=-2), w_dw, (stride[0], stride[2]),
                        (padding[0], padding[2]))
    outhw = _ref_conv2d(x.sum(axis=-3), w_hw, (stride[1], stride[2]),
                        (padding[1], padding[2]))
    return (outdh[..., :, :, None] + outdw[..., :, None, :]
            + outhw[..., None, :, :])


if __name__ == "__main__":
    # Module config (bias=False, dilation=1, groups=1 as in defaults)
    in_channels, out_channels = 4, 8
    kernel_size = (3, 3, 3)
    stride = (1, 1, 1)
    padding = (1, 1, 1)

    key = jax.random.PRNGKey(0)
    k_x, k_dh, k_dw, k_hw = jax.random.split(key, 4)
    w_dh = jax.random.uniform(
        k_dh, (out_channels, in_channels, kernel_size[0], kernel_size[1]),
        dtype=jnp.float32)
    w_dw = jax.random.uniform(
        k_dw, (out_channels, in_channels, kernel_size[0], kernel_size[2]),
        dtype=jnp.float32)
    w_hw = jax.random.uniform(
        k_hw, (out_channels, in_channels, kernel_size[1], kernel_size[2]),
        dtype=jnp.float32)

    # Small input volume: (N, C, D, H, W)
    N, C, D, H, W = 2, in_channels, 8, 16, 16
    x = jax.random.uniform(k_x, (N, C, D, H, W), dtype=jnp.float32)

    fwd = jax.jit(functools.partial(
        custom_conv3d_forward, stride=stride, padding=padding))
    out = jax.block_until_ready(fwd(x, w_dh, w_dw, w_hw))

    # Sanity check against a pure-JAX f32 reference (kernel uses bf16 MXU
    # inputs with f32 accumulation, so allow bf16-level relative error).
    ref = _ref_forward(x, w_dh, w_dw, w_hw, stride, padding)
    assert out.shape == (N, out_channels, D, H, W), out.shape
    rel_err = float(jnp.max(jnp.abs(out - ref) / (jnp.abs(ref) + 1e-6)))
    assert rel_err < 2e-2, rel_err

    print("KERNEL_OK")
</pallas_src>

<mosaic_0001>
module attributes {stable_mosaic.version = 11 : i64} {
  func.func @_axis_sums_kernel(%arg0: i32, %arg1: i32, %arg2: memref<1x1x8x16x16xf32, #tpu.memory_space<vmem>>, %arg3: memref<1x1x8x16xbf16, #tpu.memory_space<vmem>>, %arg4: memref<1x1x8x16xbf16, #tpu.memory_space<vmem>>, %arg5: memref<1x1x16x16xbf16, #tpu.memory_space<vmem>>) attributes {dimension_semantics = [#tpu.dimension_semantics<parallel>, #tpu.dimension_semantics<parallel>], iteration_bounds = array<i64: 2, 4>, scalar_prefetch = 0 : i64, scratch_operands = 0 : i64, tpu.core_type = #tpu.core_type<tc>, window_params = [{transform_indices = @transform_0, window_bounds = array<i64: 1, 1, 8, 16, 16>}, {transform_indices = @transform_1, window_bounds = array<i64: 1, 1, 8, 16>}, {transform_indices = @transform_2, window_bounds = array<i64: 1, 1, 8, 16>}, {transform_indices = @transform_3, window_bounds = array<i64: 1, 1, 16, 16>}]} {
    %c0 = arith.constant 0 : index
    %c0_0 = arith.constant 0 : index
    %c0_1 = arith.constant 0 : index
    %c0_2 = arith.constant 0 : index
    %c0_3 = arith.constant 0 : index
    %0 = vector.load %arg2[%c0, %c0_0, %c0_1, %c0_2, %c0_3] : memref<1x1x8x16x16xf32, #tpu.memory_space<vmem>>, vector<1x1x8x16x16xf32>
    %1 = vector.shape_cast %0 : vector<1x1x8x16x16xf32> to vector<8x16x16xf32>
    %cst = arith.constant dense<0.000000e+00> : vector<8x16xf32>
    %2 = vector.multi_reduction <add>, %1, %cst [2] : vector<8x16x16xf32> to vector<8x16xf32>
    %3 = arith.truncf %2 : vector<8x16xf32> to vector<8x16xbf16>
    %c0_4 = arith.constant 0 : index
    %c0_5 = arith.constant 0 : index
    %c0_6 = arith.constant 0 : index
    %c0_7 = arith.constant 0 : index
    %4 = vector.load %arg3[%c0_4, %c0_5, %c0_6, %c0_7] : memref<1x1x8x16xbf16, #tpu.memory_space<vmem>>, vector<1x1x8x16xbf16>
    %5 = vector.shape_cast %4 : vector<1x1x8x16xbf16> to vector<8x16xbf16>
    %6 = vector.shape_cast %3 : vector<8x16xbf16> to vector<1x1x8x16xbf16>
    tpu.vector_store %arg3[%c0_4, %c0_5, %c0_6, %c0_7], %6 {strides = array<i32>} : memref<1x1x8x16xbf16, #tpu.memory_space<vmem>>, vector<1x1x8x16xbf16>,
    %cst_8 = arith.constant dense<0.000000e+00> : vector<8x16xf32>
    %7 = vector.multi_reduction <add>, %1, %cst_8 [1] : vector<8x16x16xf32> to vector<8x16xf32>
    %8 = arith.truncf %7 : vector<8x16xf32> to vector<8x16xbf16>
    %c0_9 = arith.constant 0 : index
    %c0_10 = arith.constant 0 : index
    %c0_11 = arith.constant 0 : index
    %c0_12 = arith.constant 0 : index
    %9 = vector.load %arg4[%c0_9, %c0_10, %c0_11, %c0_12] : memref<1x1x8x16xbf16, #tpu.memory_space<vmem>>, vector<1x1x8x16xbf16>
    %10 = vector.shape_cast %9 : vector<1x1x8x16xbf16> to vector<8x16xbf16>
    %11 = vector.shape_cast %8 : vector<8x16xbf16> to vector<1x1x8x16xbf16>
    tpu.vector_store %arg4[%c0_9, %c0_10, %c0_11, %c0_12], %11 {strides = array<i32>} : memref<1x1x8x16xbf16, #tpu.memory_space<vmem>>, vector<1x1x8x16xbf16>,
    %cst_13 = arith.constant dense<0.000000e+00> : vector<16x16xf32>
    %12 = vector.multi_reduction <add>, %1, %cst_13 [0] : vector<8x16x16xf32> to vector<16x16xf32>
    %13 = arith.truncf %12 : vector<16x16xf32> to vector<16x16xbf16>
    %c0_14 = arith.constant 0 : index
    %c0_15 = arith.constant 0 : index
    %c0_16 = arith.constant 0 : index
    %c0_17 = arith.constant 0 : index
    %14 = vector.load %arg5[%c0_14, %c0_15, %c0_16, %c0_17] : memref<1x1x16x16xbf16, #tpu.memory_space<vmem>>, vector<1x1x16x16xbf16>
    %15 = vector.shape_cast %14 : vector<1x1x16x16xbf16> to vector<16x16xbf16>
    %16 = vector.shape_cast %13 : vector<16x16xbf16> to vector<1x1x16x16xbf16>
    tpu.vector_store %arg5[%c0_14, %c0_15, %c0_16, %c0_17], %16 {strides = array<i32>} : memref<1x1x16x16xbf16, #tpu.memory_space<vmem>>, vector<1x1x16x16xbf16>,
    return
  }
  func.func @transform_0(%arg0: i32, %arg1: i32) -> (i32, i32, i32, i32, i32) {
    %c0_i32 = arith.constant 0 : i32
    %c0_i32_0 = arith.constant 0 : i32
    %c0_i32_1 = arith.constant 0 : i32
    %c0_i32_2 = arith.constant 0 : i32
    return %arg0, %arg1, %c0_i32, %c0_i32_0, %c0_i32_1 : i32, i32, i32, i32, i32
  }
  func.func @transform_1(%arg0: i32, %arg1: i32) -> (i32, i32, i32, i32) {
    %c0_i32 = arith.constant 0 : i32
    %c0_i32_0 = arith.constant 0 : i32
    %c0_i32_1 = arith.constant 0 : i32
    return %arg0, %arg1, %c0_i32, %c0_i32_0 : i32, i32, i32, i32
  }
  func.func @transform_2(%arg0: i32, %arg1: i32) -> (i32, i32, i32, i32) {
    %c0_i32 = arith.constant 0 : i32
    %c0_i32_0 = arith.constant 0 : i32
    %c0_i32_1 = arith.constant 0 : i32
    return %arg0, %arg1, %c0_i32, %c0_i32_0 : i32, i32, i32, i32
  }
  func.func @transform_3(%arg0: i32, %arg1: i32) -> (i32, i32, i32, i32) {
    %c0_i32 = arith.constant 0 : i32
    %c0_i32_0 = arith.constant 0 : i32
    %c0_i32_1 = arith.constant 0 : i32
    return %arg0, %arg1, %c0_i32, %c0_i32_0 : i32, i32, i32, i32
  }
}

module attributes {stable_mosaic.version = 11 : i64} {
  func.func @_fused_conv_kernel(%arg0: i32, %arg1: memref<1x4x384xbf16, #tpu.memory_space<vmem>>, %arg2: memref<1x4x384xbf16, #tpu.memory_space<vmem>>, %arg3: memref<1x4x512xbf16, #tpu.memory_space<vmem>>, %arg4: memref<9x8x4xbf16, #tpu.memory_space<vmem>>, %arg5: memref<9x8x4xbf16, #tpu.memory_space<vmem>>, %arg6: memref<9x8x4xbf16, #tpu.memory_space<vmem>>, %arg7: memref<1x8x256xf32, #tpu.memory_space<vmem>>, %arg8: memref<1x8x256xf32, #tpu.memory_space<vmem>>, %arg9: memref<1x8x384xf32, #tpu.memory_space<vmem>>) attributes {dimension_semantics = [#tpu.dimension_semantics<parallel>], iteration_bounds = array<i64: 2>, scalar_prefetch = 0 : i64, scratch_operands = 0 : i64, tpu.core_type = #tpu.core_type<tc>, window_params = [{transform_indices = @transform_0, window_bounds = array<i64: 1, 4, 384>}, {transform_indices = @transform_1, window_bounds = array<i64: 1, 4, 384>}, {transform_indices = @transform_2, window_bounds = array<i64: 1, 4, 512>}, {pipeline_mode = #tpu.pipeline_mode<synchronous>, transform_indices = @transform_3, window_bounds = array<i64: 9, 8, 4>}, {pipeline_mode = #tpu.pipeline_mode<synchronous>, transform_indices = @transform_4, window_bounds = array<i64: 9, 8, 4>}, {pipeline_mode = #tpu.pipeline_mode<synchronous>, transform_indices = @transform_5, window_bounds = array<i64: 9, 8, 4>}, {transform_indices = @transform_6, window_bounds = array<i64: 1, 8, 256>}, {transform_indices = @transform_7, window_bounds = array<i64: 1, 8, 256>}, {transform_indices = @transform_8, window_bounds = array<i64: 1, 8, 384>}]} {
    %cst = arith.constant 0.000000e+00 : f32
    %0 = vector.broadcast %cst : f32 to vector<8x256xf32>
    %c0 = arith.constant 0 : index
    %c0_0 = arith.constant 0 : index
    %c0_1 = arith.constant 0 : index
    %1 = vector.load %arg1[%c0, %c0_0, %c0_1] : memref<1x4x384xbf16, #tpu.memory_space<vmem>>, vector<1x4x256xbf16>
    %2 = vector.shape_cast %1 : vector<1x4x256xbf16> to vector<4x256xbf16>
    %c0_2 = arith.constant 0 : index
    %c0_3 = arith.constant 0 : index
    %c0_4 = arith.constant 0 : index
    %3 = vector.load %arg4[%c0_2, %c0_3, %c0_4] : memref<9x8x4xbf16, #tpu.memory_space<vmem>>, vector<1x8x4xbf16>
    %4 = vector.shape_cast %3 : vector<1x8x4xbf16> to vector<8x4xbf16>
    %cst_5 = arith.constant dense<0.000000e+00> : vector<8x256xf32>
    %5 = tpu.matmul %4, %2, %cst_5 {dimension_numbers = #tpu.dot_dimension_numbers<[1], [0], [0], [1], [0, 0, 1, 1], [], []>} : vector<8x4xbf16>, vector<4x256xbf16>, vector<8x256xf32> -> vector<8x256xf32>
    %6 = arith.addf %0, %5 : vector<8x256xf32>
    %c0_6 = arith.constant 0 : index
    %c0_7 = arith.constant 0 : index
    %c1 = arith.constant 1 : index
    %7 = vector.load %arg1[%c0_6, %c0_7, %c1] : memref<1x4x384xbf16, #tpu.memory_space<vmem>>, vector<1x4x256xbf16>
    %8 = vector.shape_cast %7 : vector<1x4x256xbf16> to vector<4x256xbf16>
    %c1_8 = arith.constant 1 : index
    %c0_9 = arith.constant 0 : index
    %c0_10 = arith.constant 0 : index
    %9 = vector.load %arg4[%c1_8, %c0_9, %c0_10] : memref<9x8x4xbf16, #tpu.memory_space<vmem>>, vector<1x8x4xbf16>
    %10 = vector.shape_cast %9 : vector<1x8x4xbf16> to vector<8x4xbf16>
    %cst_11 = arith.constant dense<0.000000e+00> : vector<8x256xf32>
    %11 = tpu.matmul %10, %8, %cst_11 {dimension_numbers = #tpu.dot_dimension_numbers<[1], [0], [0], [1], [0, 0, 1, 1], [], []>} : vector<8x4xbf16>, vector<4x256xbf16>, vector<8x256xf32> -> vector<8x256xf32>
    %12 = arith.addf %6, %11 : vector<8x256xf32>
    %c0_12 = arith.constant 0 : index
    %c0_13 = arith.constant 0 : index
    %c2 = arith.constant 2 : index
    %13 = vector.load %arg1[%c0_12, %c0_13, %c2] : memref<1x4x384xbf16, #tpu.memory_space<vmem>>, vector<1x4x256xbf16>
    %14 = vector.shape_cast %13 : vector<1x4x256xbf16> to vector<4x256xbf16>
    %c2_14 = arith.constant 2 : index
    %c0_15 = arith.constant 0 : index
    %c0_16 = arith.constant 0 : index
    %15 = vector.load %arg4[%c2_14, %c0_15, %c0_16] : memref<9x8x4xbf16, #tpu.memory_space<vmem>>, vector<1x8x4xbf16>
    %16 = vector.shape_cast %15 : vector<1x8x4xbf16> to vector<8x4xbf16>
    %cst_17 = arith.constant dense<0.000000e+00> : vector<8x256xf32>
    %17 = tpu.matmul %16, %14, %cst_17 {dimension_numbers = #tpu.dot_dimension_numbers<[1], [0], [0], [1], [0, 0, 1, 1], [], []>} : vector<8x4xbf16>, vector<4x256xbf16>, vector<8x256xf32> -> vector<8x256xf32>
    %18 = arith.addf %12, %17 : vector<8x256xf32>
    %c0_18 = arith.constant 0 : index
    %c0_19 = arith.constant 0 : index
    %c18 = arith.constant 18 : index
    %19 = vector.load %arg1[%c0_18, %c0_19, %c18] : memref<1x4x384xbf16, #tpu.memory_space<vmem>>, vector<1x4x256xbf16>
    %20 = vector.shape_cast %19 : vector<1x4x256xbf16> to vector<4x256xbf16>
    %c3 = arith.constant 3 : index
    %c0_20 = arith.constant 0 : index
    %c0_21 = arith.constant 0 : index
    %21 = vector.load %arg4[%c3, %c0_20, %c0_21] : memref<9x8x4xbf16, #tpu.memory_space<vmem>>, vector<1x8x4xbf16>
    %22 = vector.shape_cast %21 : vector<1x8x4xbf16> to vector<8x4xbf16>
    %cst_22 = arith.constant dense<0.000000e+00> : vector<8x256xf32>
    %23 = tpu.matmul %22, %20, %cst_22 {dimension_numbers = #tpu.dot_dimension_numbers<[1], [0], [0], [1], [0, 0, 1, 1], [], []>} : vector<8x4xbf16>, vector<4x256xbf16>, vector<8x256xf32> -> vector<8x256xf32>
    %24 = arith.addf %18, %23 : vector<8x256xf32>
    %c0_23 = arith.constant 0 : index
    %c0_24 = arith.constant 0 : index
    %c19 = arith.constant 19 : index
    %25 = vector.load %arg1[%c0_23, %c0_24, %c19] : memref<1x4x384xbf16, #tpu.memory_space<vmem>>, vector<1x4x256xbf16>
    %26 = vector.shape_cast %25 : vector<1x4x256xbf16> to vector<4x256xbf16>
    %c4 = arith.constant 4 : index
    %c0_25 = arith.constant 0 : index
    %c0_26 = arith.constant 0 : index
    %27 = vector.load %arg4[%c4, %c0_25, %c0_26] : memref<9x8x4xbf16, #tpu.memory_space<vmem>>, vector<1x8x4xbf16>
    %28 = vector.shape_cast %27 : vector<1x8x4xbf16> to vector<8x4xbf16>
    %cst_27 = arith.constant dense<0.000000e+00> : vector<8x256xf32>
    %29 = tpu.matmul %28, %26, %cst_27 {dimension_numbers = #tpu.dot_dimension_numbers<[1], [0], [0], [1], [0, 0, 1, 1], [], []>} : vector<8x4xbf16>, vector<4x256xbf16>, vector<8x256xf32> -> vector<8x256xf32>
    %30 = arith.addf %24, %29 : vector<8x256xf32>
    %c0_28 = arith.constant 0 : index
    %c0_29 = arith.constant 0 : index
    %c20 = arith.constant 20 : index
    %31 = vector.load %arg1[%c0_28, %c0_29, %c20] : memref<1x4x384xbf16, #tpu.memory_space<vmem>>, vector<1x4x256xbf16>
    %32 = vector.shape_cast %31 : vector<1x4x256xbf16> to vector<4x256xbf16>
    %c5 = arith.constant 5 : index
    %c0_30 = arith.constant 0 : index
    %c0_31 = arith.constant 0 : index
    %33 = vector.load %arg4[%c5, %c0_30, %c0_31] : memref<9x8x4xbf16, #tpu.memory_space<vmem>>, vector<1x8x4xbf16>
    %34 = vector.shape_cast %33 : vector<1x8x4xbf16> to vector<8x4xbf16>
    %cst_32 = arith.constant dense<0.000000e+00> : vector<8x256xf32>
    %35 = tpu.matmul %34, %32, %cst_32 {dimension_numbers = #tpu.dot_dimension_numbers<[1], [0], [0], [1], [0, 0, 1, 1], [], []>} : vector<8x4xbf16>, vector<4x256xbf16>, vector<8x256xf32> -> vector<8x256xf32>
    %36 = arith.addf %30, %35 : vector<8x256xf32>
    %c0_33 = arith.constant 0 : index
    %c0_34 = arith.constant 0 : index
    %c36 = arith.constant 36 : index
    %37 = vector.load %arg1[%c0_33, %c0_34, %c36] : memref<1x4x384xbf16, #tpu.memory_space<vmem>>, vector<1x4x256xbf16>
    %38 = vector.shape_cast %37 : vector<1x4x256xbf16> to vector<4x256xbf16>
    %c6 = arith.constant 6 : index
    %c0_35 = arith.constant 0 : index
    %c0_36 = arith.constant 0 : index
    %39 = vector.load %arg4[%c6, %c0_35, %c0_36] : memref<9x8x4xbf16, #tpu.memory_space<vmem>>, vector<1x8x4xbf16>
    %40 = vector.shape_cast %39 : vector<1x8x4xbf16> to vector<8x4xbf16>
    %cst_37 = arith.constant dense<0.000000e+00> : vector<8x256xf32>
    %41 = tpu.matmul %40, %38, %cst_37 {dimension_numbers = #tpu.dot_dimension_numbers<[1], [0], [0], [1], [0, 0, 1, 1], [], []>} : vector<8x4xbf16>, vector<4x256xbf16>, vector<8x256xf32> -> vector<8x256xf32>
    %42 = arith.addf %36, %41 : vector<8x256xf32>
    %c0_38 = arith.constant 0 : index
    %c0_39 = arith.constant 0 : index
    %c37 = arith.constant 37 : index
    %43 = vector.load %arg1[%c0_38, %c0_39, %c37] : memref<1x4x384xbf16, #tpu.memory_space<vmem>>, vector<1x4x256xbf16>
    %44 = vector.shape_cast %43 : vector<1x4x256xbf16> to vector<4x256xbf16>
    %c7 = arith.constant 7 : index
    %c0_40 = arith.constant 0 : index
    %c0_41 = arith.constant 0 : index
    %45 = vector.load %arg4[%c7, %c0_40, %c0_41] : memref<9x8x4xbf16, #tpu.memory_space<vmem>>, vector<1x8x4xbf16>
    %46 = vector.shape_cast %45 : vector<1x8x4xbf16> to vector<8x4xbf16>
    %cst_42 = arith.constant dense<0.000000e+00> : vector<8x256xf32>
    %47 = tpu.matmul %46, %44, %cst_42 {dimension_numbers = #tpu.dot_dimension_numbers<[1], [0], [0], [1], [0, 0, 1, 1], [], []>} : vector<8x4xbf16>, vector<4x256xbf16>, vector<8x256xf32> -> vector<8x256xf32>
    %48 = arith.addf %42, %47 : vector<8x256xf32>
    %c0_43 = arith.constant 0 : index
    %c0_44 = arith.constant 0 : index
    %c38 = arith.constant 38 : index
    %49 = vector.load %arg1[%c0_43, %c0_44, %c38] : memref<1x4x384xbf16, #tpu.memory_space<vmem>>, vector<1x4x256xbf16>
    %50 = vector.shape_cast %49 : vector<1x4x256xbf16> to vector<4x256xbf16>
    %c8 = arith.constant 8 : index
    %c0_45 = arith.constant 0 : index
    %c0_46 = arith.constant 0 : index
    %51 = vector.load %arg4[%c8, %c0_45, %c0_46] : memref<9x8x4xbf16, #tpu.memory_space<vmem>>, vector<1x8x4xbf16>
    %52 = vector.shape_cast %51 : vector<1x8x4xbf16> to vector<8x4xbf16>
    %cst_47 = arith.constant dense<0.000000e+00> : vector<8x256xf32>
    %53 = tpu.matmul %52, %50, %cst_47 {dimension_numbers = #tpu.dot_dimension_numbers<[1], [0], [0], [1], [0, 0, 1, 1], [], []>} : vector<8x4xbf16>, vector<4x256xbf16>, vector<8x256xf32> -> vector<8x256xf32>
    %54 = arith.addf %48, %53 : vector<8x256xf32>
    %c0_48 = arith.constant 0 : index
    %c0_49 = arith.constant 0 : index
    %c0_50 = arith.constant 0 : index
    %55 = vector.load %arg7[%c0_48, %c0_49, %c0_50] : memref<1x8x256xf32, #tpu.memory_space<vmem>>, vector<1x8x256xf32>
    %56 = vector.shape_cast %55 : vector<1x8x256xf32> to vector<8x256xf32>
    %57 = vector.shape_cast %54 : vector<8x256xf32> to vector<1x8x256xf32>
    tpu.vector_store %arg7[%c0_48, %c0_49, %c0_50], %57 {strides = array<i32>} : memref<1x8x256xf32, #tpu.memory_space<vmem>>, vector<1x8x256xf32>,
    %cst_51 = arith.constant 0.000000e+00 : f32
    %58 = vector.broadcast %cst_51 : f32 to vector<8x256xf32>
    %c0_52 = arith.constant 0 : index
    %c0_53 = arith.constant 0 : index
    %c0_54 = arith.constant 0 : index
    %59 = vector.load %arg2[%c0_52, %c0_53, %c0_54] : memref<1x4x384xbf16, #tpu.memory_space<vmem>>, vector<1x4x256xbf16>
    %60 = vector.shape_cast %59 : vector<1x4x256xbf16> to vector<4x256xbf16>
    %c0_55 = arith.constant 0 : index
    %c0_56 = arith.constant 0 : index
    %c0_57 = arith.constant 0 : index
    %61 = vector.load %arg5[%c0_55, %c0_56, %c0_57] : memref<9x8x4xbf16, #tpu.memory_space<vmem>>, vector<1x8x4xbf16>
    %62 = vector.shape_cast %61 : vector<1x8x4xbf16> to vector<8x4xbf16>
    %cst_58 = arith.constant dense<0.000000e+00> : vector<8x256xf32>
    %63 = tpu.matmul %62, %60, %cst_58 {dimension_numbers = #tpu.dot_dimension_numbers<[1], [0], [0], [1], [0, 0, 1, 1], [], []>} : vector<8x4xbf16>, vector<4x256xbf16>, vector<8x256xf32> -> vector<8x256xf32>
    %64 = arith.addf %58, %63 : vector<8x256xf32>
    %c0_59 = arith.constant 0 : index
    %c0_60 = arith.constant 0 : index
    %c1_61 = arith.constant 1 : index
    %65 = vector.load %arg2[%c0_59, %c0_60, %c1_61] : memref<1x4x384xbf16, #tpu.memory_space<vmem>>, vector<1x4x256xbf16>
    %66 = vector.shape_cast %65 : vector<1x4x256xbf16> to vector<4x256xbf16>
    %c1_62 = arith.constant 1 : index
    %c0_63 = arith.constant 0 : index
    %c0_64 = arith.constant 0 : index
    %67 = vector.load %arg5[%c1_62, %c0_63, %c0_64] : memref<9x8x4xbf16, #tpu.memory_space<vmem>>, vector<1x8x4xbf16>
    %68 = vector.shape_cast %67 : vector<1x8x4xbf16> to vector<8x4xbf16>
    %cst_65 = arith.constant dense<0.000000e+00> : vector<8x256xf32>
    %69 = tpu.matmul %68, %66, %cst_65 {dimension_numbers = #tpu.dot_dimension_numbers<[1], [0], [0], [1], [0, 0, 1, 1], [], []>} : vector<8x4xbf16>, vector<4x256xbf16>, vector<8x256xf32> -> vector<8x256xf32>
    %70 = arith.addf %64, %69 : vector<8x256xf32>
    %c0_66 = arith.constant 0 : index
    %c0_67 = arith.constant 0 : index
    %c2_68 = arith.constant 2 : index
    %71 = vector.load %arg2[%c0_66, %c0_67, %c2_68] : memref<1x4x384xbf16, #tpu.memory_space<vmem>>, vector<1x4x256xbf16>
    %72 = vector.shape_cast %71 : vector<1x4x256xbf16> to vector<4x256xbf16>
    %c2_69 = arith.constant 2 : index
    %c0_70 = arith.constant 0 : index
    %c0_71 = arith.constant 0 : index
    %73 = vector.load %arg5[%c2_69, %c0_70, %c0_71] : memref<9x8x4xbf16, #tpu.memory_space<vmem>>, vector<1x8x4xbf16>
    %74 = vector.shape_cast %73 : vector<1x8x4xbf16> to vector<8x4xbf16>
    %cst_72 = arith.constant dense<0.000000e+00> : vector<8x256xf32>
    %75 = tpu.matmul %74, %72, %cst_72 {dimension_numbers = #tpu.dot_dimension_numbers<[1], [0], [0], [1], [0, 0, 1, 1], [], []>} : vector<8x4xbf16>, vector<4x256xbf16>, vector<8x256xf32> -> vector<8x256xf32>
    %76 = arith.addf %70, %75 : vector<8x256xf32>
    %c0_73 = arith.constant 0 : index
    %c0_74 = arith.constant 0 : index
    %c18_75 = arith.constant 18 : index
    %77 = vector.load %arg2[%c0_73, %c0_74, %c18_75] : memref<1x4x384xbf16, #tpu.memory_space<vmem>>, vector<1x4x256xbf16>
    %78 = vector.shape_cast %77 : vector<1x4x256xbf16> to vector<4x256xbf16>
    %c3_76 = arith.constant 3 : index
    %c0_77 = arith.constant 0 : index
    %c0_78 = arith.constant 0 : index
    %79 = vector.load %arg5[%c3_76, %c0_77, %c0_78] : memref<9x8x4xbf16, #tpu.memory_space<vmem>>, vector<1x8x4xbf16>
    %80 = vector.shape_cast %79 : vector<1x8x4xbf16> to vector<8x4xbf16>
    %cst_79 = arith.constant dense<0.000000e+00> : vector<8x256xf32>
    %81 = tpu.matmul %80, %78, %cst_79 {dimension_numbers = #tpu.dot_dimension_numbers<[1], [0], [0], [1], [0, 0, 1, 1], [], []>} : vector<8x4xbf16>, vector<4x256xbf16>, vector<8x256xf32> -> vector<8x256xf32>
    %82 = arith.addf %76, %81 : vector<8x256xf32>
    %c0_80 = arith.constant 0 : index
    %c0_81 = arith.constant 0 : index
    %c19_82 = arith.constant 19 : index
    %83 = vector.load %arg2[%c0_80, %c0_81, %c19_82] : memref<1x4x384xbf16, #tpu.memory_space<vmem>>, vector<1x4x256xbf16>
    %84 = vector.shape_cast %83 : vector<1x4x256xbf16> to vector<4x256xbf16>
    %c4_83 = arith.constant 4 : index
    %c0_84 = arith.constant 0 : index
    %c0_85 = arith.constant 0 : index
    %85 = vector.load %arg5[%c4_83, %c0_84, %c0_85] : memref<9x8x4xbf16, #tpu.memory_space<vmem>>, vector<1x8x4xbf16>
    %86 = vector.shape_cast %85 : vector<1x8x4xbf16> to vector<8x4xbf16>
    %cst_86 = arith.constant dense<0.000000e+00> : vector<8x256xf32>
    %87 = tpu.matmul %86, %84, %cst_86 {dimension_numbers = #tpu.dot_dimension_numbers<[1], [0], [0], [1], [0, 0, 1, 1], [], []>} : vector<8x4xbf16>, vector<4x256xbf16>, vector<8x256xf32> -> vector<8x256xf32>
    %88 = arith.addf %82, %87 : vector<8x256xf32>
    %c0_87 = arith.constant 0 : index
    %c0_88 = arith.constant 0 : index
    %c20_89 = arith.constant 20 : index
    %89 = vector.load %arg2[%c0_87, %c0_88, %c20_89] : memref<1x4x384xbf16, #tpu.memory_space<vmem>>, vector<1x4x256xbf16>
    %90 = vector.shape_cast %89 : vector<1x4x256xbf16> to vector<4x256xbf16>
    %c5_90 = arith.constant 5 : index
    %c0_91 = arith.constant 0 : index
    %c0_92 = arith.constant 0 : index
    %91 = vector.load %arg5[%c5_90, %c0_91, %c0_92] : memref<9x8x4xbf16, #tpu.memory_space<vmem>>, vector<1x8x4xbf16>
    %92 = vector.shape_cast %91 : vector<1x8x4xbf16> to vector<8x4xbf16>
    %cst_93 = arith.constant dense<0.000000e+00> : vector<8x256xf32>
    %93 = tpu.matmul %92, %90, %cst_93 {dimension_numbers = #tpu.dot_dimension_numbers<[1], [0], [0], [1], [0, 0, 1, 1], [], []>} : vector<8x4xbf16>, vector<4x256xbf16>, vector<8x256xf32> -> vector<8x256xf32>
    %94 = arith.addf %88, %93 : vector<8x256xf32>
    %c0_94 = arith.constant 0 : index
    %c0_95 = arith.constant 0 : index
    %c36_96 = arith.constant 36 : index
    %95 = vector.load %arg2[%c0_94, %c0_95, %c36_96] : memref<1x4x384xbf16, #tpu.memory_space<vmem>>, vector<1x4x256xbf16>
    %96 = vector.shape_cast %95 : vector<1x4x256xbf16> to vector<4x256xbf16>
    %c6_97 = arith.constant 6 : index
    %c0_98 = arith.constant 0 : index
    %c0_99 = arith.constant 0 : index
    %97 = vector.load %arg5[%c6_97, %c0_98, %c0_99] : memref<9x8x4xbf16, #tpu.memory_space<vmem>>, vector<1x8x4xbf16>
    %98 = vector.shape_cast %97 : vector<1x8x4xbf16> to vector<8x4xbf16>
    %cst_100 = arith.constant dense<0.000000e+00> : vector<8x256xf32>
    %99 = tpu.matmul %98, %96, %cst_100 {dimension_numbers = #tpu.dot_dimension_numbers<[1], [0], [0], [1], [0, 0, 1, 1], [], []>} : vector<8x4xbf16>, vector<4x256xbf16>, vector<8x256xf32> -> vector<8x256xf32>
    %100 = arith.addf %94, %99 : vector<8x256xf32>
    %c0_101 = arith.constant 0 : index
    %c0_102 = arith.constant 0 : index
    %c37_103 = arith.constant 37 : index
    %101 = vector.load %arg2[%c0_101, %c0_102, %c37_103] : memref<1x4x384xbf16, #tpu.memory_space<vmem>>, vector<1x4x256xbf16>
    %102 = vector.shape_cast %101 : vector<1x4x256xbf16> to vector<4x256xbf16>
    %c7_104 = arith.constant 7 : index
    %c0_105 = arith.constant 0 : index
    %c0_106 = arith.constant 0 : index
    %103 = vector.load %arg5[%c7_104, %c0_105, %c0_106] : memref<9x8x4xbf16, #tpu.memory_space<vmem>>, vector<1x8x4xbf16>
    %104 = vector.shape_cast %103 : vector<1x8x4xbf16> to vector<8x4xbf16>
    %cst_107 = arith.constant dense<0.000000e+00> : vector<8x256xf32>
    %105 = tpu.matmul %104, %102, %cst_107 {dimension_numbers = #tpu.dot_dimension_numbers<[1], [0], [0], [1], [0, 0, 1, 1], [], []>} : vector<8x4xbf16>, vector<4x256xbf16>, vector<8x256xf32> -> vector<8x256xf32>
    %106 = arith.addf %100, %105 : vector<8x256xf32>
    %c0_108 = arith.constant 0 : index
    %c0_109 = arith.constant 0 : index
    %c38_110 = arith.constant 38 : index
    %107 = vector.load %arg2[%c0_108, %c0_109, %c38_110] : memref<1x4x384xbf16, #tpu.memory_space<vmem>>, vector<1x4x256xbf16>
    %108 = vector.shape_cast %107 : vector<1x4x256xbf16> to vector<4x256xbf16>
    %c8_111 = arith.constant 8 : index
    %c0_112 = arith.constant 0 : index
    %c0_113 = arith.constant 0 : index
    %109 = vector.load %arg5[%c8_111, %c0_112, %c0_113] : memref<9x8x4xbf16, #tpu.memory_space<vmem>>, vector<1x8x4xbf16>
    %110 = vector.shape_cast %109 : vector<1x8x4xbf16> to vector<8x4xbf16>
    %cst_114 = arith.constant dense<0.000000e+00> : vector<8x256xf32>
    %111 = tpu.matmul %110, %108, %cst_114 {dimension_numbers = #tpu.dot_dimension_numbers<[1], [0], [0], [1], [0, 0, 1, 1], [], []>} : vector<8x4xbf16>, vector<4x256xbf16>, vector<8x256xf32> -> vector<8x256xf32>
    %112 = arith.addf %106, %111 : vector<8x256xf32>
    %c0_115 = arith.constant 0 : index
    %c0_116 = arith.constant 0 : index
    %c0_117 = arith.constant 0 : index
    %113 = vector.load %arg8[%c0_115, %c0_116, %c0_117] : memref<1x8x256xf32, #tpu.memory_space<vmem>>, vector<1x8x256xf32>
    %114 = vector.shape_cast %113 : vector<1x8x256xf32> to vector<8x256xf32>
    %115 = vector.shape_cast %112 : vector<8x256xf32> to vector<1x8x256xf32>
    tpu.vector_store %arg8[%c0_115, %c0_116, %c0_117], %115 {strides = array<i32>} : memref<1x8x256xf32, #tpu.memory_space<vmem>>, vector<1x8x256xf32>,
    %cst_118 = arith.constant 0.000000e+00 : f32
    %116 = vector.broadcast %cst_118 : f32 to vector<8x384xf32>
    %c0_119 = arith.constant 0 : index
    %c0_120 = arith.constant 0 : index
    %c0_121 = arith.constant 0 : index
    %117 = vector.load %arg3[%c0_119, %c0_120, %c0_121] : memref<1x4x512xbf16, #tpu.memory_space<vmem>>, vector<1x4x384xbf16>
    %118 = vector.shape_cast %117 : vector<1x4x384xbf16> to vector<4x384xbf16>
    %c0_122 = arith.constant 0 : index
    %c0_123 = arith.constant 0 : index
    %c0_124 = arith.constant 0 : index
    %119 = vector.load %arg6[%c0_122, %c0_123, %c0_124] : memref<9x8x4xbf16, #tpu.memory_space<vmem>>, vector<1x8x4xbf16>
    %120 = vector.shape_cast %119 : vector<1x8x4xbf16> to vector<8x4xbf16>
    %cst_125 = arith.constant dense<0.000000e+00> : vector<8x384xf32>
    %121 = tpu.matmul %120, %118, %cst_125 {dimension_numbers = #tpu.dot_dimension_numbers<[1], [0], [0], [1], [0, 0, 1, 1], [], []>} : vector<8x4xbf16>, vector<4x384xbf16>, vector<8x384xf32> -> vector<8x384xf32>
    %122 = arith.addf %116, %121 : vector<8x384xf32>
    %c0_126 = arith.constant 0 : index
    %c0_127 = arith.constant 0 : index
    %c1_128 = arith.constant 1 : index
    %123 = vector.load %arg3[%c0_126, %c0_127, %c1_128] : memref<1x4x512xbf16, #tpu.memory_space<vmem>>, vector<1x4x384xbf16>
    %124 = vector.shape_cast %123 : vector<1x4x384xbf16> to vector<4x384xbf16>
    %c1_129 = arith.constant 1 : index
    %c0_130 = arith.constant 0 : index
    %c0_131 = arith.constant 0 : index
    %125 = vector.load %arg6[%c1_129, %c0_130, %c0_131] : memref<9x8x4xbf16, #tpu.memory_space<vmem>>, vector<1x8x4xbf16>
    %126 = vector.shape_cast %125 : vector<1x8x4xbf16> to vector<8x4xbf16>
    %cst_132 = arith.constant dense<0.000000e+00> : vector<8x384xf32>
    %127 = tpu.matmul %126, %124, %cst_132 {dimension_numbers = #tpu.dot_dimension_numbers<[1], [0], [0], [1], [0, 0, 1, 1], [], []>} : vector<8x4xbf16>, vector<4x384xbf16>, vector<8x384xf32> -> vector<8x384xf32>
    %128 = arith.addf %122, %127 : vector<8x384xf32>
    %c0_133 = arith.constant 0 : index
    %c0_134 = arith.constant 0 : index
    %c2_135 = arith.constant 2 : index
    %129 = vector.load %arg3[%c0_133, %c0_134, %c2_135] : memref<1x4x512xbf16, #tpu.memory_space<vmem>>, vector<1x4x384xbf16>
    %130 = vector.shape_cast %129 : vector<1x4x384xbf16> to vector<4x384xbf16>
    %c2_136 = arith.constant 2 : index
    %c0_137 = arith.constant 0 : index
    %c0_138 = arith.constant 0 : index
    %131 = vector.load %arg6[%c2_136, %c0_137, %c0_138] : memref<9x8x4xbf16, #tpu.memory_space<vmem>>, vector<1x8x4xbf16>
    %132 = vector.shape_cast %131 : vector<1x8x4xbf16> to vector<8x4xbf16>
    %cst_139 = arith.constant dense<0.000000e+00> : vector<8x384xf32>
    %133 = tpu.matmul %132, %130, %cst_139 {dimension_numbers = #tpu.dot_dimension_numbers<[1], [0], [0], [1], [0, 0, 1, 1], [], []>} : vector<8x4xbf16>, vector<4x384xbf16>, vector<8x384xf32> -> vector<8x384xf32>
    %134 = arith.addf %128, %133 : vector<8x384xf32>
    %c0_140 = arith.constant 0 : index
    %c0_141 = arith.constant 0 : index
    %c18_142 = arith.constant 18 : index
    %135 = vector.load %arg3[%c0_140, %c0_141, %c18_142] : memref<1x4x512xbf16, #tpu.memory_space<vmem>>, vector<1x4x384xbf16>
    %136 = vector.shape_cast %135 : vector<1x4x384xbf16> to vector<4x384xbf16>
    %c3_143 = arith.constant 3 : index
    %c0_144 = arith.constant 0 : index
    %c0_145 = arith.constant 0 : index
    %137 = vector.load %arg6[%c3_143, %c0_144, %c0_145] : memref<9x8x4xbf16, #tpu.memory_space<vmem>>, vector<1x8x4xbf16>
    %138 = vector.shape_cast %137 : vector<1x8x4xbf16> to vector<8x4xbf16>
    %cst_146 = arith.constant dense<0.000000e+00> : vector<8x384xf32>
    %139 = tpu.matmul %138, %136, %cst_146 {dimension_numbers = #tpu.dot_dimension_numbers<[1], [0], [0], [1], [0, 0, 1, 1], [], []>} : vector<8x4xbf16>, vector<4x384xbf16>, vector<8x384xf32> -> vector<8x384xf32>
    %140 = arith.addf %134, %139 : vector<8x384xf32>
    %c0_147 = arith.constant 0 : index
    %c0_148 = arith.constant 0 : index
    %c19_149 = arith.constant 19 : index
    %141 = vector.load %arg3[%c0_147, %c0_148, %c19_149] : memref<1x4x512xbf16, #tpu.memory_space<vmem>>, vector<1x4x384xbf16>
    %142 = vector.shape_cast %141 : vector<1x4x384xbf16> to vector<4x384xbf16>
    %c4_150 = arith.constant 4 : index
    %c0_151 = arith.constant 0 : index
    %c0_152 = arith.constant 0 : index
    %143 = vector.load %arg6[%c4_150, %c0_151, %c0_152] : memref<9x8x4xbf16, #tpu.memory_space<vmem>>, vector<1x8x4xbf16>
    %144 = vector.shape_cast %143 : vector<1x8x4xbf16> to vector<8x4xbf16>
    %cst_153 = arith.constant dense<0.000000e+00> : vector<8x384xf32>
    %145 = tpu.matmul %144, %142, %cst_153 {dimension_numbers = #tpu.dot_dimension_numbers<[1], [0], [0], [1], [0, 0, 1, 1], [], []>} : vector<8x4xbf16>, vector<4x384xbf16>, vector<8x384xf32> -> vector<8x384xf32>
    %146 = arith.addf %140, %145 : vector<8x384xf32>
    %c0_154 = arith.constant 0 : index
    %c0_155 = arith.constant 0 : index
    %c20_156 = arith.constant 20 : index
    %147 = vector.load %arg3[%c0_154, %c0_155, %c20_156] : memref<1x4x512xbf16, #tpu.memory_space<vmem>>, vector<1x4x384xbf16>
    %148 = vector.shape_cast %147 : vector<1x4x384xbf16> to vector<4x384xbf16>
    %c5_157 = arith.constant 5 : index
    %c0_158 = arith.constant 0 : index
    %c0_159 = arith.constant 0 : index
    %149 = vector.load %arg6[%c5_157, %c0_158, %c0_159] : memref<9x8x4xbf16, #tpu.memory_space<vmem>>, vector<1x8x4xbf16>
    %150 = vector.shape_cast %149 : vector<1x8x4xbf16> to vector<8x4xbf16>
    %cst_160 = arith.constant dense<0.000000e+00> : vector<8x384xf32>
    %151 = tpu.matmul %150, %148, %cst_160 {dimension_numbers = #tpu.dot_dimension_numbers<[1], [0], [0], [1], [0, 0, 1, 1], [], []>} : vector<8x4xbf16>, vector<4x384xbf16>, vector<8x384xf32> -> vector<8x384xf32>
    %152 = arith.addf %146, %151 : vector<8x384xf32>
    %c0_161 = arith.constant 0 : index
    %c0_162 = arith.constant 0 : index
    %c36_163 = arith.constant 36 : index
    %153 = vector.load %arg3[%c0_161, %c0_162, %c36_163] : memref<1x4x512xbf16, #tpu.memory_space<vmem>>, vector<1x4x384xbf16>
    %154 = vector.shape_cast %153 : vector<1x4x384xbf16> to vector<4x384xbf16>
    %c6_164 = arith.constant 6 : index
    %c0_165 = arith.constant 0 : index
    %c0_166 = arith.constant 0 : index
    %155 = vector.load %arg6[%c6_164, %c0_165, %c0_166] : memref<9x8x4xbf16, #tpu.memory_space<vmem>>, vector<1x8x4xbf16>
    %156 = vector.shape_cast %155 : vector<1x8x4xbf16> to vector<8x4xbf16>
    %cst_167 = arith.constant dense<0.000000e+00> : vector<8x384xf32>
    %157 = tpu.matmul %156, %154, %cst_167 {dimension_numbers = #tpu.dot_dimension_numbers<[1], [0], [0], [1], [0, 0, 1, 1], [], []>} : vector<8x4xbf16>, vector<4x384xbf16>, vector<8x384xf32> -> vector<8x384xf32>
    %158 = arith.addf %152, %157 : vector<8x384xf32>
    %c0_168 = arith.constant 0 : index
    %c0_169 = arith.constant 0 : index
    %c37_170 = arith.constant 37 : index
    %159 = vector.load %arg3[%c0_168, %c0_169, %c37_170] : memref<1x4x512xbf16, #tpu.memory_space<vmem>>, vector<1x4x384xbf16>
    %160 = vector.shape_cast %159 : vector<1x4x384xbf16> to vector<4x384xbf16>
    %c7_171 = arith.constant 7 : index
    %c0_172 = arith.constant 0 : index
    %c0_173 = arith.constant 0 : index
    %161 = vector.load %arg6[%c7_171, %c0_172, %c0_173] : memref<9x8x4xbf16, #tpu.memory_space<vmem>>, vector<1x8x4xbf16>
    %162 = vector.shape_cast %161 : vector<1x8x4xbf16> to vector<8x4xbf16>
    %cst_174 = arith.constant dense<0.000000e+00> : vector<8x384xf32>
    %163 = tpu.matmul %162, %160, %cst_174 {dimension_numbers = #tpu.dot_dimension_numbers<[1], [0], [0], [1], [0, 0, 1, 1], [], []>} : vector<8x4xbf16>, vector<4x384xbf16>, vector<8x384xf32> -> vector<8x384xf32>
    %164 = arith.addf %158, %163 : vector<8x384xf32>
    %c0_175 = arith.constant 0 : index
    %c0_176 = arith.constant 0 : index
    %c38_177 = arith.constant 38 : index
    %165 = vector.load %arg3[%c0_175, %c0_176, %c38_177] : memref<1x4x512xbf16, #tpu.memory_space<vmem>>, vector<1x4x384xbf16>
    %166 = vector.shape_cast %165 : vector<1x4x384xbf16> to vector<4x384xbf16>
    %c8_178 = arith.constant 8 : index
    %c0_179 = arith.constant 0 : index
    %c0_180 = arith.constant 0 : index
    %167 = vector.load %arg6[%c8_178, %c0_179, %c0_180] : memref<9x8x4xbf16, #tpu.memory_space<vmem>>, vector<1x8x4xbf16>
    %168 = vector.shape_cast %167 : vector<1x8x4xbf16> to vector<8x4xbf16>
    %cst_181 = arith.constant dense<0.000000e+00> : vector<8x384xf32>
    %169 = tpu.matmul %168, %166, %cst_181 {dimension_numbers = #tpu.dot_dimension_numbers<[1], [0], [0], [1], [0, 0, 1, 1], [], []>} : vector<8x4xbf16>, vector<4x384xbf16>, vector<8x384xf32> -> vector<8x384xf32>
    %170 = arith.addf %164, %169 : vector<8x384xf32>
    %c0_182 = arith.constant 0 : index
    %c0_183 = arith.constant 0 : index
    %c0_184 = arith.constant 0 : index
    %171 = vector.load %arg9[%c0_182, %c0_183, %c0_184] : memref<1x8x384xf32, #tpu.memory_space<vmem>>, vector<1x8x384xf32>
    %172 = vector.shape_cast %171 : vector<1x8x384xf32> to vector<8x384xf32>
    %173 = vector.shape_cast %170 : vector<8x384xf32> to vector<1x8x384xf32>
    tpu.vector_store %arg9[%c0_182, %c0_183, %c0_184], %173 {strides = array<i32>} : memref<1x8x384xf32, #tpu.memory_space<vmem>>, vector<1x8x384xf32>,
    return
  }
  func.func @transform_0(%arg0: i32) -> (i32, i32, i32) {
    %c0_i32 = arith.constant 0 : i32
    %c0_i32_0 = arith.constant 0 : i32
    %c0_i32_1 = arith.constant 0 : i32
    return %arg0, %c0_i32, %c0_i32_0 : i32, i32, i32
  }
  func.func @transform_1(%arg0: i32) -> (i32, i32, i32) {
    %c0_i32 = arith.constant 0 : i32
    %c0_i32_0 = arith.constant 0 : i32
    %c0_i32_1 = arith.constant 0 : i32
    return %arg0, %c0_i32, %c0_i32_0 : i32, i32, i32
  }
  func.func @transform_2(%arg0: i32) -> (i32, i32, i32) {
    %c0_i32 = arith.constant 0 : i32
    %c0_i32_0 = arith.constant 0 : i32
    %c0_i32_1 = arith.constant 0 : i32
    return %arg0, %c0_i32, %c0_i32_0 : i32, i32, i32
  }
  func.func @transform_3(%arg0: i32) -> (i32, i32, i32) {
    %c0_i32 = arith.constant 0 : i32
    %c0_i32_0 = arith.constant 0 : i32
    %c0_i32_1 = arith.constant 0 : i32
    %c0_i32_2 = arith.constant 0 : i32
    return %c0_i32, %c0_i32_0, %c0_i32_1 : i32, i32, i32
  }
  func.func @transform_4(%arg0: i32) -> (i32, i32, i32) {
    %c0_i32 = arith.constant 0 : i32
    %c0_i32_0 = arith.constant 0 : i32
    %c0_i32_1 = arith.constant 0 : i32
    %c0_i32_2 = arith.constant 0 : i32
    return %c0_i32, %c0_i32_0, %c0_i32_1 : i32, i32, i32
  }
  func.func @transform_5(%arg0: i32) -> (i32, i32, i32) {
    %c0_i32 = arith.constant 0 : i32
    %c0_i32_0 = arith.constant 0 : i32
    %c0_i32_1 = arith.constant 0 : i32
    %c0_i32_2 = arith.constant 0 : i32
    return %c0_i32, %c0_i32_0, %c0_i32_1 : i32, i32, i32
  }
  func.func @transform_6(%arg0: i32) -> (i32, i32, i32) {
    %c0_i32 = arith.constant 0 : i32
    %c0_i32_0 = arith.constant 0 : i32
    %c0_i32_1 = arith.constant 0 : i32
    return %arg0, %c0_i32, %c0_i32_0 : i32, i32, i32
  }
  func.func @transform_7(%arg0: i32) -> (i32, i32, i32) {
    %c0_i32 = arith.constant 0 : i32
    %c0_i32_0 = arith.constant 0 : i32
    %c0_i32_1 = arith.constant 0 : i32
    return %arg0, %c0_i32, %c0_i32_0 : i32, i32, i32
  }
  func.func @transform_8(%arg0: i32) -> (i32, i32, i32) {
    %c0_i32 = arith.constant 0 : i32
    %c0_i32_0 = arith.constant 0 : i32
    %c0_i32_1 = arith.constant 0 : i32
    return %arg0, %c0_i32, %c0_i32_0 : i32, i32, i32
  }
}

</mosaic_0001>

<llo_original>
// kernel: custom_conv3d_forward.2
$region0: #{custom_conv3d_forward.2}
  #allocation0 [shape = 'u32[]', space=smem, size = 0x4, offset = 0x4, fixed_abs, tag = 'smem constant byte address 0x4 - core index']
  #allocation1 [shape = 'u32[144,128]{1,0:T(1,128)}', space=vmem, size = 0x12000, scoped, tag = 'internal scratch']
  %s0 = inlined_call_operand.hbm [shape: f32[2,4,8,16,16], index: 0, kind: input, shape index: {}]
  %s1 = inlined_call_operand.vmem [shape: bf16[2,4,8,16], index: 1, kind: output, shape index: {0}]
  %s2 = inlined_call_operand.vmem [shape: bf16[2,4,8,16], index: 2, kind: output, shape index: {1}]
  %s3 = inlined_call_operand.vmem [shape: bf16[2,4,16,16], index: 3, kind: output, shape index: {2}]
  %4 = xla_tuple %s1, %s2, %s3
  %s5 = sld [smem:[#allocation0]]
  $region57: #{custom_conv3d_forward.2} parent=0
    _
  %s7 = ssub.s32 1, %s5
  %s8 = scalar_select 0, %s7, %s5
  $region1: #{custom_conv3d_forward.2} parent=0
    #allocation2 [shape = 'u8[131072]{0}', space=vmem, size = 0x20000, scoped, tag = 'input window, operand 0']
    #allocation3 [shape = 's32[2]{0}', space=sflag, size = 0x8, scoped, tag = 'scoped memory for custom_conv3d_forward.2']
    %9 = vsyncpa [#allocation3], 0
    %s10 = scalar_lea.sflag [#allocation3], 1
    %11 = vsyncpa %s10, 0
    loop: start=0, step=1, limit=10
    $region2: #{custom_conv3d_forward.2} parent=1 // loop_pre_header
      _
    $region3: #{custom_conv3d_forward.2} parent=1 // loop_header
      %s13 = sphi 0, %s17
      %p14 = scmp.ge.s32.totalorder %s13, 10
      %s20 = sphi 0, %s32
      %s21 = sphi 0, %s28
      %s22 = sphi 0, %s20
      %s23 = sphi 0, %s21
      %s24 = sphi 0, %s22
      %s25 = sphi 0, %s23
      %s37 = sphi 0, %s39
      %s40 = sphi 0, %s37
      %s41 = sphi 0, %s40
      %s57 = sphi 0, %s41
      %s65 = sphi 0, %s67
      %s68 = sphi 0, %s65
      %s69 = sphi 0, %s68
      %s85 = sphi 0, %s69
      %s93 = sphi 0, %s95
      %s96 = sphi 0, %s93
      %s97 = sphi 0, %s96
      %s113 = sphi 0, %s97
      %s121 = sphi 0, %s123
      %s124 = sphi 0, %s121
      %s125 = sphi 0, %s124
      %s141 = sphi 0, %s125
    $region4: #{custom_conv3d_forward.2} parent=1 // loop_header_branch
      %16 = sbr.rel (%p14) target = $region8
    $region5: #{custom_conv3d_forward.2} parent=1 // loop_body
      %s18 = ssub.s32 %s13, 1
      %s19 = ssub.s32 %s13, 2
      %s26 = sadd.s32 1, %s21
      %p27 = scmp.ge.s32.totalorder %s26, 4
      %s28 = scalar_select %p27, 0, %s26
      %s29 = sadd.s32 1, %s20
      %s30 = scalar_select %p27, %s29, %s20
      %p31 = scmp.ge.s32.totalorder %s30, 2
      %s32 = scalar_select %p31, 0, %s30
      %s33 = ssub.s32 %s20, %s32
      %s34 = ssub.s32 %s21, %s28
      %s35 = sor.u32 %s33, %s34
      %p36 = scmp.eq.s32.totalorder %s35, 0
      %s38 = sadd.s32 %s37, 1
      %s39 = scalar_select %p36, %s37, %s38
      %p42 = pneg %p36
      %p43 = scmp.eq.s32.totalorder %s13, 7
      %p44 = por %p42, %p43
      %p45 = scmp.ne.s32.totalorder %s37, %s40
      %p46 = scmp.eq.s32.totalorder %s13, 0
      %p47 = por %p45, %p46
      %p48 = scmp.ne.s32.totalorder %s37, %s40
      %p49 = scmp.eq.s32.totalorder %s18, 7
      %p50 = por %p48, %p49
      %p51 = scmp.ne.s32.totalorder %s40, %s41
      %p52 = scmp.eq.s32.totalorder %s18, 0
      %p53 = por %p51, %p52
      %p54 = scmp.ne.s32.totalorder %s40, %s41
      %p55 = scmp.eq.s32.totalorder %s19, 7
      %p56 = por %p54, %p55
      %p58 = scmp.ne.s32.totalorder %s41, %s57
      %p59 = scmp.eq.s32.totalorder %s19, 0
      %p60 = por %p58, %p59
      %s61 = ssub.s32 %s20, %s32
      %s62 = ssub.s32 %s21, %s28
      %s63 = sor.u32 %s61, %s62
      %p64 = scmp.eq.s32.totalorder %s63, 0
      %s66 = sadd.s32 %s65, 1
      %s67 = scalar_select %p64, %s65, %s66
      %p70 = pneg %p64
      %p71 = scmp.eq.s32.totalorder %s13, 7
      %p72 = por %p70, %p71
      %p73 = scmp.ne.s32.totalorder %s65, %s68
      %p74 = scmp.eq.s32.totalorder %s13, 0
      %p75 = por %p73, %p74
      %p76 = scmp.ne.s32.totalorder %s65, %s68
      %p77 = scmp.eq.s32.totalorder %s18, 7
      %p78 = por %p76, %p77
      %p79 = scmp.ne.s32.totalorder %s68, %s69
      %p80 = scmp.eq.s32.totalorder %s18, 0
      %p81 = por %p79, %p80
      %p82 = scmp.ne.s32.totalorder %s68, %s69
      %p83 = scmp.eq.s32.totalorder %s19, 7
      %p84 = por %p82, %p83
      %p86 = scmp.ne.s32.totalorder %s69, %s85
      %p87 = scmp.eq.s32.totalorder %s19, 0
      %p88 = por %p86, %p87
      %s89 = ssub.s32 %s20, %s32
      %s90 = ssub.s32 %s21, %s28
      %s91 = sor.u32 %s89, %s90
      %p92 = scmp.eq.s32.totalorder %s91, 0
      %s94 = sadd.s32 %s93, 1
      %s95 = scalar_select %p92, %s93, %s94
      %p98 = pneg %p92
      %p99 = scmp.eq.s32.totalorder %s13, 7
      %p100 = por %p98, %p99
      %p101 = scmp.ne.s32.totalorder %s93, %s96
      %p102 = scmp.eq.s32.totalorder %s13, 0
      %p103 = por %p101, %p102
      %p104 = scmp.ne.s32.totalorder %s93, %s96
      %p105 = scmp.eq.s32.totalorder %s18, 7
      %p106 = por %p104, %p105
      %p107 = scmp.ne.s32.totalorder %s96, %s97
      %p108 = scmp.eq.s32.totalorder %s18, 0
      %p109 = por %p107, %p108
      %p110 = scmp.ne.s32.totalorder %s96, %s97
      %p111 = scmp.eq.s32.totalorder %s19, 7
      %p112 = por %p110, %p111
      %p114 = scmp.ne.s32.totalorder %s97, %s113
      %p115 = scmp.eq.s32.totalorder %s19, 0
      %p116 = por %p114, %p115
      %s117 = ssub.s32 %s20, %s32
      %s118 = ssub.s32 %s21, %s28
      %s119 = sor.u32 %s117, %s118
      %p120 = scmp.eq.s32.totalorder %s119, 0
      %s122 = sadd.s32 %s121, 1
      %s123 = scalar_select %p120, %s121, %s122
      %p126 = pneg %p120
      %p127 = scmp.eq.s32.totalorder %s13, 7
      %p128 = por %p126, %p127
      %p129 = scmp.ne.s32.totalorder %s121, %s124
      %p130 = scmp.eq.s32.totalorder %s13, 0
      %p131 = por %p129, %p130
      %p132 = scmp.ne.s32.totalorder %s121, %s124
      %p133 = scmp.eq.s32.totalorder %s18, 7
      %p134 = por %p132, %p133
      %p135 = scmp.ne.s32.totalorder %s124, %s125
      %p136 = scmp.eq.s32.totalorder %s18, 0
      %p137 = por %p135, %p136
      %p138 = scmp.ne.s32.totalorder %s124, %s125
      %p139 = scmp.eq.s32.totalorder %s19, 7
      %p140 = por %p138, %p139
      %p142 = scmp.ne.s32.totalorder %s125, %s141
      %p143 = scmp.eq.s32.totalorder %s19, 0
      %p144 = por %p142, %p143
      %p145 = scmp.le.s32.totalorder 1, %s13
      %p146 = scmp.lt.s32.totalorder %s13, 9
      %p147 = pnand %p145, %p146
      %p148 = pneg %p147
      // Predicated region
      $region9: #{custom_conv3d_forward.2} parent=5 // pred_check
        _
      $region10: #{custom_conv3d_forward.2} parent=5 // pred_check_branch
        %150 = sbr.rel (%p147) target = $region12
      $region11: #{custom_conv3d_forward.2} parent=5 // pred_region
        %s151 = ssub.s32 %s13, 1
      $region12: #{custom_conv3d_forward.2} parent=5 // pred_fallthru
        _
      %p152 = scmp.lt.s32.totalorder %s13, 8
      // Predicated region
      $region13: #{custom_conv3d_forward.2} parent=5 // pred_check
        %p153 = pneg %p152
      $region14: #{custom_conv3d_forward.2} parent=5 // pred_check_branch
        %155 = sbr.rel (%p153) target = $region16
      $region15: #{custom_conv3d_forward.2} parent=5 // pred_region
        // Predicated region
        $region17: #{custom_conv3d_forward.2} parent=15 // pred_check
          %p156 = pneg %p47
        $region18: #{custom_conv3d_forward.2} parent=15 // pred_check_branch
          %158 = sbr.rel (%p156) target = $region20
        $region19: #{custom_conv3d_forward.2} parent=15 // pred_region
          %s159 = sand.u32 %s37, 1
          %s160 = scalar_lea.sflag [#allocation3], %s159
          %s161 = sand.u32 %s37, 1
          %s162 = smul.addr %s161, 128
          %s163 = scalar_lea.vmem [#allocation2], %s162
          %s165 = ssub.s32 2048, 2048
          %166 = vsyncadd %s160, %s165
          %s167 = smul.addr %s21, 16
          %s168 = smul.addr %s20, 64
          %s169 = sadd.s32 %s167, %s168
          %s170 = smul.addr %s169, 128
          %s171 = scalar_lea.hbm %s0, %s170
          %s172 = sshll.u32 %s163, 4
          %s173 = int_to_ptr.vmem [resolvable:$true] %s172
          %178 = dma.hbm_to_vmem [thread:$0]  %s171, 2048, %s173, %s160, 128, 128, 8
        $region20: #{custom_conv3d_forward.2} parent=15 // pred_fallthru
          _
      $region16: #{custom_conv3d_forward.2} parent=5 // pred_fallthru
        _
      %p179 = scmp.le.s32.totalorder 1, %s13
      %p180 = scmp.lt.s32.totalorder %s13, 9
      %p181 = pnand %p179, %p180
      %p182 = pneg %p181
      // Predicated region
      $region21: #{custom_conv3d_forward.2} parent=5 // pred_check
        _
      $region22: #{custom_conv3d_forward.2} parent=5 // pred_check_branch
        %184 = sbr.rel (%p181) target = $region24
      $region23: #{custom_conv3d_forward.2} parent=5 // pred_region
        %s185 = ssub.s32 %s13, 1
        %s186 = sand.u32 %s40, 1
        %s187 = scalar_lea.sflag [#allocation3], %s186
        %s188 = sand.u32 %s40, 1
        %s189 = smul.addr %s188, 128
        %s190 = scalar_lea.vmem [#allocation2], %s189
        // Predicated region
        $region25: #{custom_conv3d_forward.2} parent=23 // pred_check
          %p191 = pneg %p53
        $region26: #{custom_conv3d_forward.2} parent=23 // pred_check_branch
          %193 = sbr.rel (%p191) target = $region28
        $region27: #{custom_conv3d_forward.2} parent=23 // pred_region
          %194 = dma.done %s187, 2048
        $region28: #{custom_conv3d_forward.2} parent=23 // pred_fallthru
          _
        %s195 = sand.u32 %s40, 1
        %s196 = scalar_lea.sflag [#allocation3], %s195
        %s197 = sand.u32 %s40, 1
        %s198 = smul.addr %s197, 128
        %s199 = scalar_lea.vmem [#allocation2], %s198
        %p200 = pneg %p53
        %p201 = pneg %p50
        %p202 = pneg %p81
        %p203 = pneg %p78
        %p204 = scmp.lt.s32.totalorder %s22, 1
        %s205 = scalar_select %p204, %s22, 1
        %p206 = scmp.lt.s32.totalorder %s23, 3
        %s207 = scalar_select %p206, %s23, 3
        %s208 = smul.addr %s205, 4
        %s209 = sadd.s32 %s207, %s208
        %s210 = smul.addr %s209, 4
        %s211 = scalar_lea.vmem %s1, %s210
        %p212 = pneg %p109
        %p213 = pneg %p106
        %p214 = scmp.lt.s32.totalorder %s22, 1
        %s215 = scalar_select %p214, %s22, 1
        %p216 = scmp.lt.s32.totalorder %s23, 3
        %s217 = scalar_select %p216, %s23, 3
        %s218 = smul.addr %s215, 4
        %s219 = sadd.s32 %s217, %s218
        %s220 = smul.addr %s219, 4
        %s221 = scalar_lea.vmem %s2, %s220
        %p222 = pneg %p137
        %p223 = pneg %p134
        %p224 = scmp.lt.s32.totalorder %s22, 1
        %s225 = scalar_select %p224, %s22, 1
        %p226 = scmp.lt.s32.totalorder %s23, 3
        %s227 = scalar_select %p226, %s23, 3
        %s228 = smul.addr %s227, 2
        %s229 = smul.addr %s225, 8
        %s230 = sadd.s32 %s228, %s229
        %s231 = smul.addr %s230, 4
        %s232 = scalar_lea.vmem %s3, %s231
        %p233 = scmp.lt.s32.totalorder %s22, 1
        %s234 = scalar_select %p233, %s22, 1
        %p235 = scmp.lt.s32.totalorder %s23, 3
        %s236 = scalar_select %p235, %s23, 3
        %s237 = smul.addr %s234, 4
        %s238 = sadd.s32 %s236, %s237
        %s239 = smul.addr %s238, 4
        %s240 = scalar_lea.vmem %s1, %s239
        %p241 = scmp.lt.s32.totalorder %s22, 1
        %s242 = scalar_select %p241, %s22, 1
        %p243 = scmp.lt.s32.totalorder %s23, 3
        %s244 = scalar_select %p243, %s23, 3
        %s245 = smul.addr %s242, 4
        %s246 = sadd.s32 %s244, %s245
        %s247 = smul.addr %s246, 4
        %s248 = scalar_lea.vmem %s2, %s247
        %p249 = scmp.lt.s32.totalorder %s22, 1
        %s250 = scalar_select %p249, %s22, 1
        %p251 = scmp.lt.s32.totalorder %s23, 3
        %s252 = scalar_select %p251, %s23, 3
        %s253 = smul.addr %s252, 2
        %s254 = smul.addr %s250, 8
        %s255 = sadd.s32 %s253, %s254
        %s256 = smul.addr %s255, 4
        %s257 = scalar_lea.vmem %s3, %s256
        %v258 = vld [vmem:[%s190] sm:$0xff]
        %v259 = vld [vmem:[%s190 + $0x8] sm:$0xff]
        %v260 = vld [vmem:[%s190 + $0x10] sm:$0xff]
        %v261 = vld [vmem:[%s190 + $0x18] sm:$0xff]
        %v262 = vld [vmem:[%s190 + $0x20] sm:$0xff]
        %v263 = vld [vmem:[%s190 + $0x28] sm:$0xff]
        %v264 = vld [vmem:[%s190 + $0x30] sm:$0xff]
        %v265 = vld [vmem:[%s190 + $0x38] sm:$0xff]
        %v266 = vld [vmem:[%s190 + $0x40] sm:$0xff]
        %v267 = vld [vmem:[%s190 + $0x48] sm:$0xff]
        %v268 = vld [vmem:[%s190 + $0x50] sm:$0xff]
        %v269 = vld [vmem:[%s190 + $0x58] sm:$0xff]
        %v270 = vld [vmem:[%s190 + $0x60] sm:$0xff]
        %v271 = vld [vmem:[%s190 + $0x68] sm:$0xff]
        %v272 = vld [vmem:[%s190 + $0x70] sm:$0xff]
        %v273 = vld [vmem:[%s190 + $0x78] sm:$0xff]
        %vm274 = vcmask 130048
        %v275 = vsel %vm274, %v258, 0.0
        %276 = vadd.xlane.f32.xlu0 %v275
        %v277 = vpop.xlane.xlu0 %276
        %v278 = vsel %vm274, %v259, 0.0
        %279 = vadd.xlane.f32.xlu0 %v278
        %v280 = vpop.xlane.xlu0 %279
        %v281 = vsel %vm274, %v260, 0.0
        %282 = vadd.xlane.f32.xlu0 %v281
        %v283 = vpop.xlane.xlu0 %282
        %v284 = vsel %vm274, %v261, 0.0
        %285 = vadd.xlane.f32.xlu0 %v284
        %v286 = vpop.xlane.xlu0 %285
        %v287 = vsel %vm274, %v262, 0.0
        %288 = vadd.xlane.f32.xlu0 %v287
        %v289 = vpop.xlane.xlu0 %288
        %v290 = vsel %vm274, %v263, 0.0
        %291 = vadd.xlane.f32.xlu0 %v290
        %v292 = vpop.xlane.xlu0 %291
        %v293 = vsel %vm274, %v264, 0.0
        %294 = vadd.xlane.f32.xlu0 %v293
        %v295 = vpop.xlane.xlu0 %294
        %v296 = vsel %vm274, %v265, 0.0
        %297 = vadd.xlane.f32.xlu0 %v296
        %v298 = vpop.xlane.xlu0 %297
        %v299 = vsel %vm274, %v266, 0.0
        %300 = vadd.xlane.f32.xlu0 %v299
        %v301 = vpop.xlane.xlu0 %300
        %v302 = vsel %vm274, %v267, 0.0
        %303 = vadd.xlane.f32.xlu0 %v302
        %v304 = vpop.xlane.xlu0 %303
        %v305 = vsel %vm274, %v268, 0.0
        %306 = vadd.xlane.f32.xlu0 %v305
        %v307 = vpop.xlane.xlu0 %306
        %v308 = vsel %vm274, %v269, 0.0
        %309 = vadd.xlane.f32.xlu0 %v308
        %v310 = vpop.xlane.xlu0 %309
        %v311 = vsel %vm274, %v270, 0.0
        %312 = vadd.xlane.f32.xlu0 %v311
        %v313 = vpop.xlane.xlu0 %312
        %v314 = vsel %vm274, %v271, 0.0
        %315 = vadd.xlane.f32.xlu0 %v314
        %v316 = vpop.xlane.xlu0 %315
        %v317 = vsel %vm274, %v272, 0.0
        %318 = vadd.xlane.f32.xlu0 %v317
        %v319 = vpop.xlane.xlu0 %318
        %v320 = vsel %vm274, %v273, 0.0
        %321 = vadd.xlane.f32.xlu0 %v320
        %v322 = vpop.xlane.xlu0 %321
        %v323 = vpack.c.bf16 %v280, %v277
        %v324 = vpack.c.bf16 %v286, %v283
        %v325 = vpack.c.bf16 %v292, %v289
        %v326 = vpack.c.bf16 %v298, %v295
        %v327 = vpack.c.bf16 %v304, %v301
        %v328 = vpack.c.bf16 %v310, %v307
        %v329 = vpack.c.bf16 %v316, %v313
        %v330 = vpack.c.bf16 %v322, %v319
        %v340 = vunpack.c.l.s4 839922192
        %v341 = vunpack.c.0.s8 %v340
        %v342 = vlaneseq
        %v343 = vshrl.u32 %v342, 7
        %v344 = vsub.s32 %v341, %v343
        %v345 = vrot.slane %v323, %v344
        %v347 = vunpack.c.l.s4 1985246804
        %v348 = vunpack.c.0.s8 %v347
        %v349 = vlaneseq
        %v350 = vshrl.u32 %v349, 7
        %v351 = vsub.s32 %v348, %v350
        %v352 = vrot.slane %v323, %v351
        %v354 = vunpack.c.l.s4 839922192
        %v355 = vunpack.c.0.s8 %v354
        %v356 = vlaneseq
        %v357 = vshrl.u32 %v356, 7
        %v358 = vsub.s32 %v355, %v357
        %v359 = vrot.slane %v324, %v358
        %v361 = vunpack.c.l.s4 1985246804
        %v362 = vunpack.c.0.s8 %v361
        %v363 = vlaneseq
        %v364 = vshrl.u32 %v363, 7
        %v365 = vsub.s32 %v362, %v364
        %v366 = vrot.slane %v324, %v365
        %v368 = vunpack.c.l.s4 839922192
        %v369 = vunpack.c.0.s8 %v368
        %v370 = vlaneseq
        %v371 = vshrl.u32 %v370, 7
        %v372 = vsub.s32 %v369, %v371
        %v373 = vrot.slane %v325, %v372
        %v375 = vunpack.c.l.s4 1985246804
        %v376 = vunpack.c.0.s8 %v375
        %v377 = vlaneseq
        %v378 = vshrl.u32 %v377, 7
        %v379 = vsub.s32 %v376, %v378
        %v380 = vrot.slane %v325, %v379
        %v382 = vunpack.c.l.s4 839922192
        %v383 = vunpack.c.0.s8 %v382
        %v384 = vlaneseq
        %v385 = vshrl.u32 %v384, 7
        %v386 = vsub.s32 %v383, %v385
        %v387 = vrot.slane %v326, %v386
        %v389 = vunpack.c.l.s4 1985246804
        %v390 = vunpack.c.0.s8 %v389
        %v391 = vlaneseq
        %v392 = vshrl.u32 %v391, 7
        %v393 = vsub.s32 %v390, %v392
        %v394 = vrot.slane %v326, %v393
        %v396 = vunpack.c.l.s4 839922192
        %v397 = vunpack.c.0.s8 %v396
        %v398 = vlaneseq
        %v399 = vshrl.u32 %v398, 7
        %v400 = vsub.s32 %v397, %v399
        %v401 = vrot.slane %v327, %v400
        %v403 = vunpack.c.l.s4 1985246804
        %v404 = vunpack.c.0.s8 %v403
        %v405 = vlaneseq
        %v406 = vshrl.u32 %v405, 7
        %v407 = vsub.s32 %v404, %v406
        %v408 = vrot.slane %v327, %v407
        %v410 = vunpack.c.l.s4 839922192
        %v411 = vunpack.c.0.s8 %v410
        %v412 = vlaneseq
        %v413 = vshrl.u32 %v412, 7
        %v414 = vsub.s32 %v411, %v413
        %v415 = vrot.slane %v328, %v414
        %v417 = vunpack.c.l.s4 1985246804
        %v418 = vunpack.c.0.s8 %v417
        %v419 = vlaneseq
        %v420 = vshrl.u32 %v419, 7
        %v421 = vsub.s32 %v418, %v420
        %v422 = vrot.slane %v328, %v421
        %v424 = vunpack.c.l.s4 839922192
        %v425 = vunpack.c.0.s8 %v424
        %v426 = vlaneseq
        %v427 = vshrl.u32 %v426, 7
        %v428 = vsub.s32 %v425, %v427
        %v429 = vrot.slane %v329, %v428
        %v431 = vunpack.c.l.s4 1985246804
        %v432 = vunpack.c.0.s8 %v431
        %v433 = vlaneseq
        %v434 = vshrl.u32 %v433, 7
        %v435 = vsub.s32 %v432, %v434
        %v436 = vrot.slane %v329, %v435
        %v438 = vunpack.c.l.s4 839922192
        %v439 = vunpack.c.0.s8 %v438
        %v440 = vlaneseq
        %v441 = vshrl.u32 %v440, 7
        %v442 = vsub.s32 %v439, %v441
        %v443 = vrot.slane %v330, %v442
        %v445 = vunpack.c.l.s4 1985246804
        %v446 = vunpack.c.0.s8 %v445
        %v447 = vlaneseq
        %v448 = vshrl.u32 %v447, 7
        %v449 = vsub.s32 %v446, %v448
        %v450 = vrot.slane %v330, %v449
        %v451 = vunpack.c.l.b16 %v345
        %v452 = vunpack.c.l.b16 %v352
        %v453 = vunpack.c.l.b16 %v359
        %v454 = vunpack.c.l.b16 %v366
        %v455 = vunpack.c.l.b16 %v373
        %v456 = vunpack.c.l.b16 %v380
        %v457 = vunpack.c.l.b16 %v387
        %v458 = vunpack.c.l.b16 %v394
        %v459 = vunpack.c.l.b16 %v401
        %v460 = vunpack.c.l.b16 %v408
        %v461 = vunpack.c.l.b16 %v415
        %v462 = vunpack.c.l.b16 %v422
        %v463 = vunpack.c.l.b16 %v429
        %v464 = vunpack.c.l.b16 %v436
        %v465 = vunpack.c.l.b16 %v443
        %v466 = vunpack.c.l.b16 %v450
        %v467 = vlaneseq
        %v468 = vand.u32 %v467, 127
        %v469 = vlaneseq
        %v470 = vshrl.u32 %v469, 7
        %v471 = vsub.s32 %v468, %v470
        %v472 = vrot.slane %v451, %v471
        %v473 = vadd.s32 %v468, 4294967288
        %v474 = vlaneseq
        %v475 = vshrl.u32 %v474, 7
        %v476 = vsub.s32 %v473, %v475
        %v477 = vrot.slane %v452, %v476
        %vm478 = vcmask 130112
        %v479 = vsel %vm478, %v477, %v472
        %v480 = vlaneseq
        %v481 = vshrl.u32 %v480, 7
        %v482 = vsub.s32 %v468, %v481
        %v483 = vrot.slane %v453, %v482
        %v484 = vlaneseq
        %v485 = vshrl.u32 %v484, 7
        %v486 = vsub.s32 %v473, %v485
        %v487 = vrot.slane %v454, %v486
        %v488 = vsel %vm478, %v487, %v483
        %v489 = vlaneseq
        %v490 = vshrl.u32 %v489, 7
        %v491 = vsub.s32 %v468, %v490
        %v492 = vrot.slane %v455, %v491
        %v493 = vlaneseq
        %v494 = vshrl.u32 %v493, 7
        %v495 = vsub.s32 %v473, %v494
        %v496 = vrot.slane %v456, %v495
        %v497 = vsel %vm478, %v496, %v492
        %v498 = vlaneseq
        %v499 = vshrl.u32 %v498, 7
        %v500 = vsub.s32 %v468, %v499
        %v501 = vrot.slane %v457, %v500
        %v502 = vlaneseq
        %v503 = vshrl.u32 %v502, 7
        %v504 = vsub.s32 %v473, %v503
        %v505 = vrot.slane %v458, %v504
        %v506 = vsel %vm478, %v505, %v501
        %v507 = vlaneseq
        %v508 = vshrl.u32 %v507, 7
        %v509 = vsub.s32 %v468, %v508
        %v510 = vrot.slane %v459, %v509
        %v511 = vlaneseq
        %v512 = vshrl.u32 %v511, 7
        %v513 = vsub.s32 %v473, %v512
        %v514 = vrot.slane %v460, %v513
        %v515 = vsel %vm478, %v514, %v510
        %v516 = vlaneseq
        %v517 = vshrl.u32 %v516, 7
        %v518 = vsub.s32 %v468, %v517
        %v519 = vrot.slane %v461, %v518
        %v520 = vlaneseq
        %v521 = vshrl.u32 %v520, 7
        %v522 = vsub.s32 %v473, %v521
        %v523 = vrot.slane %v462, %v522
        %v524 = vsel %vm478, %v523, %v519
        %v525 = vlaneseq
        %v526 = vshrl.u32 %v525, 7
        %v527 = vsub.s32 %v468, %v526
        %v528 = vrot.slane %v463, %v527
        %v529 = vlaneseq
        %v530 = vshrl.u32 %v529, 7
        %v531 = vsub.s32 %v473, %v530
        %v532 = vrot.slane %v464, %v531
        %v533 = vsel %vm478, %v532, %v528
        %v534 = vlaneseq
        %v535 = vshrl.u32 %v534, 7
        %v536 = vsub.s32 %v468, %v535
        %v537 = vrot.slane %v465, %v536
        %v538 = vlaneseq
        %v539 = vshrl.u32 %v538, 7
        %v540 = vsub.s32 %v473, %v539
        %v541 = vrot.slane %v466, %v540
        %v542 = vsel %vm478, %v541, %v537
        %vm543 = vcmask 1041409
        %v544 = vsel %vm543, %v488, %v479
        %vm545 = vcmask 1042434
        %v546 = vsel %vm545, %v497, %v544
        %vm547 = vcmask 1043459
        %v548 = vsel %vm547, %v506, %v546
        %vm549 = vcmask 1044484
        %v550 = vsel %vm549, %v515, %v548
        %vm551 = vcmask 1045509
        %v552 = vsel %vm551, %v524, %v550
        %vm553 = vcmask 1046534
        %v554 = vsel %vm553, %v533, %v552
        %vm555 = vcmask 1047559
        %v556 = vsel %vm555, %v542, %v554
        %v557 = vpack.c.b16 %v556, %v556
        %vm559 = vcmask 125952
        %560 = vst.msk [vmem:[%s240] sm:$0xf] %vm559, %v557
        %v561 = vadd.f32 %v275, %v278
        %v562 = vrot.slane %v561, 4
        %v563 = vadd.f32 %v561, %v562
        %v564 = vrot.slane %v563, 2
        %v565 = vadd.f32 %v563, %v564
        %v566 = vrot.slane %v565, 1
        %v567 = vadd.f32 %v565, %v566
        %v568 = vadd.f32 %v281, %v284
        %v569 = vrot.slane %v568, 4
        %v570 = vadd.f32 %v568, %v569
        %v571 = vrot.slane %v570, 2
        %v572 = vadd.f32 %v570, %v571
        %v573 = vrot.slane %v572, 1
        %v574 = vadd.f32 %v572, %v573
        %v575 = vadd.f32 %v287, %v290
        %v576 = vrot.slane %v575, 4
        %v577 = vadd.f32 %v575, %v576
        %v578 = vrot.slane %v577, 2
        %v579 = vadd.f32 %v577, %v578
        %v580 = vrot.slane %v579, 1
        %v581 = vadd.f32 %v579, %v580
        %v582 = vadd.f32 %v293, %v296
        %v583 = vrot.slane %v582, 4
        %v584 = vadd.f32 %v582, %v583
        %v585 = vrot.slane %v584, 2
        %v586 = vadd.f32 %v584, %v585
        %v587 = vrot.slane %v586, 1
        %v588 = vadd.f32 %v586, %v587
        %v589 = vadd.f32 %v299, %v302
        %v590 = vrot.slane %v589, 4
        %v591 = vadd.f32 %v589, %v590
        %v592 = vrot.slane %v591, 2
        %v593 = vadd.f32 %v591, %v592
        %v594 = vrot.slane %v593, 1
        %v595 = vadd.f32 %v593, %v594
        %v596 = vadd.f32 %v305, %v308
        %v597 = vrot.slane %v596, 4
        %v598 = vadd.f32 %v596, %v597
        %v599 = vrot.slane %v598, 2
        %v600 = vadd.f32 %v598, %v599
        %v601 = vrot.slane %v600, 1
        %v602 = vadd.f32 %v600, %v601
        %v603 = vadd.f32 %v311, %v314
        %v604 = vrot.slane %v603, 4
        %v605 = vadd.f32 %v603, %v604
        %v606 = vrot.slane %v605, 2
        %v607 = vadd.f32 %v605, %v606
        %v608 = vrot.slane %v607, 1
        %v609 = vadd.f32 %v607, %v608
        %v610 = vadd.f32 %v317, %v320
        %v611 = vrot.slane %v610, 4
        %v612 = vadd.f32 %v610, %v611
        %v613 = vrot.slane %v612, 2
        %v614 = vadd.f32 %v612, %v613
        %v615 = vrot.slane %v614, 1
        %v616 = vadd.f32 %v614, %v615
        %v617 = vpack.c.bf16 %v567, %v567
        %v618 = vpack.c.bf16 %v574, %v574
        %v619 = vpack.c.bf16 %v581, %v581
        %v620 = vpack.c.bf16 %v588, %v588
        %v621 = vpack.c.bf16 %v595, %v595
        %v622 = vpack.c.bf16 %v602, %v602
        %v623 = vpack.c.bf16 %v609, %v609
        %v624 = vpack.c.bf16 %v616, %v616
        %v633 = vunpack.c.l.b16 %v617
        %v634 = vunpack.c.l.b16 %v618
        %v635 = vunpack.c.l.b16 %v619
        %v636 = vunpack.c.l.b16 %v620
        %v637 = vunpack.c.l.b16 %v621
        %v638 = vunpack.c.l.b16 %v622
        %v639 = vunpack.c.l.b16 %v623
        %v640 = vunpack.c.l.b16 %v624
        %v641 = vpack.c.b16 %v633, %v633
        %v642 = vpack.c.b16 %v634, %v634
        %v643 = vpack.c.b16 %v635, %v635
        %v644 = vpack.c.b16 %v636, %v636
        %v645 = vpack.c.b16 %v637, %v637
        %v646 = vpack.c.b16 %v638, %v638
        %v647 = vpack.c.b16 %v639, %v639
        %v648 = vpack.c.b16 %v640, %v640
        %v649 = vunpack.c.l.b16 %v641
        %v650 = vunpack.c.l.b16 %v642
        %v651 = vunpack.c.l.b16 %v643
        %v652 = vunpack.c.l.b16 %v644
        %v653 = vunpack.c.l.b16 %v645
        %v654 = vunpack.c.l.b16 %v646
        %v655 = vunpack.c.l.b16 %v647
        %v656 = vunpack.c.l.b16 %v648
        %v657 = vsel %vm543, %v650, %v649
        %v658 = vsel %vm545, %v651, %v657
        %v659 = vsel %vm547, %v652, %v658
        %v660 = vsel %vm549, %v653, %v659
        %v661 = vsel %vm551, %v654, %v660
        %v662 = vsel %vm553, %v655, %v661
        %v663 = vsel %vm555, %v656, %v662
        %v664 = vpack.c.b16 %v663, %v663
        %666 = vst.msk [vmem:[%s248] sm:$0xf] %vm559, %v664
        %v667 = vadd.f32 %v275, %v281
        %v668 = vadd.f32 %v667, %v287
        %v669 = vadd.f32 %v668, %v293
        %v670 = vadd.f32 %v669, %v299
        %v671 = vadd.f32 %v670, %v305
        %v672 = vadd.f32 %v671, %v311
        %v673 = vadd.f32 %v672, %v317
        %v674 = vadd.f32 %v278, %v284
        %v675 = vadd.f32 %v674, %v290
        %v676 = vadd.f32 %v675, %v296
        %v677 = vadd.f32 %v676, %v302
        %v678 = vadd.f32 %v677, %v308
        %v679 = vadd.f32 %v678, %v314
        %v680 = vadd.f32 %v679, %v320
        %v681 = vpack.c.bf16 %v680, %v673
        %v683 = vunpack.c.l.b16 %v681
        %v684 = vunpack.c.h.b16 %v681
        %v685 = vpack.c.b16 %v683, %v683
        %v686 = vpack.c.b16 %v684, %v684
        %689 = vst.msk [vmem:[%s257] sm:$0xf] %vm559, %v685
        %690 = vst.msk [vmem:[%s257 + $0x4] sm:$0xf] %vm559, %v686
        %p691 = scmp.lt.s32.totalorder %s22, 1
        %s692 = scalar_select %p691, %s22, 1
        %p693 = scmp.lt.s32.totalorder %s23, 3
        %s694 = scalar_select %p693, %s23, 3
        %s695 = smul.addr %s692, 4
        %s696 = sadd.s32 %s694, %s695
        %s697 = smul.addr %s696, 4
        %s698 = scalar_lea.vmem %s1, %s697
        %p699 = scmp.lt.s32.totalorder %s22, 1
        %s700 = scalar_select %p699, %s22, 1
        %p701 = scmp.lt.s32.totalorder %s23, 3
        %s702 = scalar_select %p701, %s23, 3
        %s703 = smul.addr %s700, 4
        %s704 = sadd.s32 %s702, %s703
        %s705 = smul.addr %s704, 4
        %s706 = scalar_lea.vmem %s2, %s705
        %p707 = scmp.lt.s32.totalorder %s22, 1
        %s708 = scalar_select %p707, %s22, 1
        %p709 = scmp.lt.s32.totalorder %s23, 3
        %s710 = scalar_select %p709, %s23, 3
        %s711 = smul.addr %s710, 2
        %s712 = smul.addr %s708, 8
        %s713 = sadd.s32 %s711, %s712
        %s714 = smul.addr %s713, 4
        %s715 = scalar_lea.vmem %s3, %s714
        // Predicated region
        $region29: #{custom_conv3d_forward.2} parent=23 // pred_check
          %p716 = pneg %p78
        $region30: #{custom_conv3d_forward.2} parent=23 // pred_check_branch
          %718 = sbr.rel (%p716) target = $region32
        $region31: #{custom_conv3d_forward.2} parent=23 // pred_region
          _
        $region32: #{custom_conv3d_forward.2} parent=23 // pred_fallthru
          _
        // Predicated region
        $region33: #{custom_conv3d_forward.2} parent=23 // pred_check
          %p719 = pneg %p106
        $region34: #{custom_conv3d_forward.2} parent=23 // pred_check_branch
          %721 = sbr.rel (%p719) target = $region36
        $region35: #{custom_conv3d_forward.2} parent=23 // pred_region
          _
        $region36: #{custom_conv3d_forward.2} parent=23 // pred_fallthru
          _
        // Predicated region
        $region37: #{custom_conv3d_forward.2} parent=23 // pred_check
          %p722 = pneg %p134
        $region38: #{custom_conv3d_forward.2} parent=23 // pred_check_branch
          %724 = sbr.rel (%p722) target = $region40
        $region39: #{custom_conv3d_forward.2} parent=23 // pred_region
          _
        $region40: #{custom_conv3d_forward.2} parent=23 // pred_fallthru
          _
      $region24: #{custom_conv3d_forward.2} parent=5 // pred_fallthru
        _
      %p725 = scmp.le.s32.totalorder 2, %s13
      // Predicated region
      $region41: #{custom_conv3d_forward.2} parent=5 // pred_check
        %p726 = pneg %p725
      $region42: #{custom_conv3d_forward.2} parent=5 // pred_check_branch
        %728 = sbr.rel (%p726) target = $region44
      $region43: #{custom_conv3d_forward.2} parent=5 // pred_region
        %s729 = ssub.s32 %s13, 2
        // Predicated region
        $region45: #{custom_conv3d_forward.2} parent=43 // pred_check
          %p730 = pneg %p84
        $region46: #{custom_conv3d_forward.2} parent=43 // pred_check_branch
          %732 = sbr.rel (%p730) target = $region48
        $region47: #{custom_conv3d_forward.2} parent=43 // pred_region
          %p733 = scmp.lt.s32.totalorder %s24, 1
          %s734 = scalar_select %p733, %s24, 1
          %p735 = scmp.lt.s32.totalorder %s25, 3
          %s736 = scalar_select %p735, %s25, 3
          %s737 = smul.addr %s734, 4
          %s738 = sadd.s32 %s736, %s737
          %s739 = smul.addr %s738, 4
          %s740 = scalar_lea.vmem %s1, %s739
        $region48: #{custom_conv3d_forward.2} parent=43 // pred_fallthru
          _
        // Predicated region
        $region49: #{custom_conv3d_forward.2} parent=43 // pred_check
          %p741 = pneg %p112
        $region50: #{custom_conv3d_forward.2} parent=43 // pred_check_branch
          %743 = sbr.rel (%p741) target = $region52
        $region51: #{custom_conv3d_forward.2} parent=43 // pred_region
          %p744 = scmp.lt.s32.totalorder %s24, 1
          %s745 = scalar_select %p744, %s24, 1
          %p746 = scmp.lt.s32.totalorder %s25, 3
          %s747 = scalar_select %p746, %s25, 3
          %s748 = smul.addr %s745, 4
          %s749 = sadd.s32 %s747, %s748
          %s750 = smul.addr %s749, 4
          %s751 = scalar_lea.vmem %s2, %s750
        $region52: #{custom_conv3d_forward.2} parent=43 // pred_fallthru
          _
        // Predicated region
        $region53: #{custom_conv3d_forward.2} parent=43 // pred_check
          %p752 = pneg %p140
        $region54: #{custom_conv3d_forward.2} parent=43 // pred_check_branch
          %754 = sbr.rel (%p752) target = $region56
        $region55: #{custom_conv3d_forward.2} parent=43 // pred_region
          %p755 = scmp.lt.s32.totalorder %s24, 1
          %s756 = scalar_select %p755, %s24, 1
          %p757 = scmp.lt.s32.totalorder %s25, 3
          %s758 = scalar_select %p757, %s25, 3
          %s759 = smul.addr %s758, 2
          %s760 = smul.addr %s756, 8
          %s761 = sadd.s32 %s759, %s760
          %s762 = smul.addr %s761, 4
          %s763 = scalar_lea.vmem %s3, %s762
        $region56: #{custom_conv3d_forward.2} parent=43 // pred_fallthru
          _
      $region44: #{custom_conv3d_forward.2} parent=5 // pred_fallthru
        _
    $region6: #{custom_conv3d_forward.2} parent=1 // loop_footer
      %s17 = sadd.s32 1, %s13
    $region7: #{custom_conv3d_forward.2} parent=1 // loop_footer_branch
      %12 = sbr.rel target = $region3
    $region8: #{custom_conv3d_forward.2} parent=1 // loop_exit
      _
    %764 = vsyncpa [#allocation3], 1
    %s765 = scalar_lea.sflag [#allocation3], 1
    %766 = vsyncpa %s765, 1

// kernel: custom_conv3d_forward.3
$region0: #{custom_conv3d_forward.3}
  #allocation0 [shape = 'u32[]', space=smem, size = 0x4, offset = 0x4, fixed_abs, tag = 'smem constant byte address 0x4 - core index']
  #allocation1 [shape = 'u32[144,128]{1,0:T(1,128)}', space=vmem, size = 0x12000, scoped, tag = 'internal scratch']
  %s0 = inlined_call_operand.vmem [shape: bf16[2,4,384], index: 0, kind: input, shape index: {}]
  %s1 = inlined_call_operand.vmem [shape: bf16[2,4,384], index: 1, kind: input, shape index: {}]
  %s2 = inlined_call_operand.vmem [shape: bf16[2,4,512], index: 2, kind: input, shape index: {}]
  %s3 = inlined_call_operand.vmem [shape: bf16[9,8,4], index: 3, kind: input, shape index: {}]
  %s4 = inlined_call_operand.vmem [shape: bf16[9,8,4], index: 4, kind: input, shape index: {}]
  %s5 = inlined_call_operand.vmem [shape: bf16[9,8,4], index: 5, kind: input, shape index: {}]
  %s6 = inlined_call_operand.vmem [shape: f32[2,8,256], index: 6, kind: output, shape index: {0}]
  %s7 = inlined_call_operand.vmem [shape: f32[2,8,256], index: 7, kind: output, shape index: {1}]
  %s8 = inlined_call_operand.vmem [shape: f32[2,8,384], index: 8, kind: output, shape index: {2}]
  %9 = xla_tuple %s6, %s7, %s8
  %s10 = sld [smem:[#allocation0]]
  $region73: #{custom_conv3d_forward.3} parent=0
    _
  %s12 = ssub.s32 1, %s10
  %s13 = scalar_select 0, %s12, %s10
  loop: start=0, step=1, limit=4
  $region2: #{custom_conv3d_forward.3} parent=0 // loop_pre_header
    _
  $region3: #{custom_conv3d_forward.3} parent=0 // loop_header
    %s15 = sphi 0, %s19
    %p16 = scmp.ge.s32.totalorder %s15, 4
    %s25 = sphi 0, %s27
    %s28 = sphi 0, %s25
    %s29 = sphi 0, %s28
    %s45 = sphi 0, %s29
    %s51 = sphi 0, %s53
    %s54 = sphi 0, %s51
    %s55 = sphi 0, %s54
    %s71 = sphi 0, %s55
    %s77 = sphi 0, %s79
    %s80 = sphi 0, %s77
    %s81 = sphi 0, %s80
    %s97 = sphi 0, %s81
    %s101 = sphi 0, %s101
    %s103 = sphi 0, %s101
    %s104 = sphi 0, %s103
    %s118 = sphi 0, %s104
    %s122 = sphi 0, %s122
    %s124 = sphi 0, %s122
    %s125 = sphi 0, %s124
    %s139 = sphi 0, %s125
    %s143 = sphi 0, %s143
    %s145 = sphi 0, %s143
    %s146 = sphi 0, %s145
    %s160 = sphi 0, %s146
    %s166 = sphi 0, %s168
    %s169 = sphi 0, %s166
    %s170 = sphi 0, %s169
    %s186 = sphi 0, %s170
    %s192 = sphi 0, %s194
    %s195 = sphi 0, %s192
    %s196 = sphi 0, %s195
    %s212 = sphi 0, %s196
    %s218 = sphi 0, %s220
    %s221 = sphi 0, %s218
    %s222 = sphi 0, %s221
    %s238 = sphi 0, %s222
  $region4: #{custom_conv3d_forward.3} parent=0 // loop_header_branch
    %18 = sbr.rel (%p16) target = $region8
  $region5: #{custom_conv3d_forward.3} parent=0 // loop_body
    %s20 = ssub.s32 %s15, 1
    %s21 = ssub.s32 %s15, 2
    %s22 = sadd.s32 %s15, 1
    %s23 = ssub.s32 %s15, %s22
    %p24 = scmp.eq.s32.totalorder %s23, 0
    %s26 = sadd.s32 %s25, 1
    %s27 = scalar_select %p24, %s25, %s26
    %p30 = pneg %p24
    %p31 = scmp.eq.s32.totalorder %s15, 1
    %p32 = por %p30, %p31
    %p33 = scmp.ne.s32.totalorder %s25, %s28
    %p34 = scmp.eq.s32.totalorder %s15, 0
    %p35 = por %p33, %p34
    %p36 = scmp.ne.s32.totalorder %s25, %s28
    %p37 = scmp.eq.s32.totalorder %s20, 1
    %p38 = por %p36, %p37
    %p39 = scmp.ne.s32.totalorder %s28, %s29
    %p40 = scmp.eq.s32.totalorder %s20, 0
    %p41 = por %p39, %p40
    %p42 = scmp.ne.s32.totalorder %s28, %s29
    %p43 = scmp.eq.s32.totalorder %s21, 1
    %p44 = por %p42, %p43
    %p46 = scmp.ne.s32.totalorder %s29, %s45
    %p47 = scmp.eq.s32.totalorder %s21, 0
    %p48 = por %p46, %p47
    %s49 = ssub.s32 %s15, %s22
    %p50 = scmp.eq.s32.totalorder %s49, 0
    %s52 = sadd.s32 %s51, 1
    %s53 = scalar_select %p50, %s51, %s52
    %p56 = pneg %p50
    %p57 = scmp.eq.s32.totalorder %s15, 1
    %p58 = por %p56, %p57
    %p59 = scmp.ne.s32.totalorder %s51, %s54
    %p60 = scmp.eq.s32.totalorder %s15, 0
    %p61 = por %p59, %p60
    %p62 = scmp.ne.s32.totalorder %s51, %s54
    %p63 = scmp.eq.s32.totalorder %s20, 1
    %p64 = por %p62, %p63
    %p65 = scmp.ne.s32.totalorder %s54, %s55
    %p66 = scmp.eq.s32.totalorder %s20, 0
    %p67 = por %p65, %p66
    %p68 = scmp.ne.s32.totalorder %s54, %s55
    %p69 = scmp.eq.s32.totalorder %s21, 1
    %p70 = por %p68, %p69
    %p72 = scmp.ne.s32.totalorder %s55, %s71
    %p73 = scmp.eq.s32.totalorder %s21, 0
    %p74 = por %p72, %p73
    %s75 = ssub.s32 %s15, %s22
    %p76 = scmp.eq.s32.totalorder %s75, 0
    %s78 = sadd.s32 %s77, 1
    %s79 = scalar_select %p76, %s77, %s78
    %p82 = pneg %p76
    %p83 = scmp.eq.s32.totalorder %s15, 1
    %p84 = por %p82, %p83
    %p85 = scmp.ne.s32.totalorder %s77, %s80
    %p86 = scmp.eq.s32.totalorder %s15, 0
    %p87 = por %p85, %p86
    %p88 = scmp.ne.s32.totalorder %s77, %s80
    %p89 = scmp.eq.s32.totalorder %s20, 1
    %p90 = por %p88, %p89
    %p91 = scmp.ne.s32.totalorder %s80, %s81
    %p92 = scmp.eq.s32.totalorder %s20, 0
    %p93 = por %p91, %p92
    %p94 = scmp.ne.s32.totalorder %s80, %s81
    %p95 = scmp.eq.s32.totalorder %s21, 1
    %p96 = por %p94, %p95
    %p98 = scmp.ne.s32.totalorder %s81, %s97
    %p99 = scmp.eq.s32.totalorder %s21, 0
    %p100 = por %p98, %p99
    %s102 = sadd.s32 %s101, 1
    %p105 = scmp.eq.s32.totalorder %s15, 1
    %p106 = scmp.ne.s32.totalorder %s101, %s103
    %p107 = scmp.eq.s32.totalorder %s15, 0
    %p108 = por %p106, %p107
    %p109 = scmp.ne.s32.totalorder %s101, %s103
    %p110 = scmp.eq.s32.totalorder %s20, 1
    %p111 = por %p109, %p110
    %p112 = scmp.ne.s32.totalorder %s103, %s104
    %p113 = scmp.eq.s32.totalorder %s20, 0
    %p114 = por %p112, %p113
    %p115 = scmp.ne.s32.totalorder %s103, %s104
    %p116 = scmp.eq.s32.totalorder %s21, 1
    %p117 = por %p115, %p116
    %p119 = scmp.ne.s32.totalorder %s104, %s118
    %p120 = scmp.eq.s32.totalorder %s21, 0
    %p121 = por %p119, %p120
    %s123 = sadd.s32 %s122, 1
    %p126 = scmp.eq.s32.totalorder %s15, 1
    %p127 = scmp.ne.s32.totalorder %s122, %s124
    %p128 = scmp.eq.s32.totalorder %s15, 0
    %p129 = por %p127, %p128
    %p130 = scmp.ne.s32.totalorder %s122, %s124
    %p131 = scmp.eq.s32.totalorder %s20, 1
    %p132 = por %p130, %p131
    %p133 = scmp.ne.s32.totalorder %s124, %s125
    %p134 = scmp.eq.s32.totalorder %s20, 0
    %p135 = por %p133, %p134
    %p136 = scmp.ne.s32.totalorder %s124, %s125
    %p137 = scmp.eq.s32.totalorder %s21, 1
    %p138 = por %p136, %p137
    %p140 = scmp.ne.s32.totalorder %s125, %s139
    %p141 = scmp.eq.s32.totalorder %s21, 0
    %p142 = por %p140, %p141
    %s144 = sadd.s32 %s143, 1
    %p147 = scmp.eq.s32.totalorder %s15, 1
    %p148 = scmp.ne.s32.totalorder %s143, %s145
    %p149 = scmp.eq.s32.totalorder %s15, 0
    %p150 = por %p148, %p149
    %p151 = scmp.ne.s32.totalorder %s143, %s145
    %p152 = scmp.eq.s32.totalorder %s20, 1
    %p153 = por %p151, %p152
    %p154 = scmp.ne.s32.totalorder %s145, %s146
    %p155 = scmp.eq.s32.totalorder %s20, 0
    %p156 = por %p154, %p155
    %p157 = scmp.ne.s32.totalorder %s145, %s146
    %p158 = scmp.eq.s32.totalorder %s21, 1
    %p159 = por %p157, %p158
    %p161 = scmp.ne.s32.totalorder %s146, %s160
    %p162 = scmp.eq.s32.totalorder %s21, 0
    %p163 = por %p161, %p162
    %s164 = ssub.s32 %s15, %s22
    %p165 = scmp.eq.s32.totalorder %s164, 0
    %s167 = sadd.s32 %s166, 1
    %s168 = scalar_select %p165, %s166, %s167
    %p171 = pneg %p165
    %p172 = scmp.eq.s32.totalorder %s15, 1
    %p173 = por %p171, %p172
    %p174 = scmp.ne.s32.totalorder %s166, %s169
    %p175 = scmp.eq.s32.totalorder %s15, 0
    %p176 = por %p174, %p175
    %p177 = scmp.ne.s32.totalorder %s166, %s169
    %p178 = scmp.eq.s32.totalorder %s20, 1
    %p179 = por %p177, %p178
    %p180 = scmp.ne.s32.totalorder %s169, %s170
    %p181 = scmp.eq.s32.totalorder %s20, 0
    %p182 = por %p180, %p181
    %p183 = scmp.ne.s32.totalorder %s169, %s170
    %p184 = scmp.eq.s32.totalorder %s21, 1
    %p185 = por %p183, %p184
    %p187 = scmp.ne.s32.totalorder %s170, %s186
    %p188 = scmp.eq.s32.totalorder %s21, 0
    %p189 = por %p187, %p188
    %s190 = ssub.s32 %s15, %s22
    %p191 = scmp.eq.s32.totalorder %s190, 0
    %s193 = sadd.s32 %s192, 1
    %s194 = scalar_select %p191, %s192, %s193
    %p197 = pneg %p191
    %p198 = scmp.eq.s32.totalorder %s15, 1
    %p199 = por %p197, %p198
    %p200 = scmp.ne.s32.totalorder %s192, %s195
    %p201 = scmp.eq.s32.totalorder %s15, 0
    %p202 = por %p200, %p201
    %p203 = scmp.ne.s32.totalorder %s192, %s195
    %p204 = scmp.eq.s32.totalorder %s20, 1
    %p205 = por %p203, %p204
    %p206 = scmp.ne.s32.totalorder %s195, %s196
    %p207 = scmp.eq.s32.totalorder %s20, 0
    %p208 = por %p206, %p207
    %p209 = scmp.ne.s32.totalorder %s195, %s196
    %p210 = scmp.eq.s32.totalorder %s21, 1
    %p211 = por %p209, %p210
    %p213 = scmp.ne.s32.totalorder %s196, %s212
    %p214 = scmp.eq.s32.totalorder %s21, 0
    %p215 = por %p213, %p214
    %s216 = ssub.s32 %s15, %s22
    %p217 = scmp.eq.s32.totalorder %s216, 0
    %s219 = sadd.s32 %s218, 1
    %s220 = scalar_select %p217, %s218, %s219
    %p223 = pneg %p217
    %p224 = scmp.eq.s32.totalorder %s15, 1
    %p225 = por %p223, %p224
    %p226 = scmp.ne.s32.totalorder %s218, %s221
    %p227 = scmp.eq.s32.totalorder %s15, 0
    %p228 = por %p226, %p227
    %p229 = scmp.ne.s32.totalorder %s218, %s221
    %p230 = scmp.eq.s32.totalorder %s20, 1
    %p231 = por %p229, %p230
    %p232 = scmp.ne.s32.totalorder %s221, %s222
    %p233 = scmp.eq.s32.totalorder %s20, 0
    %p234 = por %p232, %p233
    %p235 = scmp.ne.s32.totalorder %s221, %s222
    %p236 = scmp.eq.s32.totalorder %s21, 1
    %p237 = por %p235, %p236
    %p239 = scmp.ne.s32.totalorder %s222, %s238
    %p240 = scmp.eq.s32.totalorder %s21, 0
    %p241 = por %p239, %p240
    %p242 = scmp.le.s32.totalorder 1, %s15
    %p243 = scmp.lt.s32.totalorder %s15, 3
    %p244 = pnand %p242, %p243
    %p245 = pneg %p244
    // Predicated region
    $region9: #{custom_conv3d_forward.3} parent=5 // pred_check
      _
    $region10: #{custom_conv3d_forward.3} parent=5 // pred_check_branch
      %247 = sbr.rel (%p244) target = $region12
    $region11: #{custom_conv3d_forward.3} parent=5 // pred_region
      %s248 = ssub.s32 %s15, 1
      // Predicated region
      $region13: #{custom_conv3d_forward.3} parent=11 // pred_check
        %p249 = pneg %p114
      $region14: #{custom_conv3d_forward.3} parent=11 // pred_check_branch
        %251 = sbr.rel (%p249) target = $region16
      $region15: #{custom_conv3d_forward.3} parent=11 // pred_region
        _
      $region16: #{custom_conv3d_forward.3} parent=11 // pred_fallthru
        _
      // Predicated region
      $region17: #{custom_conv3d_forward.3} parent=11 // pred_check
        %p252 = pneg %p135
      $region18: #{custom_conv3d_forward.3} parent=11 // pred_check_branch
        %254 = sbr.rel (%p252) target = $region20
      $region19: #{custom_conv3d_forward.3} parent=11 // pred_region
        _
      $region20: #{custom_conv3d_forward.3} parent=11 // pred_fallthru
        _
      // Predicated region
      $region21: #{custom_conv3d_forward.3} parent=11 // pred_check
        %p255 = pneg %p156
      $region22: #{custom_conv3d_forward.3} parent=11 // pred_check_branch
        %257 = sbr.rel (%p255) target = $region24
      $region23: #{custom_conv3d_forward.3} parent=11 // pred_region
        _
      $region24: #{custom_conv3d_forward.3} parent=11 // pred_fallthru
        _
    $region12: #{custom_conv3d_forward.3} parent=5 // pred_fallthru
      _
    %p258 = scmp.lt.s32.totalorder %s15, 2
    // Predicated region
    $region25: #{custom_conv3d_forward.3} parent=5 // pred_check
      %p259 = pneg %p258
    $region26: #{custom_conv3d_forward.3} parent=5 // pred_check_branch
      %261 = sbr.rel (%p259) target = $region28
    $region27: #{custom_conv3d_forward.3} parent=5 // pred_region
      // Predicated region
      $region29: #{custom_conv3d_forward.3} parent=27 // pred_check
        %p262 = pneg %p35
      $region30: #{custom_conv3d_forward.3} parent=27 // pred_check_branch
        %264 = sbr.rel (%p262) target = $region32
      $region31: #{custom_conv3d_forward.3} parent=27 // pred_region
        %p265 = scmp.lt.s32.totalorder %s15, 1
        %s266 = scalar_select %p265, %s15, 1
        %s267 = smul.addr %s266, 3
        %s268 = smul.addr %s267, 2
        %s269 = scalar_lea.vmem %s0, %s268
      $region32: #{custom_conv3d_forward.3} parent=27 // pred_fallthru
        _
      // Predicated region
      $region33: #{custom_conv3d_forward.3} parent=27 // pred_check
        %p270 = pneg %p61
      $region34: #{custom_conv3d_forward.3} parent=27 // pred_check_branch
        %272 = sbr.rel (%p270) target = $region36
      $region35: #{custom_conv3d_forward.3} parent=27 // pred_region
        %p273 = scmp.lt.s32.totalorder %s15, 1
        %s274 = scalar_select %p273, %s15, 1
        %s275 = smul.addr %s274, 3
        %s276 = smul.addr %s275, 2
        %s277 = scalar_lea.vmem %s1, %s276
      $region36: #{custom_conv3d_forward.3} parent=27 // pred_fallthru
        _
      // Predicated region
      $region37: #{custom_conv3d_forward.3} parent=27 // pred_check
        %p278 = pneg %p87
      $region38: #{custom_conv3d_forward.3} parent=27 // pred_check_branch
        %280 = sbr.rel (%p278) target = $region40
      $region39: #{custom_conv3d_forward.3} parent=27 // pred_region
        %p281 = scmp.lt.s32.totalorder %s15, 1
        %s282 = scalar_select %p281, %s15, 1
        %s283 = smul.addr %s282, 4
        %s284 = smul.addr %s283, 2
        %s285 = scalar_lea.vmem %s2, %s284
      $region40: #{custom_conv3d_forward.3} parent=27 // pred_fallthru
        _
    $region28: #{custom_conv3d_forward.3} parent=5 // pred_fallthru
      _
    %p286 = scmp.le.s32.totalorder 1, %s15
    %p287 = scmp.lt.s32.totalorder %s15, 3
    %p288 = pnand %p286, %p287
    %p289 = pneg %p288
    // Predicated region
    $region41: #{custom_conv3d_forward.3} parent=5 // pred_check
      _
    $region42: #{custom_conv3d_forward.3} parent=5 // pred_check_branch
      %291 = sbr.rel (%p288) target = $region44
    $region43: #{custom_conv3d_forward.3} parent=5 // pred_region
      %s292 = ssub.s32 %s15, 1
      %p293 = scmp.lt.s32.totalorder %s20, 1
      %s294 = scalar_select %p293, %s20, 1
      %s295 = smul.addr %s294, 3
      %s296 = smul.addr %s295, 2
      %s297 = scalar_lea.vmem %s0, %s296
      %p298 = pneg %p41
      %p299 = pneg %p38
      %p300 = scmp.lt.s32.totalorder %s20, 1
      %s301 = scalar_select %p300, %s20, 1
      %s302 = smul.addr %s301, 3
      %s303 = smul.addr %s302, 2
      %s304 = scalar_lea.vmem %s1, %s303
      %p305 = pneg %p67
      %p306 = pneg %p64
      %p307 = scmp.lt.s32.totalorder %s20, 1
      %s308 = scalar_select %p307, %s20, 1
      %s309 = smul.addr %s308, 4
      %s310 = smul.addr %s309, 2
      %s311 = scalar_lea.vmem %s2, %s310
      %p312 = pneg %p93
      %p313 = pneg %p90
      %p314 = pneg %p114
      %p315 = pneg %p111
      %p316 = pneg %p135
      %p317 = pneg %p132
      %p318 = pneg %p156
      %p319 = pneg %p153
      %p320 = pneg %p182
      %p321 = pneg %p179
      %p322 = scmp.lt.s32.totalorder %s20, 1
      %s323 = scalar_select %p322, %s20, 1
      %s324 = smul.addr %s323, 2
      %s325 = smul.addr %s324, 8
      %s326 = scalar_lea.vmem %s6, %s325
      %p327 = pneg %p208
      %p328 = pneg %p205
      %p329 = scmp.lt.s32.totalorder %s20, 1
      %s330 = scalar_select %p329, %s20, 1
      %s331 = smul.addr %s330, 2
      %s332 = smul.addr %s331, 8
      %s333 = scalar_lea.vmem %s7, %s332
      %p334 = pneg %p234
      %p335 = pneg %p231
      %p336 = scmp.lt.s32.totalorder %s20, 1
      %s337 = scalar_select %p336, %s20, 1
      %s338 = smul.addr %s337, 3
      %s339 = smul.addr %s338, 8
      %s340 = scalar_lea.vmem %s8, %s339
      %p341 = scmp.lt.s32.totalorder %s20, 1
      %s342 = scalar_select %p341, %s20, 1
      %s343 = smul.addr %s342, 3
      %s344 = smul.addr %s343, 2
      %s345 = scalar_lea.vmem %s0, %s344
      %p346 = scmp.lt.s32.totalorder %s20, 1
      %s347 = scalar_select %p346, %s20, 1
      %s348 = smul.addr %s347, 3
      %s349 = smul.addr %s348, 2
      %s350 = scalar_lea.vmem %s1, %s349
      %p351 = scmp.lt.s32.totalorder %s20, 1
      %s352 = scalar_select %p351, %s20, 1
      %s353 = smul.addr %s352, 4
      %s354 = smul.addr %s353, 2
      %s355 = scalar_lea.vmem %s2, %s354
      %p356 = scmp.lt.s32.totalorder %s20, 1
      %s357 = scalar_select %p356, %s20, 1
      %s358 = smul.addr %s357, 2
      %s359 = smul.addr %s358, 8
      %s360 = scalar_lea.vmem %s6, %s359
      %p361 = scmp.lt.s32.totalorder %s20, 1
      %s362 = scalar_select %p361, %s20, 1
      %s363 = smul.addr %s362, 2
      %s364 = smul.addr %s363, 8
      %s365 = scalar_lea.vmem %s7, %s364
      %p366 = scmp.lt.s32.totalorder %s20, 1
      %s367 = scalar_select %p366, %s20, 1
      %s368 = smul.addr %s367, 3
      %s369 = smul.addr %s368, 8
      %s370 = scalar_lea.vmem %s8, %s369
      %v372 = vld [vmem:[%s345] sm:$0xf]
      %v373 = vld [vmem:[%s3] sm:$0xf]
      %v374 = vld [vmem:[%s345] sm:$0x3f]
      %s375 = scalar_lea.vmem %s3, 4
      %v376 = vld [vmem:[%s375] sm:$0xf]
      %v378 = vcombine.high %v374, %v374
      %v380 = vunpack.c.l.s4 1983009808
      %v381 = vunpack.c.0.s8 %v380
      %v382 = vlaneseq
      %v383 = vshrl.u32 %v382, 7
      %v384 = vsub.s32 %v381, %v383
      %v385 = vrot.slane %v374, %v384
      %v387 = vunpack.c.l.s4 1983009808
      %v388 = vunpack.c.0.s8 %v387
      %v389 = vlaneseq
      %v390 = vshrl.u32 %v389, 7
      %v391 = vsub.s32 %v388, %v390
      %v392 = vrot.slane %v378, %v391
      %v393 = vcombine.high %v385, %v385
      %394 = vrot.lane.b32.xlu0 %v385, 127
      %v395 = vpop.permute.xlu0 %394
      %396 = vrot.lane.b32.xlu0 %v393, 127
      %v397 = vpop.permute.xlu0 %396
      %398 = vrot.lane.b32.xlu0 %v392, 127
      %v399 = vpop.permute.xlu0 %398
      %vm400 = vcmask 1039360
      %v401 = vsel %vm400, %v395, %v397
      %v402 = vsel %vm400, %v397, %v399
      %vm403 = vcmask 31744
      %v405 = vsel %vm403, %v376, 0
      %vm407 = vcmask 1041408
      %v409 = vsel %vm407, %v401, 0
      %v412 = vsel %vm407, %v402, 0
      %414 = vmatprep.subr.bf16.mxu0 %v412
      %415 = vmatpush1.bf16.msra.mxu0 %v409
      %416 = vmatprep.subr.bf16.mxu0 0
      %417 = vmatpush1.bf16.msra.mxu0 0
      %418 = vmatprep.subr.bf16.mxu0 0
      %419 = vmatpush1.bf16.msra.mxu0 0
      %420 = vmatprep.subr.bf16.mxu0 0
      %421 = vmatpush1.bf16.msra.mxu0 0
      %422 = vmatprep.subr.bf16.mxu0 0
      %423 = vmatpush1.bf16.msra.mxu0 0
      %424 = vmatprep.subr.bf16.mxu0 0
      %425 = vmatpush1.bf16.msra.mxu0 0
      %426 = vmatprep.subr.bf16.mxu0 0
      %427 = vmatpush1.bf16.msra.mxu0 0
      %428 = vmatprep.subr.bf16.mxu0 0
      %429 = vmatpush1.bf16.msra.mxu0 0
      %430 = vmatprep.subr.bf16.mxu0 0
      %431 = vmatpush1.bf16.msra.mxu0 0
      %432 = vmatprep.subr.bf16.mxu0 0
      %433 = vmatpush1.bf16.msra.mxu0 0
      %434 = vmatprep.subr.bf16.mxu0 0
      %435 = vmatpush1.bf16.msra.mxu0 0
      %436 = vmatprep.subr.bf16.mxu0 0
      %437 = vmatpush1.bf16.msra.mxu0 0
      %438 = vmatprep.subr.bf16.mxu0 0
      %439 = vmatpush1.bf16.msra.mxu0 0
      %440 = vmatprep.subr.bf16.mxu0 0
      %441 = vmatpush1.bf16.msra.mxu0 0
      %442 = vmatprep.subr.bf16.mxu0 0
      %443 = vmatpush1.bf16.msra.mxu0 0
      %444 = vmatprep.subr.bf16.mxu0 0
      %445 = vmatpush1.bf16.msra.mxu0 0
      %446 = vmatprep.mubr.bf16.mxu0 0
      %447 = vmatmul.mubr.bf16.gmra.mrb[0].mxu0 %v405
      %v448 = vpop.f32.mrb[0].mxu0
      %v449 = vadd.f32 0.0, %v448
      %v450 = vpop.f32.mrb[0].mxu0
      %v451 = vadd.f32 0.0, %v450
      %v452 = vpop.f32.mrb[0].mxu0
      %v453 = vpop.f32.mrb[0].mxu0
      %454 = vdwg.mxu0
      %v457 = vunpack.c.l.s4 1983009808
      %v458 = vunpack.c.0.s8 %v457
      %v459 = vlaneseq
      %v460 = vshrl.u32 %v459, 7
      %v461 = vsub.s32 %v458, %v460
      %v462 = vrot.slane %v372, %v461
      %v463 = vcombine.high %v462, %v462
      %v465 = vsel %vm403, %v373, 0
      %v468 = vsel %vm407, %v462, 0
      %v471 = vsel %vm407, %v463, 0
      %473 = vmatprep.subr.bf16.mxu0 %v471
      %474 = vmatpush1.bf16.msra.mxu0 %v468
      %475 = vmatprep.subr.bf16.mxu0 0
      %476 = vmatpush1.bf16.msra.mxu0 0
      %477 = vmatprep.subr.bf16.mxu0 0
      %478 = vmatpush1.bf16.msra.mxu0 0
      %479 = vmatprep.subr.bf16.mxu0 0
      %480 = vmatpush1.bf16.msra.mxu0 0
      %481 = vmatprep.subr.bf16.mxu0 0
      %482 = vmatpush1.bf16.msra.mxu0 0
      %483 = vmatprep.subr.bf16.mxu0 0
      %484 = vmatpush1.bf16.msra.mxu0 0
      %485 = vmatprep.subr.bf16.mxu0 0
      %486 = vmatpush1.bf16.msra.mxu0 0
      %487 = vmatprep.subr.bf16.mxu0 0
      %488 = vmatpush1.bf16.msra.mxu0 0
      %489 = vmatprep.subr.bf16.mxu0 0
      %490 = vmatpush1.bf16.msra.mxu0 0
      %491 = vmatprep.subr.bf16.mxu0 0
      %492 = vmatpush1.bf16.msra.mxu0 0
      %493 = vmatprep.subr.bf16.mxu0 0
      %494 = vmatpush1.bf16.msra.mxu0 0
      %495 = vmatprep.subr.bf16.mxu0 0
      %496 = vmatpush1.bf16.msra.mxu0 0
      %497 = vmatprep.subr.bf16.mxu0 0
      %498 = vmatpush1.bf16.msra.mxu0 0
      %499 = vmatprep.subr.bf16.mxu0 0
      %500 = vmatpush1.bf16.msra.mxu0 0
      %501 = vmatprep.subr.bf16.mxu0 0
      %502 = vmatpush1.bf16.msra.mxu0 0
      %503 = vmatprep.subr.bf16.mxu0 0
      %504 = vmatpush1.bf16.msra.mxu0 0
      %505 = vmatprep.mubr.bf16.mxu0 0
      %506 = vmatmul.mubr.bf16.gmra.mrb[0].mxu0 %v465
      %v507 = vpop.f32.mrb[0].mxu0
      %v508 = vadd.f32 %v449, %v507
      %v509 = vpop.f32.mrb[0].mxu0
      %v510 = vadd.f32 %v451, %v509
      %v511 = vpop.f32.mrb[0].mxu0
      %v512 = vpop.f32.mrb[0].mxu0
      %513 = vdwg.mxu0
      %v514 = vld [vmem:[%s345] sm:$0x3f]
      %s515 = scalar_lea.vmem %s3, 8
      %v516 = vld [vmem:[%s515] sm:$0xf]
      %v518 = vcombine.high %v514, %v514
      %v520 = vunpack.c.l.s4 1983009808
      %v521 = vunpack.c.0.s8 %v520
      %v522 = vlaneseq
      %v523 = vshrl.u32 %v522, 7
      %v524 = vsub.s32 %v521, %v523
      %v525 = vrot.slane %v514, %v524
      %v527 = vunpack.c.l.s4 1983009808
      %v528 = vunpack.c.0.s8 %v527
      %v529 = vlaneseq
      %v530 = vshrl.u32 %v529, 7
      %v531 = vsub.s32 %v528, %v530
      %v532 = vrot.slane %v518, %v531
      %v533 = vcombine.high %v525, %v525
      %534 = vrot.lane.b32.xlu0 %v525, 126
      %v535 = vpop.permute.xlu0 %534
      %536 = vrot.lane.b32.xlu0 %v533, 126
      %v537 = vpop.permute.xlu0 %536
      %538 = vrot.lane.b32.xlu0 %v532, 126
      %v539 = vpop.permute.xlu0 %538
      %vm540 = vcmask 1031168
      %v541 = vsel %vm540, %v535, %v537
      %v542 = vsel %vm540, %v537, %v539
      %v544 = vsel %vm403, %v516, 0
      %v547 = vsel %vm407, %v541, 0
      %v550 = vsel %vm407, %v542, 0
      %552 = vmatprep.subr.bf16.mxu0 %v550
      %553 = vmatpush1.bf16.msra.mxu0 %v547
      %554 = vmatprep.subr.bf16.mxu0 0
      %555 = vmatpush1.bf16.msra.mxu0 0
      %556 = vmatprep.subr.bf16.mxu0 0
      %557 = vmatpush1.bf16.msra.mxu0 0
      %558 = vmatprep.subr.bf16.mxu0 0
      %559 = vmatpush1.bf16.msra.mxu0 0
      %560 = vmatprep.subr.bf16.mxu0 0
      %561 = vmatpush1.bf16.msra.mxu0 0
      %562 = vmatprep.subr.bf16.mxu0 0
      %563 = vmatpush1.bf16.msra.mxu0 0
      %564 = vmatprep.subr.bf16.mxu0 0
      %565 = vmatpush1.bf16.msra.mxu0 0
      %566 = vmatprep.subr.bf16.mxu0 0
      %567 = vmatpush1.bf16.msra.mxu0 0
      %568 = vmatprep.subr.bf16.mxu0 0
      %569 = vmatpush1.bf16.msra.mxu0 0
      %570 = vmatprep.subr.bf16.mxu0 0
      %571 = vmatpush1.bf16.msra.mxu0 0
      %572 = vmatprep.subr.bf16.mxu0 0
      %573 = vmatpush1.bf16.msra.mxu0 0
      %574 = vmatprep.subr.bf16.mxu0 0
      %575 = vmatpush1.bf16.msra.mxu0 0
      %576 = vmatprep.subr.bf16.mxu0 0
      %577 = vmatpush1.bf16.msra.mxu0 0
      %578 = vmatprep.subr.bf16.mxu0 0
      %579 = vmatpush1.bf16.msra.mxu0 0
      %580 = vmatprep.subr.bf16.mxu0 0
      %581 = vmatpush1.bf16.msra.mxu0 0
      %582 = vmatprep.subr.bf16.mxu0 0
      %583 = vmatpush1.bf16.msra.mxu0 0
      %584 = vmatprep.mubr.bf16.mxu0 0
      %585 = vmatmul.mubr.bf16.gmra.mrb[0].mxu0 %v544
      %v586 = vpop.f32.mrb[0].mxu0
      %v587 = vadd.f32 0.0, %v586
      %v588 = vpop.f32.mrb[0].mxu0
      %v589 = vadd.f32 0.0, %v588
      %v590 = vpop.f32.mrb[0].mxu0
      %v591 = vpop.f32.mrb[0].mxu0
      %592 = vdwg.mxu0
      %v593 = vadd.f32 %v508, %v587
      %v594 = vadd.f32 %v510, %v589
      %v595 = vld [vmem:[%s345] sm:$0x3f]
      %s596 = scalar_lea.vmem %s3, 12
      %v597 = vld [vmem:[%s596] sm:$0xf]
      %v599 = vcombine.high %v595, %v595
      %v601 = vunpack.c.l.s4 1983009808
      %v602 = vunpack.c.0.s8 %v601
      %v603 = vlaneseq
      %v604 = vshrl.u32 %v603, 7
      %v605 = vsub.s32 %v602, %v604
      %v606 = vrot.slane %v595, %v605
      %v608 = vunpack.c.l.s4 1983009808
      %v609 = vunpack.c.0.s8 %v608
      %v610 = vlaneseq
      %v611 = vshrl.u32 %v610, 7
      %v612 = vsub.s32 %v609, %v611
      %v613 = vrot.slane %v599, %v612
      %v614 = vcombine.high %v606, %v606
      %615 = vrot.lane.b32.xlu0 %v606, 110
      %v616 = vpop.permute.xlu0 %615
      %617 = vrot.lane.b32.xlu0 %v614, 110
      %v618 = vpop.permute.xlu0 %617
      %619 = vrot.lane.b32.xlu0 %v613, 110
      %v620 = vpop.permute.xlu0 %619
      %vm621 = vcmask 900096
      %v622 = vsel %vm621, %v616, %v618
      %v623 = vsel %vm621, %v618, %v620
      %v625 = vsel %vm403, %v597, 0
      %v628 = vsel %vm407, %v622, 0
      %v631 = vsel %vm407, %v623, 0
      %633 = vmatprep.subr.bf16.mxu0 %v631
      %634 = vmatpush1.bf16.msra.mxu0 %v628
      %635 = vmatprep.subr.bf16.mxu0 0
      %636 = vmatpush1.bf16.msra.mxu0 0
      %637 = vmatprep.subr.bf16.mxu0 0
      %638 = vmatpush1.bf16.msra.mxu0 0
      %639 = vmatprep.subr.bf16.mxu0 0
      %640 = vmatpush1.bf16.msra.mxu0 0
      %641 = vmatprep.subr.bf16.mxu0 0
      %642 = vmatpush1.bf16.msra.mxu0 0
      %643 = vmatprep.subr.bf16.mxu0 0
      %644 = vmatpush1.bf16.msra.mxu0 0
      %645 = vmatprep.subr.bf16.mxu0 0
      %646 = vmatpush1.bf16.msra.mxu0 0
      %647 = vmatprep.subr.bf16.mxu0 0
      %648 = vmatpush1.bf16.msra.mxu0 0
      %649 = vmatprep.subr.bf16.mxu0 0
      %650 = vmatpush1.bf16.msra.mxu0 0
      %651 = vmatprep.subr.bf16.mxu0 0
      %652 = vmatpush1.bf16.msra.mxu0 0
      %653 = vmatprep.subr.bf16.mxu0 0
      %654 = vmatpush1.bf16.msra.mxu0 0
      %655 = vmatprep.subr.bf16.mxu0 0
      %656 = vmatpush1.bf16.msra.mxu0 0
      %657 = vmatprep.subr.bf16.mxu0 0
      %658 = vmatpush1.bf16.msra.mxu0 0
      %659 = vmatprep.subr.bf16.mxu0 0
      %660 = vmatpush1.bf16.msra.mxu0 0
      %661 = vmatprep.subr.bf16.mxu0 0
      %662 = vmatpush1.bf16.msra.mxu0 0
      %663 = vmatprep.subr.bf16.mxu0 0
      %664 = vmatpush1.bf16.msra.mxu0 0
      %665 = vmatprep.mubr.bf16.mxu0 0
      %666 = vmatmul.mubr.bf16.gmra.mrb[0].mxu0 %v625
      %v667 = vpop.f32.mrb[0].mxu0
      %v668 = vadd.f32 0.0, %v667
      %v669 = vpop.f32.mrb[0].mxu0
      %v670 = vadd.f32 0.0, %v669
      %v671 = vpop.f32.mrb[0].mxu0
      %v672 = vpop.f32.mrb[0].mxu0
      %673 = vdwg.mxu0
      %v674 = vadd.f32 %v593, %v668
      %v675 = vadd.f32 %v594, %v670
      %v676 = vld [vmem:[%s345] sm:$0x3f]
      %s677 = scalar_lea.vmem %s3, 16
      %v678 = vld [vmem:[%s677] sm:$0xf]
      %v680 = vcombine.high %v676, %v676
      %v682 = vunpack.c.l.s4 1983009808
      %v683 = vunpack.c.0.s8 %v682
      %v684 = vlaneseq
      %v685 = vshrl.u32 %v684, 7
      %v686 = vsub.s32 %v683, %v685
      %v687 = vrot.slane %v676, %v686
      %v689 = vunpack.c.l.s4 1983009808
      %v690 = vunpack.c.0.s8 %v689
      %v691 = vlaneseq
      %v692 = vshrl.u32 %v691, 7
      %v693 = vsub.s32 %v690, %v692
      %v694 = vrot.slane %v680, %v693
      %v695 = vcombine.high %v687, %v687
      %696 = vrot.lane.b32.xlu0 %v687, 109
      %v697 = vpop.permute.xlu0 %696
      %698 = vrot.lane.b32.xlu0 %v695, 109
      %v699 = vpop.permute.xlu0 %698
      %700 = vrot.lane.b32.xlu0 %v694, 109
      %v701 = vpop.permute.xlu0 %700
      %vm702 = vcmask 891904
      %v703 = vsel %vm702, %v697, %v699
      %v704 = vsel %vm702, %v699, %v701
      %v706 = vsel %vm403, %v678, 0
      %v709 = vsel %vm407, %v703, 0
      %v712 = vsel %vm407, %v704, 0
      %714 = vmatprep.subr.bf16.mxu0 %v712
      %715 = vmatpush1.bf16.msra.mxu0 %v709
      %716 = vmatprep.subr.bf16.mxu0 0
      %717 = vmatpush1.bf16.msra.mxu0 0
      %718 = vmatprep.subr.bf16.mxu0 0
      %719 = vmatpush1.bf16.msra.mxu0 0
      %720 = vmatprep.subr.bf16.mxu0 0
      %721 = vmatpush1.bf16.msra.mxu0 0
      %722 = vmatprep.subr.bf16.mxu0 0
      %723 = vmatpush1.bf16.msra.mxu0 0
      %724 = vmatprep.subr.bf16.mxu0 0
      %725 = vmatpush1.bf16.msra.mxu0 0
      %726 = vmatprep.subr.bf16.mxu0 0
      %727 = vmatpush1.bf16.msra.mxu0 0
      %728 = vmatprep.subr.bf16.mxu0 0
      %729 = vmatpush1.bf16.msra.mxu0 0
      %730 = vmatprep.subr.bf16.mxu0 0
      %731 = vmatpush1.bf16.msra.mxu0 0
      %732 = vmatprep.subr.bf16.mxu0 0
      %733 = vmatpush1.bf16.msra.mxu0 0
      %734 = vmatprep.subr.bf16.mxu0 0
      %735 = vmatpush1.bf16.msra.mxu0 0
      %736 = vmatprep.subr.bf16.mxu0 0
      %737 = vmatpush1.bf16.msra.mxu0 0
      %738 = vmatprep.subr.bf16.mxu0 0
      %739 = vmatpush1.bf16.msra.mxu0 0
      %740 = vmatprep.subr.bf16.mxu0 0
      %741 = vmatpush1.bf16.msra.mxu0 0
      %742 = vmatprep.subr.bf16.mxu0 0
      %743 = vmatpush1.bf16.msra.mxu0 0
      %744 = vmatprep.subr.bf16.mxu0 0
      %745 = vmatpush1.bf16.msra.mxu0 0
      %746 = vmatprep.mubr.bf16.mxu0 0
      %747 = vmatmul.mubr.bf16.gmra.mrb[0].mxu0 %v706
      %v748 = vpop.f32.mrb[0].mxu0
      %v749 = vadd.f32 0.0, %v748
      %v750 = vpop.f32.mrb[0].mxu0
      %v751 = vadd.f32 0.0, %v750
      %v752 = vpop.f32.mrb[0].mxu0
      %v753 = vpop.f32.mrb[0].mxu0
      %754 = vdwg.mxu0
      %v755 = vadd.f32 %v674, %v749
      %v756 = vadd.f32 %v675, %v751
      %v757 = vld [vmem:[%s345] sm:$0x3f]
      %s758 = scalar_lea.vmem %s3, 20
      %v759 = vld [vmem:[%s758] sm:$0xf]
      %v761 = vcombine.high %v757, %v757
      %v763 = vunpack.c.l.s4 1983009808
      %v764 = vunpack.c.0.s8 %v763
      %v765 = vlaneseq
      %v766 = vshrl.u32 %v765, 7
      %v767 = vsub.s32 %v764, %v766
      %v768 = vrot.slane %v757, %v767
      %v770 = vunpack.c.l.s4 1983009808
      %v771 = vunpack.c.0.s8 %v770
      %v772 = vlaneseq
      %v773 = vshrl.u32 %v772, 7
      %v774 = vsub.s32 %v771, %v773
      %v775 = vrot.slane %v761, %v774
      %v776 = vcombine.high %v768, %v768
      %777 = vrot.lane.b32.xlu0 %v768, 108
      %v778 = vpop.permute.xlu0 %777
      %779 = vrot.lane.b32.xlu0 %v776, 108
      %v780 = vpop.permute.xlu0 %779
      %781 = vrot.lane.b32.xlu0 %v775, 108
      %v782 = vpop.permute.xlu0 %781
      %vm783 = vcmask 883712
      %v784 = vsel %vm783, %v778, %v780
      %v785 = vsel %vm783, %v780, %v782
      %v787 = vsel %vm403, %v759, 0
      %v790 = vsel %vm407, %v784, 0
      %v793 = vsel %vm407, %v785, 0
      %795 = vmatprep.subr.bf16.mxu0 %v793
      %796 = vmatpush1.bf16.msra.mxu0 %v790
      %797 = vmatprep.subr.bf16.mxu0 0
      %798 = vmatpush1.bf16.msra.mxu0 0
      %799 = vmatprep.subr.bf16.mxu0 0
      %800 = vmatpush1.bf16.msra.mxu0 0
      %801 = vmatprep.subr.bf16.mxu0 0
      %802 = vmatpush1.bf16.msra.mxu0 0
      %803 = vmatprep.subr.bf16.mxu0 0
      %804 = vmatpush1.bf16.msra.mxu0 0
      %805 = vmatprep.subr.bf16.mxu0 0
      %806 = vmatpush1.bf16.msra.mxu0 0
      %807 = vmatprep.subr.bf16.mxu0 0
      %808 = vmatpush1.bf16.msra.mxu0 0
      %809 = vmatprep.subr.bf16.mxu0 0
      %810 = vmatpush1.bf16.msra.mxu0 0
      %811 = vmatprep.subr.bf16.mxu0 0
      %812 = vmatpush1.bf16.msra.mxu0 0
      %813 = vmatprep.subr.bf16.mxu0 0
      %814 = vmatpush1.bf16.msra.mxu0 0
      %815 = vmatprep.subr.bf16.mxu0 0
      %816 = vmatpush1.bf16.msra.mxu0 0
      %817 = vmatprep.subr.bf16.mxu0 0
      %818 = vmatpush1.bf16.msra.mxu0 0
      %819 = vmatprep.subr.bf16.mxu0 0
      %820 = vmatpush1.bf16.msra.mxu0 0
      %821 = vmatprep.subr.bf16.mxu0 0
      %822 = vmatpush1.bf16.msra.mxu0 0
      %823 = vmatprep.subr.bf16.mxu0 0
      %824 = vmatpush1.bf16.msra.mxu0 0
      %825 = vmatprep.subr.bf16.mxu0 0
      %826 = vmatpush1.bf16.msra.mxu0 0
      %827 = vmatprep.mubr.bf16.mxu0 0
      %828 = vmatmul.mubr.bf16.gmra.mrb[0].mxu0 %v787
      %v829 = vpop.f32.mrb[0].mxu0
      %v830 = vadd.f32 0.0, %v829
      %v831 = vpop.f32.mrb[0].mxu0
      %v832 = vadd.f32 0.0, %v831
      %v833 = vpop.f32.mrb[0].mxu0
      %v834 = vpop.f32.mrb[0].mxu0
      %835 = vdwg.mxu0
      %v836 = vadd.f32 %v755, %v830
      %v837 = vadd.f32 %v756, %v832
      %v838 = vld [vmem:[%s345] sm:$0x3f]
      %s839 = scalar_lea.vmem %s3, 24
      %v840 = vld [vmem:[%s839] sm:$0xf]
      %v842 = vcombine.high %v838, %v838
      %v844 = vunpack.c.l.s4 1983009808
      %v845 = vunpack.c.0.s8 %v844
      %v846 = vlaneseq
      %v847 = vshrl.u32 %v846, 7
      %v848 = vsub.s32 %v845, %v847
      %v849 = vrot.slane %v838, %v848
      %v851 = vunpack.c.l.s4 1983009808
      %v852 = vunpack.c.0.s8 %v851
      %v853 = vlaneseq
      %v854 = vshrl.u32 %v853, 7
      %v855 = vsub.s32 %v852, %v854
      %v856 = vrot.slane %v842, %v855
      %v857 = vcombine.high %v849, %v849
      %858 = vrot.lane.b32.xlu0 %v849, 92
      %v859 = vpop.permute.xlu0 %858
      %860 = vrot.lane.b32.xlu0 %v857, 92
      %v861 = vpop.permute.xlu0 %860
      %862 = vrot.lane.b32.xlu0 %v856, 92
      %v863 = vpop.permute.xlu0 %862
      %vm864 = vcmask 752640
      %v865 = vsel %vm864, %v859, %v861
      %v866 = vsel %vm864, %v861, %v863
      %v868 = vsel %vm403, %v840, 0
      %v871 = vsel %vm407, %v865, 0
      %v874 = vsel %vm407, %v866, 0
      %876 = vmatprep.subr.bf16.mxu0 %v874
      %877 = vmatpush1.bf16.msra.mxu0 %v871
      %878 = vmatprep.subr.bf16.mxu0 0
      %879 = vmatpush1.bf16.msra.mxu0 0
      %880 = vmatprep.subr.bf16.mxu0 0
      %881 = vmatpush1.bf16.msra.mxu0 0
      %882 = vmatprep.subr.bf16.mxu0 0
      %883 = vmatpush1.bf16.msra.mxu0 0
      %884 = vmatprep.subr.bf16.mxu0 0
      %885 = vmatpush1.bf16.msra.mxu0 0
      %886 = vmatprep.subr.bf16.mxu0 0
      %887 = vmatpush1.bf16.msra.mxu0 0
      %888 = vmatprep.subr.bf16.mxu0 0
      %889 = vmatpush1.bf16.msra.mxu0 0
      %890 = vmatprep.subr.bf16.mxu0 0
      %891 = vmatpush1.bf16.msra.mxu0 0
      %892 = vmatprep.subr.bf16.mxu0 0
      %893 = vmatpush1.bf16.msra.mxu0 0
      %894 = vmatprep.subr.bf16.mxu0 0
      %895 = vmatpush1.bf16.msra.mxu0 0
      %896 = vmatprep.subr.bf16.mxu0 0
      %897 = vmatpush1.bf16.msra.mxu0 0
      %898 = vmatprep.subr.bf16.mxu0 0
      %899 = vmatpush1.bf16.msra.mxu0 0
      %900 = vmatprep.subr.bf16.mxu0 0
      %901 = vmatpush1.bf16.msra.mxu0 0
      %902 = vmatprep.subr.bf16.mxu0 0
      %903 = vmatpush1.bf16.msra.mxu0 0
      %904 = vmatprep.subr.bf16.mxu0 0
      %905 = vmatpush1.bf16.msra.mxu0 0
      %906 = vmatprep.subr.bf16.mxu0 0
      %907 = vmatpush1.bf16.msra.mxu0 0
      %908 = vmatprep.mubr.bf16.mxu0 0
      %909 = vmatmul.mubr.bf16.gmra.mrb[0].mxu0 %v868
      %v910 = vpop.f32.mrb[0].mxu0
      %v911 = vadd.f32 0.0, %v910
      %v912 = vpop.f32.mrb[0].mxu0
      %v913 = vadd.f32 0.0, %v912
      %v914 = vpop.f32.mrb[0].mxu0
      %v915 = vpop.f32.mrb[0].mxu0
      %916 = vdwg.mxu0
      %v917 = vadd.f32 %v836, %v911
      %v918 = vadd.f32 %v837, %v913
      %v919 = vld [vmem:[%s345] sm:$0x3f]
      %s920 = scalar_lea.vmem %s3, 28
      %v921 = vld [vmem:[%s920] sm:$0xf]
      %v923 = vcombine.high %v919, %v919
      %v925 = vunpack.c.l.s4 1983009808
      %v926 = vunpack.c.0.s8 %v925
      %v927 = vlaneseq
      %v928 = vshrl.u32 %v927, 7
      %v929 = vsub.s32 %v926, %v928
      %v930 = vrot.slane %v919, %v929
      %v932 = vunpack.c.l.s4 1983009808
      %v933 = vunpack.c.0.s8 %v932
      %v934 = vlaneseq
      %v935 = vshrl.u32 %v934, 7
      %v936 = vsub.s32 %v933, %v935
      %v937 = vrot.slane %v923, %v936
      %v938 = vcombine.high %v930, %v930
      %939 = vrot.lane.b32.xlu0 %v930, 91
      %v940 = vpop.permute.xlu0 %939
      %941 = vrot.lane.b32.xlu0 %v938, 91
      %v942 = vpop.permute.xlu0 %941
      %943 = vrot.lane.b32.xlu0 %v937, 91
      %v944 = vpop.permute.xlu0 %943
      %vm945 = vcmask 744448
      %v946 = vsel %vm945, %v940, %v942
      %v947 = vsel %vm945, %v942, %v944
      %v949 = vsel %vm403, %v921, 0
      %v952 = vsel %vm407, %v946, 0
      %v955 = vsel %vm407, %v947, 0
      %957 = vmatprep.subr.bf16.mxu0 %v955
      %958 = vmatpush1.bf16.msra.mxu0 %v952
      %959 = vmatprep.subr.bf16.mxu0 0
      %960 = vmatpush1.bf16.msra.mxu0 0
      %961 = vmatprep.subr.bf16.mxu0 0
      %962 = vmatpush1.bf16.msra.mxu0 0
      %963 = vmatprep.subr.bf16.mxu0 0
      %964 = vmatpush1.bf16.msra.mxu0 0
      %965 = vmatprep.subr.bf16.mxu0 0
      %966 = vmatpush1.bf16.msra.mxu0 0
      %967 = vmatprep.subr.bf16.mxu0 0
      %968 = vmatpush1.bf16.msra.mxu0 0
      %969 = vmatprep.subr.bf16.mxu0 0
      %970 = vmatpush1.bf16.msra.mxu0 0
      %971 = vmatprep.subr.bf16.mxu0 0
      %972 = vmatpush1.bf16.msra.mxu0 0
      %973 = vmatprep.subr.bf16.mxu0 0
      %974 = vmatpush1.bf16.msra.mxu0 0
      %975 = vmatprep.subr.bf16.mxu0 0
      %976 = vmatpush1.bf16.msra.mxu0 0
      %977 = vmatprep.subr.bf16.mxu0 0
      %978 = vmatpush1.bf16.msra.mxu0 0
      %979 = vmatprep.subr.bf16.mxu0 0
      %980 = vmatpush1.bf16.msra.mxu0 0
      %981 = vmatprep.subr.bf16.mxu0 0
      %982 = vmatpush1.bf16.msra.mxu0 0
      %983 = vmatprep.subr.bf16.mxu0 0
      %984 = vmatpush1.bf16.msra.mxu0 0
      %985 = vmatprep.subr.bf16.mxu0 0
      %986 = vmatpush1.bf16.msra.mxu0 0
      %987 = vmatprep.subr.bf16.mxu0 0
      %988 = vmatpush1.bf16.msra.mxu0 0
      %989 = vmatprep.mubr.bf16.mxu0 0
      %990 = vmatmul.mubr.bf16.gmra.mrb[0].mxu0 %v949
      %v991 = vpop.f32.mrb[0].mxu0
      %v992 = vadd.f32 0.0, %v991
      %v993 = vpop.f32.mrb[0].mxu0
      %v994 = vadd.f32 0.0, %v993
      %v995 = vpop.f32.mrb[0].mxu0
      %v996 = vpop.f32.mrb[0].mxu0
      %997 = vdwg.mxu0
      %v998 = vadd.f32 %v917, %v992
      %v999 = vadd.f32 %v918, %v994
      %v1000 = vld [vmem:[%s345] sm:$0x3f]
      %s1001 = scalar_lea.vmem %s3, 32
      %v1002 = vld [vmem:[%s1001] sm:$0xf]
      %v1004 = vcombine.high %v1000, %v1000
      %v1006 = vunpack.c.l.s4 1983009808
      %v1007 = vunpack.c.0.s8 %v1006
      %v1008 = vlaneseq
      %v1009 = vshrl.u32 %v1008, 7
      %v1010 = vsub.s32 %v1007, %v1009
      %v1011 = vrot.slane %v1000, %v1010
      %v1013 = vunpack.c.l.s4 1983009808
      %v1014 = vunpack.c.0.s8 %v1013
      %v1015 = vlaneseq
      %v1016 = vshrl.u32 %v1015, 7
      %v1017 = vsub.s32 %v1014, %v1016
      %v1018 = vrot.slane %v1004, %v1017
      %v1019 = vcombine.high %v1011, %v1011
      %1020 = vrot.lane.b32.xlu0 %v1011, 90
      %v1021 = vpop.permute.xlu0 %1020
      %1022 = vrot.lane.b32.xlu0 %v1019, 90
      %v1023 = vpop.permute.xlu0 %1022
      %1024 = vrot.lane.b32.xlu0 %v1018, 90
      %v1025 = vpop.permute.xlu0 %1024
      %vm1026 = vcmask 736256
      %v1027 = vsel %vm1026, %v1021, %v1023
      %v1028 = vsel %vm1026, %v1023, %v1025
      %v1030 = vsel %vm403, %v1002, 0
      %v1033 = vsel %vm407, %v1027, 0
      %v1036 = vsel %vm407, %v1028, 0
      %1038 = vmatprep.subr.bf16.mxu0 %v1036
      %1039 = vmatpush1.bf16.msra.mxu0 %v1033
      %1040 = vmatprep.subr.bf16.mxu0 0
      %1041 = vmatpush1.bf16.msra.mxu0 0
      %1042 = vmatprep.subr.bf16.mxu0 0
      %1043 = vmatpush1.bf16.msra.mxu0 0
      %1044 = vmatprep.subr.bf16.mxu0 0
      %1045 = vmatpush1.bf16.msra.mxu0 0
      %1046 = vmatprep.subr.bf16.mxu0 0
      %1047 = vmatpush1.bf16.msra.mxu0 0
      %1048 = vmatprep.subr.bf16.mxu0 0
      %1049 = vmatpush1.bf16.msra.mxu0 0
      %1050 = vmatprep.subr.bf16.mxu0 0
      %1051 = vmatpush1.bf16.msra.mxu0 0
      %1052 = vmatprep.subr.bf16.mxu0 0
      %1053 = vmatpush1.bf16.msra.mxu0 0
      %1054 = vmatprep.subr.bf16.mxu0 0
      %1055 = vmatpush1.bf16.msra.mxu0 0
      %1056 = vmatprep.subr.bf16.mxu0 0
      %1057 = vmatpush1.bf16.msra.mxu0 0
      %1058 = vmatprep.subr.bf16.mxu0 0
      %1059 = vmatpush1.bf16.msra.mxu0 0
      %1060 = vmatprep.subr.bf16.mxu0 0
      %1061 = vmatpush1.bf16.msra.mxu0 0
      %1062 = vmatprep.subr.bf16.mxu0 0
      %1063 = vmatpush1.bf16.msra.mxu0 0
      %1064 = vmatprep.subr.bf16.mxu0 0
      %1065 = vmatpush1.bf16.msra.mxu0 0
      %1066 = vmatprep.subr.bf16.mxu0 0
      %1067 = vmatpush1.bf16.msra.mxu0 0
      %1068 = vmatprep.subr.bf16.mxu0 0
      %1069 = vmatpush1.bf16.msra.mxu0 0
      %1070 = vmatprep.mubr.bf16.mxu0 0
      %1071 = vmatmul.mubr.bf16.gmra.mrb[0].mxu0 %v1030
      %v1072 = vpop.f32.mrb[0].mxu0
      %v1073 = vadd.f32 0.0, %v1072
      %v1074 = vpop.f32.mrb[0].mxu0
      %v1075 = vadd.f32 0.0, %v1074
      %v1076 = vpop.f32.mrb[0].mxu0
      %v1077 = vpop.f32.mrb[0].mxu0
      %1078 = vdwg.mxu0
      %v1079 = vadd.f32 %v998, %v1073
      %v1080 = vadd.f32 %v999, %v1075
      %1081 = vst [vmem:[%s360] sm:$0xff] %v1079
      %1082 = vst [vmem:[%s360 + $0x8] sm:$0xff] %v1080
      %v1083 = vld [vmem:[%s350] sm:$0xf]
      %v1084 = vld [vmem:[%s4] sm:$0xf]
      %v1085 = vld [vmem:[%s350] sm:$0x3f]
      %s1086 = scalar_lea.vmem %s4, 4
      %v1087 = vld [vmem:[%s1086] sm:$0xf]
      %v1089 = vcombine.high %v1085, %v1085
      %v1091 = vunpack.c.l.s4 1983009808
      %v1092 = vunpack.c.0.s8 %v1091
      %v1093 = vlaneseq
      %v1094 = vshrl.u32 %v1093, 7
      %v1095 = vsub.s32 %v1092, %v1094
      %v1096 = vrot.slane %v1085, %v1095
      %v1098 = vunpack.c.l.s4 1983009808
      %v1099 = vunpack.c.0.s8 %v1098
      %v1100 = vlaneseq
      %v1101 = vshrl.u32 %v1100, 7
      %v1102 = vsub.s32 %v1099, %v1101
      %v1103 = vrot.slane %v1089, %v1102
      %v1104 = vcombine.high %v1096, %v1096
      %1105 = vrot.lane.b32.xlu0 %v1096, 127
      %v1106 = vpop.permute.xlu0 %1105
      %1107 = vrot.lane.b32.xlu0 %v1104, 127
      %v1108 = vpop.permute.xlu0 %1107
      %1109 = vrot.lane.b32.xlu0 %v1103, 127
      %v1110 = vpop.permute.xlu0 %1109
      %v1111 = vsel %vm400, %v1106, %v1108
      %v1112 = vsel %vm400, %v1108, %v1110
      %v1114 = vsel %vm403, %v1087, 0
      %v1117 = vsel %vm407, %v1111, 0
      %v1120 = vsel %vm407, %v1112, 0
      %1122 = vmatprep.subr.bf16.mxu0 %v1120
      %1123 = vmatpush1.bf16.msra.mxu0 %v1117
      %1124 = vmatprep.subr.bf16.mxu0 0
      %1125 = vmatpush1.bf16.msra.mxu0 0
      %1126 = vmatprep.subr.bf16.mxu0 0
      %1127 = vmatpush1.bf16.msra.mxu0 0
      %1128 = vmatprep.subr.bf16.mxu0 0
      %1129 = vmatpush1.bf16.msra.mxu0 0
      %1130 = vmatprep.subr.bf16.mxu0 0
      %1131 = vmatpush1.bf16.msra.mxu0 0
      %1132 = vmatprep.subr.bf16.mxu0 0
      %1133 = vmatpush1.bf16.msra.mxu0 0
      %1134 = vmatprep.subr.bf16.mxu0 0
      %1135 = vmatpush1.bf16.msra.mxu0 0
      %1136 = vmatprep.subr.bf16.mxu0 0
      %1137 = vmatpush1.bf16.msra.mxu0 0
      %1138 = vmatprep.subr.bf16.mxu0 0
      %1139 = vmatpush1.bf16.msra.mxu0 0
      %1140 = vmatprep.subr.bf16.mxu0 0
      %1141 = vmatpush1.bf16.msra.mxu0 0
      %1142 = vmatprep.subr.bf16.mxu0 0
      %1143 = vmatpush1.bf16.msra.mxu0 0
      %1144 = vmatprep.subr.bf16.mxu0 0
      %1145 = vmatpush1.bf16.msra.mxu0 0
      %1146 = vmatprep.subr.bf16.mxu0 0
      %1147 = vmatpush1.bf16.msra.mxu0 0
      %1148 = vmatprep.subr.bf16.mxu0 0
      %1149 = vmatpush1.bf16.msra.mxu0 0
      %1150 = vmatprep.subr.bf16.mxu0 0
      %1151 = vmatpush1.bf16.msra.mxu0 0
      %1152 = vmatprep.subr.bf16.mxu0 0
      %1153 = vmatpush1.bf16.msra.mxu0 0
      %1154 = vmatprep.mubr.bf16.mxu0 0
      %1155 = vmatmul.mubr.bf16.gmra.mrb[0].mxu0 %v1114
      %v1156 = vpop.f32.mrb[0].mxu0
      %v1157 = vadd.f32 0.0, %v1156
      %v1158 = vpop.f32.mrb[0].mxu0
      %v1159 = vadd.f32 0.0, %v1158
      %v1160 = vpop.f32.mrb[0].mxu0
      %v1161 = vpop.f32.mrb[0].mxu0
      %1162 = vdwg.mxu0
      %v1165 = vunpack.c.l.s4 1983009808
      %v1166 = vunpack.c.0.s8 %v1165
      %v1167 = vlaneseq
      %v1168 = vshrl.u32 %v1167, 7
      %v1169 = vsub.s32 %v1166, %v1168
      %v1170 = vrot.slane %v1083, %v1169
      %v1171 = vcombine.high %v1170, %v1170
      %v1173 = vsel %vm403, %v1084, 0
      %v1176 = vsel %vm407, %v1170, 0
      %v1179 = vsel %vm407, %v1171, 0
      %1181 = vmatprep.subr.bf16.mxu0 %v1179
      %1182 = vmatpush1.bf16.msra.mxu0 %v1176
      %1183 = vmatprep.subr.bf16.mxu0 0
      %1184 = vmatpush1.bf16.msra.mxu0 0
      %1185 = vmatprep.subr.bf16.mxu0 0
      %1186 = vmatpush1.bf16.msra.mxu0 0
      %1187 = vmatprep.subr.bf16.mxu0 0
      %1188 = vmatpush1.bf16.msra.mxu0 0
      %1189 = vmatprep.subr.bf16.mxu0 0
      %1190 = vmatpush1.bf16.msra.mxu0 0
      %1191 = vmatprep.subr.bf16.mxu0 0
      %1192 = vmatpush1.bf16.msra.mxu0 0
      %1193 = vmatprep.subr.bf16.mxu0 0
      %1194 = vmatpush1.bf16.msra.mxu0 0
      %1195 = vmatprep.subr.bf16.mxu0 0
      %1196 = vmatpush1.bf16.msra.mxu0 0
      %1197 = vmatprep.subr.bf16.mxu0 0
      %1198 = vmatpush1.bf16.msra.mxu0 0
      %1199 = vmatprep.subr.bf16.mxu0 0
      %1200 = vmatpush1.bf16.msra.mxu0 0
      %1201 = vmatprep.subr.bf16.mxu0 0
      %1202 = vmatpush1.bf16.msra.mxu0 0
      %1203 = vmatprep.subr.bf16.mxu0 0
      %1204 = vmatpush1.bf16.msra.mxu0 0
      %1205 = vmatprep.subr.bf16.mxu0 0
      %1206 = vmatpush1.bf16.msra.mxu0 0
      %1207 = vmatprep.subr.bf16.mxu0 0
      %1208 = vmatpush1.bf16.msra.mxu0 0
      %1209 = vmatprep.subr.bf16.mxu0 0
      %1210 = vmatpush1.bf16.msra.mxu0 0
      %1211 = vmatprep.subr.bf16.mxu0 0
      %1212 = vmatpush1.bf16.msra.mxu0 0
      %1213 = vmatprep.mubr.bf16.mxu0 0
      %1214 = vmatmul.mubr.bf16.gmra.mrb[0].mxu0 %v1173
      %v1215 = vpop.f32.mrb[0].mxu0
      %v1216 = vadd.f32 %v1157, %v1215
      %v1217 = vpop.f32.mrb[0].mxu0
      %v1218 = vadd.f32 %v1159, %v1217
      %v1219 = vpop.f32.mrb[0].mxu0
      %v1220 = vpop.f32.mrb[0].mxu0
      %1221 = vdwg.mxu0
      %v1222 = vld [vmem:[%s350] sm:$0x3f]
      %s1223 = scalar_lea.vmem %s4, 8
      %v1224 = vld [vmem:[%s1223] sm:$0xf]
      %v1226 = vcombine.high %v1222, %v1222
      %v1228 = vunpack.c.l.s4 1983009808
      %v1229 = vunpack.c.0.s8 %v1228
      %v1230 = vlaneseq
      %v1231 = vshrl.u32 %v1230, 7
      %v1232 = vsub.s32 %v1229, %v1231
      %v1233 = vrot.slane %v1222, %v1232
      %v1235 = vunpack.c.l.s4 1983009808
      %v1236 = vunpack.c.0.s8 %v1235
      %v1237 = vlaneseq
      %v1238 = vshrl.u32 %v1237, 7
      %v1239 = vsub.s32 %v1236, %v1238
      %v1240 = vrot.slane %v1226, %v1239
      %v1241 = vcombine.high %v1233, %v1233
      %1242 = vrot.lane.b32.xlu0 %v1233, 126
      %v1243 = vpop.permute.xlu0 %1242
      %1244 = vrot.lane.b32.xlu0 %v1241, 126
      %v1245 = vpop.permute.xlu0 %1244
      %1246 = vrot.lane.b32.xlu0 %v1240, 126
      %v1247 = vpop.permute.xlu0 %1246
      %v1248 = vsel %vm540, %v1243, %v1245
      %v1249 = vsel %vm540, %v1245, %v1247
      %v1251 = vsel %vm403, %v1224, 0
      %v1254 = vsel %vm407, %v1248, 0
      %v1257 = vsel %vm407, %v1249, 0
      %1259 = vmatprep.subr.bf16.mxu0 %v1257
      %1260 = vmatpush1.bf16.msra.mxu0 %v1254
      %1261 = vmatprep.subr.bf16.mxu0 0
      %1262 = vmatpush1.bf16.msra.mxu0 0
      %1263 = vmatprep.subr.bf16.mxu0 0
      %1264 = vmatpush1.bf16.msra.mxu0 0
      %1265 = vmatprep.subr.bf16.mxu0 0
      %1266 = vmatpush1.bf16.msra.mxu0 0
      %1267 = vmatprep.subr.bf16.mxu0 0
      %1268 = vmatpush1.bf16.msra.mxu0 0
      %1269 = vmatprep.subr.bf16.mxu0 0
      %1270 = vmatpush1.bf16.msra.mxu0 0
      %1271 = vmatprep.subr.bf16.mxu0 0
      %1272 = vmatpush1.bf16.msra.mxu0 0
      %1273 = vmatprep.subr.bf16.mxu0 0
      %1274 = vmatpush1.bf16.msra.mxu0 0
      %1275 = vmatprep.subr.bf16.mxu0 0
      %1276 = vmatpush1.bf16.msra.mxu0 0
      %1277 = vmatprep.subr.bf16.mxu0 0
      %1278 = vmatpush1.bf16.msra.mxu0 0
      %1279 = vmatprep.subr.bf16.mxu0 0
      %1280 = vmatpush1.bf16.msra.mxu0 0
      %1281 = vmatprep.subr.bf16.mxu0 0
      %1282 = vmatpush1.bf16.msra.mxu0 0
      %1283 = vmatprep.subr.bf16.mxu0 0
      %1284 = vmatpush1.bf16.msra.mxu0 0
      %1285 = vmatprep.subr.bf16.mxu0 0
      %1286 = vmatpush1.bf16.msra.mxu0 0
      %1287 = vmatprep.subr.bf16.mxu0 0
      %1288 = vmatpush1.bf16.msra.mxu0 0
      %1289 = vmatprep.subr.bf16.mxu0 0
      %1290 = vmatpush1.bf16.msra.mxu0 0
      %1291 = vmatprep.mubr.bf16.mxu0 0
      %1292 = vmatmul.mubr.bf16.gmra.mrb[0].mxu0 %v1251
      %v1293 = vpop.f32.mrb[0].mxu0
      %v1294 = vadd.f32 0.0, %v1293
      %v1295 = vpop.f32.mrb[0].mxu0
      %v1296 = vadd.f32 0.0, %v1295
      %v1297 = vpop.f32.mrb[0].mxu0
      %v1298 = vpop.f32.mrb[0].mxu0
      %1299 = vdwg.mxu0
      %v1300 = vadd.f32 %v1216, %v1294
      %v1301 = vadd.f32 %v1218, %v1296
      %v1302 = vld [vmem:[%s350] sm:$0x3f]
      %s1303 = scalar_lea.vmem %s4, 12
      %v1304 = vld [vmem:[%s1303] sm:$0xf]
      %v1306 = vcombine.high %v1302, %v1302
      %v1308 = vunpack.c.l.s4 1983009808
      %v1309 = vunpack.c.0.s8 %v1308
      %v1310 = vlaneseq
      %v1311 = vshrl.u32 %v1310, 7
      %v1312 = vsub.s32 %v1309, %v1311
      %v1313 = vrot.slane %v1302, %v1312
      %v1315 = vunpack.c.l.s4 1983009808
      %v1316 = vunpack.c.0.s8 %v1315
      %v1317 = vlaneseq
      %v1318 = vshrl.u32 %v1317, 7
      %v1319 = vsub.s32 %v1316, %v1318
      %v1320 = vrot.slane %v1306, %v1319
      %v1321 = vcombine.high %v1313, %v1313
      %1322 = vrot.lane.b32.xlu0 %v1313, 110
      %v1323 = vpop.permute.xlu0 %1322
      %1324 = vrot.lane.b32.xlu0 %v1321, 110
      %v1325 = vpop.permute.xlu0 %1324
      %1326 = vrot.lane.b32.xlu0 %v1320, 110
      %v1327 = vpop.permute.xlu0 %1326
      %v1328 = vsel %vm621, %v1323, %v1325
      %v1329 = vsel %vm621, %v1325, %v1327
      %v1331 = vsel %vm403, %v1304, 0
      %v1334 = vsel %vm407, %v1328, 0
      %v1337 = vsel %vm407, %v1329, 0
      %1339 = vmatprep.subr.bf16.mxu0 %v1337
      %1340 = vmatpush1.bf16.msra.mxu0 %v1334
      %1341 = vmatprep.subr.bf16.mxu0 0
      %1342 = vmatpush1.bf16.msra.mxu0 0
      %1343 = vmatprep.subr.bf16.mxu0 0
      %1344 = vmatpush1.bf16.msra.mxu0 0
      %1345 = vmatprep.subr.bf16.mxu0 0
      %1346 = vmatpush1.bf16.msra.mxu0 0
      %1347 = vmatprep.subr.bf16.mxu0 0
      %1348 = vmatpush1.bf16.msra.mxu0 0
      %1349 = vmatprep.subr.bf16.mxu0 0
      %1350 = vmatpush1.bf16.msra.mxu0 0
      %1351 = vmatprep.subr.bf16.mxu0 0
      %1352 = vmatpush1.bf16.msra.mxu0 0
      %1353 = vmatprep.subr.bf16.mxu0 0
      %1354 = vmatpush1.bf16.msra.mxu0 0
      %1355 = vmatprep.subr.bf16.mxu0 0
      %1356 = vmatpush1.bf16.msra.mxu0 0
      %1357 = vmatprep.subr.bf16.mxu0 0
      %1358 = vmatpush1.bf16.msra.mxu0 0
      %1359 = vmatprep.subr.bf16.mxu0 0
      %1360 = vmatpush1.bf16.msra.mxu0 0
      %1361 = vmatprep.subr.bf16.mxu0 0
      %1362 = vmatpush1.bf16.msra.mxu0 0
      %1363 = vmatprep.subr.bf16.mxu0 0
      %1364 = vmatpush1.bf16.msra.mxu0 0
      %1365 = vmatprep.subr.bf16.mxu0 0
      %1366 = vmatpush1.bf16.msra.mxu0 0
      %1367 = vmatprep.subr.bf16.mxu0 0
      %1368 = vmatpush1.bf16.msra.mxu0 0
      %1369 = vmatprep.subr.bf16.mxu0 0
      %1370 = vmatpush1.bf16.msra.mxu0 0
      %1371 = vmatprep.mubr.bf16.mxu0 0
      %1372 = vmatmul.mubr.bf16.gmra.mrb[0].mxu0 %v1331
      %v1373 = vpop.f32.mrb[0].mxu0
      %v1374 = vadd.f32 0.0, %v1373
      %v1375 = vpop.f32.mrb[0].mxu0
      %v1376 = vadd.f32 0.0, %v1375
      %v1377 = vpop.f32.mrb[0].mxu0
      %v1378 = vpop.f32.mrb[0].mxu0
      %1379 = vdwg.mxu0
      %v1380 = vadd.f32 %v1300, %v1374
      %v1381 = vadd.f32 %v1301, %v1376
      %v1382 = vld [vmem:[%s350] sm:$0x3f]
      %s1383 = scalar_lea.vmem %s4, 16
      %v1384 = vld [vmem:[%s1383] sm:$0xf]
      %v1386 = vcombine.high %v1382, %v1382
      %v1388 = vunpack.c.l.s4 1983009808
      %v1389 = vunpack.c.0.s8 %v1388
      %v1390 = vlaneseq
      %v1391 = vshrl.u32 %v1390, 7
      %v1392 = vsub.s32 %v1389, %v1391
      %v1393 = vrot.slane %v1382, %v1392
      %v1395 = vunpack.c.l.s4 1983009808
      %v1396 = vunpack.c.0.s8 %v1395
      %v1397 = vlaneseq
      %v1398 = vshrl.u32 %v1397, 7
      %v1399 = vsub.s32 %v1396, %v1398
      %v1400 = vrot.slane %v1386, %v1399
      %v1401 = vcombine.high %v1393, %v1393
      %1402 = vrot.lane.b32.xlu0 %v1393, 109
      %v1403 = vpop.permute.xlu0 %1402
      %1404 = vrot.lane.b32.xlu0 %v1401, 109
      %v1405 = vpop.permute.xlu0 %1404
      %1406 = vrot.lane.b32.xlu0 %v1400, 109
      %v1407 = vpop.permute.xlu0 %1406
      %v1408 = vsel %vm702, %v1403, %v1405
      %v1409 = vsel %vm702, %v1405, %v1407
      %v1411 = vsel %vm403, %v1384, 0
      %v1414 = vsel %vm407, %v1408, 0
      %v1417 = vsel %vm407, %v1409, 0
      %1419 = vmatprep.subr.bf16.mxu0 %v1417
      %1420 = vmatpush1.bf16.msra.mxu0 %v1414
      %1421 = vmatprep.subr.bf16.mxu0 0
      %1422 = vmatpush1.bf16.msra.mxu0 0
      %1423 = vmatprep.subr.bf16.mxu0 0
      %1424 = vmatpush1.bf16.msra.mxu0 0
      %1425 = vmatprep.subr.bf16.mxu0 0
      %1426 = vmatpush1.bf16.msra.mxu0 0
      %1427 = vmatprep.subr.bf16.mxu0 0
      %1428 = vmatpush1.bf16.msra.mxu0 0
      %1429 = vmatprep.subr.bf16.mxu0 0
      %1430 = vmatpush1.bf16.msra.mxu0 0
      %1431 = vmatprep.subr.bf16.mxu0 0
      %1432 = vmatpush1.bf16.msra.mxu0 0
      %1433 = vmatprep.subr.bf16.mxu0 0
      %1434 = vmatpush1.bf16.msra.mxu0 0
      %1435 = vmatprep.subr.bf16.mxu0 0
      %1436 = vmatpush1.bf16.msra.mxu0 0
      %1437 = vmatprep.subr.bf16.mxu0 0
      %1438 = vmatpush1.bf16.msra.mxu0 0
      %1439 = vmatprep.subr.bf16.mxu0 0
      %1440 = vmatpush1.bf16.msra.mxu0 0
      %1441 = vmatprep.subr.bf16.mxu0 0
      %1442 = vmatpush1.bf16.msra.mxu0 0
      %1443 = vmatprep.subr.bf16.mxu0 0
      %1444 = vmatpush1.bf16.msra.mxu0 0
      %1445 = vmatprep.subr.bf16.mxu0 0
      %1446 = vmatpush1.bf16.msra.mxu0 0
      %1447 = vmatprep.subr.bf16.mxu0 0
      %1448 = vmatpush1.bf16.msra.mxu0 0
      %1449 = vmatprep.subr.bf16.mxu0 0
      %1450 = vmatpush1.bf16.msra.mxu0 0
      %1451 = vmatprep.mubr.bf16.mxu0 0
      %1452 = vmatmul.mubr.bf16.gmra.mrb[0].mxu0 %v1411
      %v1453 = vpop.f32.mrb[0].mxu0
      %v1454 = vadd.f32 0.0, %v1453
      %v1455 = vpop.f32.mrb[0].mxu0
      %v1456 = vadd.f32 0.0, %v1455
      %v1457 = vpop.f32.mrb[0].mxu0
      %v1458 = vpop.f32.mrb[0].mxu0
      %1459 = vdwg.mxu0
      %v1460 = vadd.f32 %v1380, %v1454
      %v1461 = vadd.f32 %v1381, %v1456
      %v1462 = vld [vmem:[%s350] sm:$0x3f]
      %s1463 = scalar_lea.vmem %s4, 20
      %v1464 = vld [vmem:[%s1463] sm:$0xf]
      %v1466 = vcombine.high %v1462, %v1462
      %v1468 = vunpack.c.l.s4 1983009808
      %v1469 = vunpack.c.0.s8 %v1468
      %v1470 = vlaneseq
      %v1471 = vshrl.u32 %v1470, 7
      %v1472 = vsub.s32 %v1469, %v1471
      %v1473 = vrot.slane %v1462, %v1472
      %v1475 = vunpack.c.l.s4 1983009808
      %v1476 = vunpack.c.0.s8 %v1475
      %v1477 = vlaneseq
      %v1478 = vshrl.u32 %v1477, 7
      %v1479 = vsub.s32 %v1476, %v1478
      %v1480 = vrot.slane %v1466, %v1479
      %v1481 = vcombine.high %v1473, %v1473
      %1482 = vrot.lane.b32.xlu0 %v1473, 108
      %v1483 = vpop.permute.xlu0 %1482
      %1484 = vrot.lane.b32.xlu0 %v1481, 108
      %v1485 = vpop.permute.xlu0 %1484
      %1486 = vrot.lane.b32.xlu0 %v1480, 108
      %v1487 = vpop.permute.xlu0 %1486
      %v1488 = vsel %vm783, %v1483, %v1485
      %v1489 = vsel %vm783, %v1485, %v1487
      %v1491 = vsel %vm403, %v1464, 0
      %v1494 = vsel %vm407, %v1488, 0
      %v1497 = vsel %vm407, %v1489, 0
      %1499 = vmatprep.subr.bf16.mxu0 %v1497
      %1500 = vmatpush1.bf16.msra.mxu0 %v1494
      %1501 = vmatprep.subr.bf16.mxu0 0
      %1502 = vmatpush1.bf16.msra.mxu0 0
      %1503 = vmatprep.subr.bf16.mxu0 0
      %1504 = vmatpush1.bf16.msra.mxu0 0
      %1505 = vmatprep.subr.bf16.mxu0 0
      %1506 = vmatpush1.bf16.msra.mxu0 0
      %1507 = vmatprep.subr.bf16.mxu0 0
      %1508 = vmatpush1.bf16.msra.mxu0 0
      %1509 = vmatprep.subr.bf16.mxu0 0
      %1510 = vmatpush1.bf16.msra.mxu0 0
      %1511 = vmatprep.subr.bf16.mxu0 0
      %1512 = vmatpush1.bf16.msra.mxu0 0
      %1513 = vmatprep.subr.bf16.mxu0 0
      %1514 = vmatpush1.bf16.msra.mxu0 0
      %1515 = vmatprep.subr.bf16.mxu0 0
      %1516 = vmatpush1.bf16.msra.mxu0 0
      %1517 = vmatprep.subr.bf16.mxu0 0
      %1518 = vmatpush1.bf16.msra.mxu0 0
      %1519 = vmatprep.subr.bf16.mxu0 0
      %1520 = vmatpush1.bf16.msra.mxu0 0
      %1521 = vmatprep.subr.bf16.mxu0 0
      %1522 = vmatpush1.bf16.msra.mxu0 0
      %1523 = vmatprep.subr.bf16.mxu0 0
      %1524 = vmatpush1.bf16.msra.mxu0 0
      %1525 = vmatprep.subr.bf16.mxu0 0
      %1526 = vmatpush1.bf16.msra.mxu0 0
      %1527 = vmatprep.subr.bf16.mxu0 0
      %1528 = vmatpush1.bf16.msra.mxu0 0
      %1529 = vmatprep.subr.bf16.mxu0 0
      %1530 = vmatpush1.bf16.msra.mxu0 0
      %1531 = vmatprep.mubr.bf16.mxu0 0
      %1532 = vmatmul.mubr.bf16.gmra.mrb[0].mxu0 %v1491
      %v1533 = vpop.f32.mrb[0].mxu0
      %v1534 = vadd.f32 0.0, %v1533
      %v1535 = vpop.f32.mrb[0].mxu0
      %v1536 = vadd.f32 0.0, %v1535
      %v1537 = vpop.f32.mrb[0].mxu0
      %v1538 = vpop.f32.mrb[0].mxu0
      %1539 = vdwg.mxu0
      %v1540 = vadd.f32 %v1460, %v1534
      %v1541 = vadd.f32 %v1461, %v1536
      %v1542 = vld [vmem:[%s350] sm:$0x3f]
      %s1543 = scalar_lea.vmem %s4, 24
      %v1544 = vld [vmem:[%s1543] sm:$0xf]
      %v1546 = vcombine.high %v1542, %v1542
      %v1548 = vunpack.c.l.s4 1983009808
      %v1549 = vunpack.c.0.s8 %v1548
      %v1550 = vlaneseq
      %v1551 = vshrl.u32 %v1550, 7
      %v1552 = vsub.s32 %v1549, %v1551
      %v1553 = vrot.slane %v1542, %v1552
      %v1555 = vunpack.c.l.s4 1983009808
      %v1556 = vunpack.c.0.s8 %v1555
      %v1557 = vlaneseq
      %v1558 = vshrl.u32 %v1557, 7
      %v1559 = vsub.s32 %v1556, %v1558
      %v1560 = vrot.slane %v1546, %v1559
      %v1561 = vcombine.high %v1553, %v1553
      %1562 = vrot.lane.b32.xlu0 %v1553, 92
      %v1563 = vpop.permute.xlu0 %1562
      %1564 = vrot.lane.b32.xlu0 %v1561, 92
      %v1565 = vpop.permute.xlu0 %1564
      %1566 = vrot.lane.b32.xlu0 %v1560, 92
      %v1567 = vpop.permute.xlu0 %1566
      %v1568 = vsel %vm864, %v1563, %v1565
      %v1569 = vsel %vm864, %v1565, %v1567
      %v1571 = vsel %vm403, %v1544, 0
      %v1574 = vsel %vm407, %v1568, 0
      %v1577 = vsel %vm407, %v1569, 0
      %1579 = vmatprep.subr.bf16.mxu0 %v1577
      %1580 = vmatpush1.bf16.msra.mxu0 %v1574
      %1581 = vmatprep.subr.bf16.mxu0 0
      %1582 = vmatpush1.bf16.msra.mxu0 0
      %1583 = vmatprep.subr.bf16.mxu0 0
      %1584 = vmatpush1.bf16.msra.mxu0 0
      %1585 = vmatprep.subr.bf16.mxu0 0
      %1586 = vmatpush1.bf16.msra.mxu0 0
      %1587 = vmatprep.subr.bf16.mxu0 0
      %1588 = vmatpush1.bf16.msra.mxu0 0
      %1589 = vmatprep.subr.bf16.mxu0 0
      %1590 = vmatpush1.bf16.msra.mxu0 0
      %1591 = vmatprep.subr.bf16.mxu0 0
      %1592 = vmatpush1.bf16.msra.mxu0 0
      %1593 = vmatprep.subr.bf16.mxu0 0
      %1594 = vmatpush1.bf16.msra.mxu0 0
      %1595 = vmatprep.subr.bf16.mxu0 0
      %1596 = vmatpush1.bf16.msra.mxu0 0
      %1597 = vmatprep.subr.bf16.mxu0 0
      %1598 = vmatpush1.bf16.msra.mxu0 0
      %1599 = vmatprep.subr.bf16.mxu0 0
      %1600 = vmatpush1.bf16.msra.mxu0 0
      %1601 = vmatprep.subr.bf16.mxu0 0
      %1602 = vmatpush1.bf16.msra.mxu0 0
      %1603 = vmatprep.subr.bf16.mxu0 0
      %1604 = vmatpush1.bf16.msra.mxu0 0
      %1605 = vmatprep.subr.bf16.mxu0 0
      %1606 = vmatpush1.bf16.msra.mxu0 0
      %1607 = vmatprep.subr.bf16.mxu0 0
      %1608 = vmatpush1.bf16.msra.mxu0 0
      %1609 = vmatprep.subr.bf16.mxu0 0
      %1610 = vmatpush1.bf16.msra.mxu0 0
      %1611 = vmatprep.mubr.bf16.mxu0 0
      %1612 = vmatmul.mubr.bf16.gmra.mrb[0].mxu0 %v1571
      %v1613 = vpop.f32.mrb[0].mxu0
      %v1614 = vadd.f32 0.0, %v1613
      %v1615 = vpop.f32.mrb[0].mxu0
      %v1616 = vadd.f32 0.0, %v1615
      %v1617 = vpop.f32.mrb[0].mxu0
      %v1618 = vpop.f32.mrb[0].mxu0
      %1619 = vdwg.mxu0
      %v1620 = vadd.f32 %v1540, %v1614
      %v1621 = vadd.f32 %v1541, %v1616
      %v1622 = vld [vmem:[%s350] sm:$0x3f]
      %s1623 = scalar_lea.vmem %s4, 28
      %v1624 = vld [vmem:[%s1623] sm:$0xf]
      %v1626 = vcombine.high %v1622, %v1622
      %v1628 = vunpack.c.l.s4 1983009808
      %v1629 = vunpack.c.0.s8 %v1628
      %v1630 = vlaneseq
      %v1631 = vshrl.u32 %v1630, 7
      %v1632 = vsub.s32 %v1629, %v1631
      %v1633 = vrot.slane %v1622, %v1632
      %v1635 = vunpack.c.l.s4 1983009808
      %v1636 = vunpack.c.0.s8 %v1635
      %v1637 = vlaneseq
      %v1638 = vshrl.u32 %v1637, 7
      %v1639 = vsub.s32 %v1636, %v1638
      %v1640 = vrot.slane %v1626, %v1639
      %v1641 = vcombine.high %v1633, %v1633
      %1642 = vrot.lane.b32.xlu0 %v1633, 91
      %v1643 = vpop.permute.xlu0 %1642
      %1644 = vrot.lane.b32.xlu0 %v1641, 91
      %v1645 = vpop.permute.xlu0 %1644
      %1646 = vrot.lane.b32.xlu0 %v1640, 91
      %v1647 = vpop.permute.xlu0 %1646
      %v1648 = vsel %vm945, %v1643, %v1645
      %v1649 = vsel %vm945, %v1645, %v1647
      %v1651 = vsel %vm403, %v1624, 0
      %v1654 = vsel %vm407, %v1648, 0
      %v1657 = vsel %vm407, %v1649, 0
      %1659 = vmatprep.subr.bf16.mxu0 %v1657
      %1660 = vmatpush1.bf16.msra.mxu0 %v1654
      %1661 = vmatprep.subr.bf16.mxu0 0
      %1662 = vmatpush1.bf16.msra.mxu0 0
      %1663 = vmatprep.subr.bf16.mxu0 0
      %1664 = vmatpush1.bf16.msra.mxu0 0
      %1665 = vmatprep.subr.bf16.mxu0 0
      %1666 = vmatpush1.bf16.msra.mxu0 0
      %1667 = vmatprep.subr.bf16.mxu0 0
      %1668 = vmatpush1.bf16.msra.mxu0 0
      %1669 = vmatprep.subr.bf16.mxu0 0
      %1670 = vmatpush1.bf16.msra.mxu0 0
      %1671 = vmatprep.subr.bf16.mxu0 0
      %1672 = vmatpush1.bf16.msra.mxu0 0
      %1673 = vmatprep.subr.bf16.mxu0 0
      %1674 = vmatpush1.bf16.msra.mxu0 0
      %1675 = vmatprep.subr.bf16.mxu0 0
      %1676 = vmatpush1.bf16.msra.mxu0 0
      %1677 = vmatprep.subr.bf16.mxu0 0
      %1678 = vmatpush1.bf16.msra.mxu0 0
      %1679 = vmatprep.subr.bf16.mxu0 0
      %1680 = vmatpush1.bf16.msra.mxu0 0
      %1681 = vmatprep.subr.bf16.mxu0 0
      %1682 = vmatpush1.bf16.msra.mxu0 0
      %1683 = vmatprep.subr.bf16.mxu0 0
      %1684 = vmatpush1.bf16.msra.mxu0 0
      %1685 = vmatprep.subr.bf16.mxu0 0
      %1686 = vmatpush1.bf16.msra.mxu0 0
      %1687 = vmatprep.subr.bf16.mxu0 0
      %1688 = vmatpush1.bf16.msra.mxu0 0
      %1689 = vmatprep.subr.bf16.mxu0 0
      %1690 = vmatpush1.bf16.msra.mxu0 0
      %1691 = vmatprep.mubr.bf16.mxu0 0
      %1692 = vmatmul.mubr.bf16.gmra.mrb[0].mxu0 %v1651
      %v1693 = vpop.f32.mrb[0].mxu0
      %v1694 = vadd.f32 0.0, %v1693
      %v1695 = vpop.f32.mrb[0].mxu0
      %v1696 = vadd.f32 0.0, %v1695
      %v1697 = vpop.f32.mrb[0].mxu0
      %v1698 = vpop.f32.mrb[0].mxu0
      %1699 = vdwg.mxu0
      %v1700 = vadd.f32 %v1620, %v1694
      %v1701 = vadd.f32 %v1621, %v1696
      %v1702 = vld [vmem:[%s350] sm:$0x3f]
      %s1703 = scalar_lea.vmem %s4, 32
      %v1704 = vld [vmem:[%s1703] sm:$0xf]
      %v1706 = vcombine.high %v1702, %v1702
      %v1708 = vunpack.c.l.s4 1983009808
      %v1709 = vunpack.c.0.s8 %v1708
      %v1710 = vlaneseq
      %v1711 = vshrl.u32 %v1710, 7
      %v1712 = vsub.s32 %v1709, %v1711
      %v1713 = vrot.slane %v1702, %v1712
      %v1715 = vunpack.c.l.s4 1983009808
      %v1716 = vunpack.c.0.s8 %v1715
      %v1717 = vlaneseq
      %v1718 = vshrl.u32 %v1717, 7
      %v1719 = vsub.s32 %v1716, %v1718
      %v1720 = vrot.slane %v1706, %v1719
      %v1721 = vcombine.high %v1713, %v1713
      %1722 = vrot.lane.b32.xlu0 %v1713, 90
      %v1723 = vpop.permute.xlu0 %1722
      %1724 = vrot.lane.b32.xlu0 %v1721, 90
      %v1725 = vpop.permute.xlu0 %1724
      %1726 = vrot.lane.b32.xlu0 %v1720, 90
      %v1727 = vpop.permute.xlu0 %1726
      %v1728 = vsel %vm1026, %v1723, %v1725
      %v1729 = vsel %vm1026, %v1725, %v1727
      %v1731 = vsel %vm403, %v1704, 0
      %v1734 = vsel %vm407, %v1728, 0
      %v1737 = vsel %vm407, %v1729, 0
      %1739 = vmatprep.subr.bf16.mxu0 %v1737
      %1740 = vmatpush1.bf16.msra.mxu0 %v1734
      %1741 = vmatprep.subr.bf16.mxu0 0
      %1742 = vmatpush1.bf16.msra.mxu0 0
      %1743 = vmatprep.subr.bf16.mxu0 0
      %1744 = vmatpush1.bf16.msra.mxu0 0
      %1745 = vmatprep.subr.bf16.mxu0 0
      %1746 = vmatpush1.bf16.msra.mxu0 0
      %1747 = vmatprep.subr.bf16.mxu0 0
      %1748 = vmatpush1.bf16.msra.mxu0 0
      %1749 = vmatprep.subr.bf16.mxu0 0
      %1750 = vmatpush1.bf16.msra.mxu0 0
      %1751 = vmatprep.subr.bf16.mxu0 0
      %1752 = vmatpush1.bf16.msra.mxu0 0
      %1753 = vmatprep.subr.bf16.mxu0 0
      %1754 = vmatpush1.bf16.msra.mxu0 0
      %1755 = vmatprep.subr.bf16.mxu0 0
      %1756 = vmatpush1.bf16.msra.mxu0 0
      %1757 = vmatprep.subr.bf16.mxu0 0
      %1758 = vmatpush1.bf16.msra.mxu0 0
      %1759 = vmatprep.subr.bf16.mxu0 0
      %1760 = vmatpush1.bf16.msra.mxu0 0
      %1761 = vmatprep.subr.bf16.mxu0 0
      %1762 = vmatpush1.bf16.msra.mxu0 0
      %1763 = vmatprep.subr.bf16.mxu0 0
      %1764 = vmatpush1.bf16.msra.mxu0 0
      %1765 = vmatprep.subr.bf16.mxu0 0
      %1766 = vmatpush1.bf16.msra.mxu0 0
      %1767 = vmatprep.subr.bf16.mxu0 0
      %1768 = vmatpush1.bf16.msra.mxu0 0
      %1769 = vmatprep.subr.bf16.mxu0 0
      %1770 = vmatpush1.bf16.msra.mxu0 0
      %1771 = vmatprep.mubr.bf16.mxu0 0
      %1772 = vmatmul.mubr.bf16.gmra.mrb[0].mxu0 %v1731
      %v1773 = vpop.f32.mrb[0].mxu0
      %v1774 = vadd.f32 0.0, %v1773
      %v1775 = vpop.f32.mrb[0].mxu0
      %v1776 = vadd.f32 0.0, %v1775
      %v1777 = vpop.f32.mrb[0].mxu0
      %v1778 = vpop.f32.mrb[0].mxu0
      %1779 = vdwg.mxu0
      %v1780 = vadd.f32 %v1700, %v1774
      %v1781 = vadd.f32 %v1701, %v1776
      %1782 = vst [vmem:[%s365] sm:$0xff] %v1780
      %1783 = vst [vmem:[%s365 + $0x8] sm:$0xff] %v1781
      %v1784 = vld [vmem:[%s355] sm:$0x3f]
      %v1785 = vld [vmem:[%s5] sm:$0xf]
      %v1786 = vld [vmem:[%s355] sm:$0xff]
      %s1787 = scalar_lea.vmem %s5, 4
      %v1788 = vld [vmem:[%s1787] sm:$0xf]
      %v1790 = vcombine.high %v1786, %v1786
      %v1792 = vunpack.c.l.s4 1983009808
      %v1793 = vunpack.c.0.s8 %v1792
      %v1794 = vlaneseq
      %v1795 = vshrl.u32 %v1794, 7
      %v1796 = vsub.s32 %v1793, %v1795
      %v1797 = vrot.slane %v1786, %v1796
      %v1799 = vunpack.c.l.s4 1983009808
      %v1800 = vunpack.c.0.s8 %v1799
      %v1801 = vlaneseq
      %v1802 = vshrl.u32 %v1801, 7
      %v1803 = vsub.s32 %v1800, %v1802
      %v1804 = vrot.slane %v1790, %v1803
      %v1805 = vcombine.high %v1797, %v1797
      %v1806 = vcombine.high %v1804, %v1804
      %1807 = vrot.lane.b32.xlu0 %v1797, 127
      %v1808 = vpop.permute.xlu0 %1807
      %1809 = vrot.lane.b32.xlu0 %v1805, 127
      %v1810 = vpop.permute.xlu0 %1809
      %1811 = vrot.lane.b32.xlu0 %v1804, 127
      %v1812 = vpop.permute.xlu0 %1811
      %1813 = vrot.lane.b32.xlu0 %v1806, 127
      %v1814 = vpop.permute.xlu0 %1813
      %v1815 = vsel %vm400, %v1808, %v1810
      %v1816 = vsel %vm400, %v1810, %v1812
      %v1817 = vsel %vm400, %v1812, %v1814
      %v1819 = vsel %vm403, %v1788, 0
      %v1822 = vsel %vm407, %v1815, 0
      %v1825 = vsel %vm407, %v1816, 0
      %v1828 = vsel %vm407, %v1817, 0
      %1830 = vmatprep.subr.bf16.mxu0 %v1825
      %1831 = vmatpush1.bf16.msra.mxu0 %v1822
      %1832 = vmatprep.subr.bf16.mxu0 0
      %1833 = vmatpush1.bf16.msra.mxu0 0
      %1834 = vmatprep.subr.bf16.mxu0 0
      %1835 = vmatpush1.bf16.msra.mxu0 0
      %1836 = vmatprep.subr.bf16.mxu0 0
      %1837 = vmatpush1.bf16.msra.mxu0 0
      %1838 = vmatprep.subr.bf16.mxu0 0
      %1839 = vmatpush1.bf16.msra.mxu0 0
      %1840 = vmatprep.subr.bf16.mxu0 0
      %1841 = vmatpush1.bf16.msra.mxu0 0
      %1842 = vmatprep.subr.bf16.mxu0 0
      %1843 = vmatpush1.bf16.msra.mxu0 0
      %1844 = vmatprep.subr.bf16.mxu0 0
      %1845 = vmatpush1.bf16.msra.mxu0 0
      %1846 = vmatprep.subr.bf16.mxu0 0
      %1847 = vmatpush1.bf16.msra.mxu0 0
      %1848 = vmatprep.subr.bf16.mxu0 0
      %1849 = vmatpush1.bf16.msra.mxu0 0
      %1850 = vmatprep.subr.bf16.mxu0 0
      %1851 = vmatpush1.bf16.msra.mxu0 0
      %1852 = vmatprep.subr.bf16.mxu0 0
      %1853 = vmatpush1.bf16.msra.mxu0 0
      %1854 = vmatprep.subr.bf16.mxu0 0
      %1855 = vmatpush1.bf16.msra.mxu0 0
      %1856 = vmatprep.subr.bf16.mxu0 0
      %1857 = vmatpush1.bf16.msra.mxu0 0
      %1858 = vmatprep.subr.bf16.mxu0 0
      %1859 = vmatpush1.bf16.msra.mxu0 0
      %1860 = vmatprep.subr.bf16.mxu0 0
      %1861 = vmatpush1.bf16.msra.mxu0 0
      %1862 = vmatprep.mubr.bf16.mxu0 0
      %1863 = vmatmul.mubr.bf16.gmra.mrb[0].mxu0 %v1819
      %v1864 = vpop.f32.mrb[0].mxu0
      %v1865 = vadd.f32 0.0, %v1864
      %v1866 = vpop.f32.mrb[0].mxu0
      %v1867 = vadd.f32 0.0, %v1866
      %v1868 = vpop.f32.mrb[0].mxu0
      %v1869 = vpop.f32.mrb[0].mxu0
      %1870 = vdwg.mxu0
      %1871 = vmatprep.subr.bf16.mxu0 0
      %1872 = vmatpush1.bf16.msra.mxu0 %v1828
      %1873 = vmatprep.subr.bf16.mxu0 0
      %1874 = vmatpush1.bf16.msra.mxu0 0
      %1875 = vmatprep.subr.bf16.mxu0 0
      %1876 = vmatpush1.bf16.msra.mxu0 0
      %1877 = vmatprep.subr.bf16.mxu0 0
      %1878 = vmatpush1.bf16.msra.mxu0 0
      %1879 = vmatprep.subr.bf16.mxu0 0
      %1880 = vmatpush1.bf16.msra.mxu0 0
      %1881 = vmatprep.subr.bf16.mxu0 0
      %1882 = vmatpush1.bf16.msra.mxu0 0
      %1883 = vmatprep.subr.bf16.mxu0 0
      %1884 = vmatpush1.bf16.msra.mxu0 0
      %1885 = vmatprep.subr.bf16.mxu0 0
      %1886 = vmatpush1.bf16.msra.mxu0 0
      %1887 = vmatprep.subr.bf16.mxu0 0
      %1888 = vmatpush1.bf16.msra.mxu0 0
      %1889 = vmatprep.subr.bf16.mxu0 0
      %1890 = vmatpush1.bf16.msra.mxu0 0
      %1891 = vmatprep.subr.bf16.mxu0 0
      %1892 = vmatpush1.bf16.msra.mxu0 0
      %1893 = vmatprep.subr.bf16.mxu0 0
      %1894 = vmatpush1.bf16.msra.mxu0 0
      %1895 = vmatprep.subr.bf16.mxu0 0
      %1896 = vmatpush1.bf16.msra.mxu0 0
      %1897 = vmatprep.subr.bf16.mxu0 0
      %1898 = vmatpush1.bf16.msra.mxu0 0
      %1899 = vmatprep.subr.bf16.mxu0 0
      %1900 = vmatpush1.bf16.msra.mxu0 0
      %1901 = vmatprep.subr.bf16.mxu0 0
      %1902 = vmatpush1.bf16.msra.mxu0 0
      %1903 = vmatprep.mubr.bf16.mxu0 0
      %1904 = vmatmul.mubr.bf16.gmra.mrb[0].mxu0 %v1819
      %v1905 = vpop.f32.mrb[0].mxu0
      %v1906 = vadd.f32 0.0, %v1905
      %v1907 = vpop.f32.mrb[0].mxu0
      %v1908 = vpop.f32.mrb[0].mxu0
      %v1909 = vpop.f32.mrb[0].mxu0
      %1910 = vdwg.mxu0
      %v1912 = vcombine.high %v1784, %v1784
      %v1914 = vunpack.c.l.s4 1983009808
      %v1915 = vunpack.c.0.s8 %v1914
      %v1916 = vlaneseq
      %v1917 = vshrl.u32 %v1916, 7
      %v1918 = vsub.s32 %v1915, %v1917
      %v1919 = vrot.slane %v1784, %v1918
      %v1921 = vunpack.c.l.s4 1983009808
      %v1922 = vunpack.c.0.s8 %v1921
      %v1923 = vlaneseq
      %v1924 = vshrl.u32 %v1923, 7
      %v1925 = vsub.s32 %v1922, %v1924
      %v1926 = vrot.slane %v1912, %v1925
      %v1927 = vcombine.high %v1919, %v1919
      %v1929 = vsel %vm403, %v1785, 0
      %v1932 = vsel %vm407, %v1919, 0
      %v1935 = vsel %vm407, %v1927, 0
      %v1938 = vsel %vm407, %v1926, 0
      %1940 = vmatprep.subr.bf16.mxu0 %v1935
      %1941 = vmatpush1.bf16.msra.mxu0 %v1932
      %1942 = vmatprep.subr.bf16.mxu0 0
      %1943 = vmatpush1.bf16.msra.mxu0 0
      %1944 = vmatprep.subr.bf16.mxu0 0
      %1945 = vmatpush1.bf16.msra.mxu0 0
      %1946 = vmatprep.subr.bf16.mxu0 0
      %1947 = vmatpush1.bf16.msra.mxu0 0
      %1948 = vmatprep.subr.bf16.mxu0 0
      %1949 = vmatpush1.bf16.msra.mxu0 0
      %1950 = vmatprep.subr.bf16.mxu0 0
      %1951 = vmatpush1.bf16.msra.mxu0 0
      %1952 = vmatprep.subr.bf16.mxu0 0
      %1953 = vmatpush1.bf16.msra.mxu0 0
      %1954 = vmatprep.subr.bf16.mxu0 0
      %1955 = vmatpush1.bf16.msra.mxu0 0
      %1956 = vmatprep.subr.bf16.mxu0 0
      %1957 = vmatpush1.bf16.msra.mxu0 0
      %1958 = vmatprep.subr.bf16.mxu0 0
      %1959 = vmatpush1.bf16.msra.mxu0 0
      %1960 = vmatprep.subr.bf16.mxu0 0
      %1961 = vmatpush1.bf16.msra.mxu0 0
      %1962 = vmatprep.subr.bf16.mxu0 0
      %1963 = vmatpush1.bf16.msra.mxu0 0
      %1964 = vmatprep.subr.bf16.mxu0 0
      %1965 = vmatpush1.bf16.msra.mxu0 0
      %1966 = vmatprep.subr.bf16.mxu0 0
      %1967 = vmatpush1.bf16.msra.mxu0 0
      %1968 = vmatprep.subr.bf16.mxu0 0
      %1969 = vmatpush1.bf16.msra.mxu0 0
      %1970 = vmatprep.subr.bf16.mxu0 0
      %1971 = vmatpush1.bf16.msra.mxu0 0
      %1972 = vmatprep.mubr.bf16.mxu0 0
      %1973 = vmatmul.mubr.bf16.gmra.mrb[0].mxu0 %v1929
      %v1974 = vpop.f32.mrb[0].mxu0
      %v1975 = vadd.f32 %v1865, %v1974
      %v1976 = vpop.f32.mrb[0].mxu0
      %v1977 = vadd.f32 %v1867, %v1976
      %v1978 = vpop.f32.mrb[0].mxu0
      %v1979 = vpop.f32.mrb[0].mxu0
      %1980 = vdwg.mxu0
      %1981 = vmatprep.subr.bf16.mxu0 0
      %1982 = vmatpush1.bf16.msra.mxu0 %v1938
      %1983 = vmatprep.subr.bf16.mxu0 0
      %1984 = vmatpush1.bf16.msra.mxu0 0
      %1985 = vmatprep.subr.bf16.mxu0 0
      %1986 = vmatpush1.bf16.msra.mxu0 0
      %1987 = vmatprep.subr.bf16.mxu0 0
      %1988 = vmatpush1.bf16.msra.mxu0 0
      %1989 = vmatprep.subr.bf16.mxu0 0
      %1990 = vmatpush1.bf16.msra.mxu0 0
      %1991 = vmatprep.subr.bf16.mxu0 0
      %1992 = vmatpush1.bf16.msra.mxu0 0
      %1993 = vmatprep.subr.bf16.mxu0 0
      %1994 = vmatpush1.bf16.msra.mxu0 0
      %1995 = vmatprep.subr.bf16.mxu0 0
      %1996 = vmatpush1.bf16.msra.mxu0 0
      %1997 = vmatprep.subr.bf16.mxu0 0
      %1998 = vmatpush1.bf16.msra.mxu0 0
      %1999 = vmatprep.subr.bf16.mxu0 0
      %2000 = vmatpush1.bf16.msra.mxu0 0
      %2001 = vmatprep.subr.bf16.mxu0 0
      %2002 = vmatpush1.bf16.msra.mxu0 0
      %2003 = vmatprep.subr.bf16.mxu0 0
      %2004 = vmatpush1.bf16.msra.mxu0 0
      %2005 = vmatprep.subr.bf16.mxu0 0
      %2006 = vmatpush1.bf16.msra.mxu0 0
      %2007 = vmatprep.subr.bf16.mxu0 0
      %2008 = vmatpush1.bf16.msra.mxu0 0
      %2009 = vmatprep.subr.bf16.mxu0 0
      %2010 = vmatpush1.bf16.msra.mxu0 0
      %2011 = vmatprep.subr.bf16.mxu0 0
      %2012 = vmatpush1.bf16.msra.mxu0 0
      %2013 = vmatprep.mubr.bf16.mxu0 0
      %2014 = vmatmul.mubr.bf16.gmra.mrb[0].mxu0 %v1929
      %v2015 = vpop.f32.mrb[0].mxu0
      %v2016 = vadd.f32 %v1906, %v2015
      %v2017 = vpop.f32.mrb[0].mxu0
      %v2018 = vpop.f32.mrb[0].mxu0
      %v2019 = vpop.f32.mrb[0].mxu0
      %2020 = vdwg.mxu0
      %v2021 = vld [vmem:[%s355] sm:$0xff]
      %s2022 = scalar_lea.vmem %s5, 8
      %v2023 = vld [vmem:[%s2022] sm:$0xf]
      %v2025 = vcombine.high %v2021, %v2021
      %v2027 = vunpack.c.l.s4 1983009808
      %v2028 = vunpack.c.0.s8 %v2027
      %v2029 = vlaneseq
      %v2030 = vshrl.u32 %v2029, 7
      %v2031 = vsub.s32 %v2028, %v2030
      %v2032 = vrot.slane %v2021, %v2031
      %v2034 = vunpack.c.l.s4 1983009808
      %v2035 = vunpack.c.0.s8 %v2034
      %v2036 = vlaneseq
      %v2037 = vshrl.u32 %v2036, 7
      %v2038 = vsub.s32 %v2035, %v2037
      %v2039 = vrot.slane %v2025, %v2038
      %v2040 = vcombine.high %v2032, %v2032
      %v2041 = vcombine.high %v2039, %v2039
      %2042 = vrot.lane.b32.xlu0 %v2032, 126
      %v2043 = vpop.permute.xlu0 %2042
      %2044 = vrot.lane.b32.xlu0 %v2040, 126
      %v2045 = vpop.permute.xlu0 %2044
      %2046 = vrot.lane.b32.xlu0 %v2039, 126
      %v2047 = vpop.permute.xlu0 %2046
      %2048 = vrot.lane.b32.xlu0 %v2041, 126
      %v2049 = vpop.permute.xlu0 %2048
      %v2050 = vsel %vm540, %v2043, %v2045
      %v2051 = vsel %vm540, %v2045, %v2047
      %v2052 = vsel %vm540, %v2047, %v2049
      %v2054 = vsel %vm403, %v2023, 0
      %v2057 = vsel %vm407, %v2050, 0
      %v2060 = vsel %vm407, %v2051, 0
      %v2063 = vsel %vm407, %v2052, 0
      %2065 = vmatprep.subr.bf16.mxu0 %v2060
      %2066 = vmatpush1.bf16.msra.mxu0 %v2057
      %2067 = vmatprep.subr.bf16.mxu0 0
      %2068 = vmatpush1.bf16.msra.mxu0 0
      %2069 = vmatprep.subr.bf16.mxu0 0
      %2070 = vmatpush1.bf16.msra.mxu0 0
      %2071 = vmatprep.subr.bf16.mxu0 0
      %2072 = vmatpush1.bf16.msra.mxu0 0
      %2073 = vmatprep.subr.bf16.mxu0 0
      %2074 = vmatpush1.bf16.msra.mxu0 0
      %2075 = vmatprep.subr.bf16.mxu0 0
      %2076 = vmatpush1.bf16.msra.mxu0 0
      %2077 = vmatprep.subr.bf16.mxu0 0
      %2078 = vmatpush1.bf16.msra.mxu0 0
      %2079 = vmatprep.subr.bf16.mxu0 0
      %2080 = vmatpush1.bf16.msra.mxu0 0
      %2081 = vmatprep.subr.bf16.mxu0 0
      %2082 = vmatpush1.bf16.msra.mxu0 0
      %2083 = vmatprep.subr.bf16.mxu0 0
      %2084 = vmatpush1.bf16.msra.mxu0 0
      %2085 = vmatprep.subr.bf16.mxu0 0
      %2086 = vmatpush1.bf16.msra.mxu0 0
      %2087 = vmatprep.subr.bf16.mxu0 0
      %2088 = vmatpush1.bf16.msra.mxu0 0
      %2089 = vmatprep.subr.bf16.mxu0 0
      %2090 = vmatpush1.bf16.msra.mxu0 0
      %2091 = vmatprep.subr.bf16.mxu0 0
      %2092 = vmatpush1.bf16.msra.mxu0 0
      %2093 = vmatprep.subr.bf16.mxu0 0
      %2094 = vmatpush1.bf16.msra.mxu0 0
      %2095 = vmatprep.subr.bf16.mxu0 0
      %2096 = vmatpush1.bf16.msra.mxu0 0
      %2097 = vmatprep.mubr.bf16.mxu0 0
      %2098 = vmatmul.mubr.bf16.gmra.mrb[0].mxu0 %v2054
      %v2099 = vpop.f32.mrb[0].mxu0
      %v2100 = vadd.f32 0.0, %v2099
      %v2101 = vpop.f32.mrb[0].mxu0
      %v2102 = vadd.f32 0.0, %v2101
      %v2103 = vpop.f32.mrb[0].mxu0
      %v2104 = vpop.f32.mrb[0].mxu0
      %2105 = vdwg.mxu0
      %2106 = vmatprep.subr.bf16.mxu0 0
      %2107 = vmatpush1.bf16.msra.mxu0 %v2063
      %2108 = vmatprep.subr.bf16.mxu0 0
      %2109 = vmatpush1.bf16.msra.mxu0 0
      %2110 = vmatprep.subr.bf16.mxu0 0
      %2111 = vmatpush1.bf16.msra.mxu0 0
      %2112 = vmatprep.subr.bf16.mxu0 0
      %2113 = vmatpush1.bf16.msra.mxu0 0
      %2114 = vmatprep.subr.bf16.mxu0 0
      %2115 = vmatpush1.bf16.msra.mxu0 0
      %2116 = vmatprep.subr.bf16.mxu0 0
      %2117 = vmatpush1.bf16.msra.mxu0 0
      %2118 = vmatprep.subr.bf16.mxu0 0
      %2119 = vmatpush1.bf16.msra.mxu0 0
      %2120 = vmatprep.subr.bf16.mxu0 0
      %2121 = vmatpush1.bf16.msra.mxu0 0
      %2122 = vmatprep.subr.bf16.mxu0 0
      %2123 = vmatpush1.bf16.msra.mxu0 0
      %2124 = vmatprep.subr.bf16.mxu0 0
      %2125 = vmatpush1.bf16.msra.mxu0 0
      %2126 = vmatprep.subr.bf16.mxu0 0
      %2127 = vmatpush1.bf16.msra.mxu0 0
      %2128 = vmatprep.subr.bf16.mxu0 0
      %2129 = vmatpush1.bf16.msra.mxu0 0
      %2130 = vmatprep.subr.bf16.mxu0 0
      %2131 = vmatpush1.bf16.msra.mxu0 0
      %2132 = vmatprep.subr.bf16.mxu0 0
      %2133 = vmatpush1.bf16.msra.mxu0 0
      %2134 = vmatprep.subr.bf16.mxu0 0
      %2135 = vmatpush1.bf16.msra.mxu0 0
      %2136 = vmatprep.subr.bf16.mxu0 0
      %2137 = vmatpush1.bf16.msra.mxu0 0
      %2138 = vmatprep.mubr.bf16.mxu0 0
      %2139 = vmatmul.mubr.bf16.gmra.mrb[0].mxu0 %v2054
      %v2140 = vpop.f32.mrb[0].mxu0
      %v2141 = vadd.f32 0.0, %v2140
      %v2142 = vpop.f32.mrb[0].mxu0
      %v2143 = vpop.f32.mrb[0].mxu0
      %v2144 = vpop.f32.mrb[0].mxu0
      %2145 = vdwg.mxu0
      %v2146 = vadd.f32 %v1975, %v2100
      %v2147 = vadd.f32 %v1977, %v2102
      %v2148 = vadd.f32 %v2016, %v2141
      %v2149 = vld [vmem:[%s355] sm:$0xff]
      %s2150 = scalar_lea.vmem %s5, 12
      %v2151 = vld [vmem:[%s2150] sm:$0xf]
      %v2153 = vcombine.high %v2149, %v2149
      %v2155 = vunpack.c.l.s4 1983009808
      %v2156 = vunpack.c.0.s8 %v2155
      %v2157 = vlaneseq
      %v2158 = vshrl.u32 %v2157, 7
      %v2159 = vsub.s32 %v2156, %v2158
      %v2160 = vrot.slane %v2149, %v2159
      %v2162 = vunpack.c.l.s4 1983009808
      %v2163 = vunpack.c.0.s8 %v2162
      %v2164 = vlaneseq
      %v2165 = vshrl.u32 %v2164, 7
      %v2166 = vsub.s32 %v2163, %v2165
      %v2167 = vrot.slane %v2153, %v2166
      %v2168 = vcombine.high %v2160, %v2160
      %v2169 = vcombine.high %v2167, %v2167
      %2170 = vrot.lane.b32.xlu0 %v2160, 110
      %v2171 = vpop.permute.xlu0 %2170
      %2172 = vrot.lane.b32.xlu0 %v2168, 110
      %v2173 = vpop.permute.xlu0 %2172
      %2174 = vrot.lane.b32.xlu0 %v2167, 110
      %v2175 = vpop.permute.xlu0 %2174
      %2176 = vrot.lane.b32.xlu0 %v2169, 110
      %v2177 = vpop.permute.xlu0 %2176
      %v2178 = vsel %vm621, %v2171, %v2173
      %v2179 = vsel %vm621, %v2173, %v2175
      %v2180 = vsel %vm621, %v2175, %v2177
      %v2182 = vsel %vm403, %v2151, 0
      %v2185 = vsel %vm407, %v2178, 0
      %v2188 = vsel %vm407, %v2179, 0
      %v2191 = vsel %vm407, %v2180, 0
      %2193 = vmatprep.subr.bf16.mxu0 %v2188
      %2194 = vmatpush1.bf16.msra.mxu0 %v2185
      %2195 = vmatprep.subr.bf16.mxu0 0
      %2196 = vmatpush1.bf16.msra.mxu0 0
      %2197 = vmatprep.subr.bf16.mxu0 0
      %2198 = vmatpush1.bf16.msra.mxu0 0
      %2199 = vmatprep.subr.bf16.mxu0 0
      %2200 = vmatpush1.bf16.msra.mxu0 0
      %2201 = vmatprep.subr.bf16.mxu0 0
      %2202 = vmatpush1.bf16.msra.mxu0 0
      %2203 = vmatprep.subr.bf16.mxu0 0
      %2204 = vmatpush1.bf16.msra.mxu0 0
      %2205 = vmatprep.subr.bf16.mxu0 0
      %2206 = vmatpush1.bf16.msra.mxu0 0
      %2207 = vmatprep.subr.bf16.mxu0 0
      %2208 = vmatpush1.bf16.msra.mxu0 0
      %2209 = vmatprep.subr.bf16.mxu0 0
      %2210 = vmatpush1.bf16.msra.mxu0 0
      %2211 = vmatprep.subr.bf16.mxu0 0
      %2212 = vmatpush1.bf16.msra.mxu0 0
      %2213 = vmatprep.subr.bf16.mxu0 0
      %2214 = vmatpush1.bf16.msra.mxu0 0
      %2215 = vmatprep.subr.bf16.mxu0 0
      %2216 = vmatpush1.bf16.msra.mxu0 0
      %2217 = vmatprep.subr.bf16.mxu0 0
      %2218 = vmatpush1.bf16.msra.mxu0 0
      %2219 = vmatprep.subr.bf16.mxu0 0
      %2220 = vmatpush1.bf16.msra.mxu0 0
      %2221 = vmatprep.subr.bf16.mxu0 0
      %2222 = vmatpush1.bf16.msra.mxu0 0
      %2223 = vmatprep.subr.bf16.mxu0 0
      %2224 = vmatpush1.bf16.msra.mxu0 0
      %2225 = vmatprep.mubr.bf16.mxu0 0
      %2226 = vmatmul.mubr.bf16.gmra.mrb[0].mxu0 %v2182
      %v2227 = vpop.f32.mrb[0].mxu0
      %v2228 = vadd.f32 0.0, %v2227
      %v2229 = vpop.f32.mrb[0].mxu0
      %v2230 = vadd.f32 0.0, %v2229
      %v2231 = vpop.f32.mrb[0].mxu0
      %v2232 = vpop.f32.mrb[0].mxu0
      %2233 = vdwg.mxu0
      %2234 = vmatprep.subr.bf16.mxu0 0
      %2235 = vmatpush1.bf16.msra.mxu0 %v2191
      %2236 = vmatprep.subr.bf16.mxu0 0
      %2237 = vmatpush1.bf16.msra.mxu0 0
      %2238 = vmatprep.subr.bf16.mxu0 0
      %2239 = vmatpush1.bf16.msra.mxu0 0
      %2240 = vmatprep.subr.bf16.mxu0 0
      %2241 = vmatpush1.bf16.msra.mxu0 0
      %2242 = vmatprep.subr.bf16.mxu0 0
      %2243 = vmatpush1.bf16.msra.mxu0 0
      %2244 = vmatprep.subr.bf16.mxu0 0
      %2245 = vmatpush1.bf16.msra.mxu0 0
      %2246 = vmatprep.subr.bf16.mxu0 0
      %2247 = vmatpush1.bf16.msra.mxu0 0
      %2248 = vmatprep.subr.bf16.mxu0 0
      %2249 = vmatpush1.bf16.msra.mxu0 0
      %2250 = vmatprep.subr.bf16.mxu0 0
      %2251 = vmatpush1.bf16.msra.mxu0 0
      %2252 = vmatprep.subr.bf16.mxu0 0
      %2253 = vmatpush1.bf16.msra.mxu0 0
      %2254 = vmatprep.subr.bf16.mxu0 0
      %2255 = vmatpush1.bf16.msra.mxu0 0
      %2256 = vmatprep.subr.bf16.mxu0 0
      %2257 = vmatpush1.bf16.msra.mxu0 0
      %2258 = vmatprep.subr.bf16.mxu0 0
      %2259 = vmatpush1.bf16.msra.mxu0 0
      %2260 = vmatprep.subr.bf16.mxu0 0
      %2261 = vmatpush1.bf16.msra.mxu0 0
      %2262 = vmatprep.subr.bf16.mxu0 0
      %2263 = vmatpush1.bf16.msra.mxu0 0
      %2264 = vmatprep.subr.bf16.mxu0 0
      %2265 = vmatpush1.bf16.msra.mxu0 0
      %2266 = vmatprep.mubr.bf16.mxu0 0
      %2267 = vmatmul.mubr.bf16.gmra.mrb[0].mxu0 %v2182
      %v2268 = vpop.f32.mrb[0].mxu0
      %v2269 = vadd.f32 0.0, %v2268
      %v2270 = vpop.f32.mrb[0].mxu0
      %v2271 = vpop.f32.mrb[0].mxu0
      %v2272 = vpop.f32.mrb[0].mxu0
      %2273 = vdwg.mxu0
      %v2274 = vadd.f32 %v2146, %v2228
      %v2275 = vadd.f32 %v2147, %v2230
      %v2276 = vadd.f32 %v2148, %v2269
      %v2277 = vld [vmem:[%s355] sm:$0xff]
      %s2278 = scalar_lea.vmem %s5, 16
      %v2279 = vld [vmem:[%s2278] sm:$0xf]
      %v2281 = vcombine.high %v2277, %v2277
      %v2283 = vunpack.c.l.s4 1983009808
      %v2284 = vunpack.c.0.s8 %v2283
      %v2285 = vlaneseq
      %v2286 = vshrl.u32 %v2285, 7
      %v2287 = vsub.s32 %v2284, %v2286
      %v2288 = vrot.slane %v2277, %v2287
      %v2290 = vunpack.c.l.s4 1983009808
      %v2291 = vunpack.c.0.s8 %v2290
      %v2292 = vlaneseq
      %v2293 = vshrl.u32 %v2292, 7
      %v2294 = vsub.s32 %v2291, %v2293
      %v2295 = vrot.slane %v2281, %v2294
      %v2296 = vcombine.high %v2288, %v2288
      %v2297 = vcombine.high %v2295, %v2295
      %2298 = vrot.lane.b32.xlu0 %v2288, 109
      %v2299 = vpop.permute.xlu0 %2298
      %2300 = vrot.lane.b32.xlu0 %v2296, 109
      %v2301 = vpop.permute.xlu0 %2300
      %2302 = vrot.lane.b32.xlu0 %v2295, 109
      %v2303 = vpop.permute.xlu0 %2302
      %2304 = vrot.lane.b32.xlu0 %v2297, 109
      %v2305 = vpop.permute.xlu0 %2304
      %v2306 = vsel %vm702, %v2299, %v2301
      %v2307 = vsel %vm702, %v2301, %v2303
      %v2308 = vsel %vm702, %v2303, %v2305
      %v2310 = vsel %vm403, %v2279, 0
      %v2313 = vsel %vm407, %v2306, 0
      %v2316 = vsel %vm407, %v2307, 0
      %v2319 = vsel %vm407, %v2308, 0
      %2321 = vmatprep.subr.bf16.mxu0 %v2316
      %2322 = vmatpush1.bf16.msra.mxu0 %v2313
      %2323 = vmatprep.subr.bf16.mxu0 0
      %2324 = vmatpush1.bf16.msra.mxu0 0
      %2325 = vmatprep.subr.bf16.mxu0 0
      %2326 = vmatpush1.bf16.msra.mxu0 0
      %2327 = vmatprep.subr.bf16.mxu0 0
      %2328 = vmatpush1.bf16.msra.mxu0 0
      %2329 = vmatprep.subr.bf16.mxu0 0
      %2330 = vmatpush1.bf16.msra.mxu0 0
      %2331 = vmatprep.subr.bf16.mxu0 0
      %2332 = vmatpush1.bf16.msra.mxu0 0
      %2333 = vmatprep.subr.bf16.mxu0 0
      %2334 = vmatpush1.bf16.msra.mxu0 0
      %2335 = vmatprep.subr.bf16.mxu0 0
      %2336 = vmatpush1.bf16.msra.mxu0 0
      %2337 = vmatprep.subr.bf16.mxu0 0
      %2338 = vmatpush1.bf16.msra.mxu0 0
      %2339 = vmatprep.subr.bf16.mxu0 0
      %2340 = vmatpush1.bf16.msra.mxu0 0
      %2341 = vmatprep.subr.bf16.mxu0 0
      %2342 = vmatpush1.bf16.msra.mxu0 0
      %2343 = vmatprep.subr.bf16.mxu0 0
      %2344 = vmatpush1.bf16.msra.mxu0 0
      %2345 = vmatprep.subr.bf16.mxu0 0
      %2346 = vmatpush1.bf16.msra.mxu0 0
      %2347 = vmatprep.subr.bf16.mxu0 0
      %2348 = vmatpush1.bf16.msra.mxu0 0
      %2349 = vmatprep.subr.bf16.mxu0 0
      %2350 = vmatpush1.bf16.msra.mxu0 0
      %2351 = vmatprep.subr.bf16.mxu0 0
      %2352 = vmatpush1.bf16.msra.mxu0 0
      %2353 = vmatprep.mubr.bf16.mxu0 0
      %2354 = vmatmul.mubr.bf16.gmra.mrb[0].mxu0 %v2310
      %v2355 = vpop.f32.mrb[0].mxu0
      %v2356 = vadd.f32 0.0, %v2355
      %v2357 = vpop.f32.mrb[0].mxu0
      %v2358 = vadd.f32 0.0, %v2357
      %v2359 = vpop.f32.mrb[0].mxu0
      %v2360 = vpop.f32.mrb[0].mxu0
      %2361 = vdwg.mxu0
      %2362 = vmatprep.subr.bf16.mxu0 0
      %2363 = vmatpush1.bf16.msra.mxu0 %v2319
      %2364 = vmatprep.subr.bf16.mxu0 0
      %2365 = vmatpush1.bf16.msra.mxu0 0
      %2366 = vmatprep.subr.bf16.mxu0 0
      %2367 = vmatpush1.bf16.msra.mxu0 0
      %2368 = vmatprep.subr.bf16.mxu0 0
      %2369 = vmatpush1.bf16.msra.mxu0 0
      %2370 = vmatprep.subr.bf16.mxu0 0
      %2371 = vmatpush1.bf16.msra.mxu0 0
      %2372 = vmatprep.subr.bf16.mxu0 0
      %2373 = vmatpush1.bf16.msra.mxu0 0
      %2374 = vmatprep.subr.bf16.mxu0 0
      %2375 = vmatpush1.bf16.msra.mxu0 0
      %2376 = vmatprep.subr.bf16.mxu0 0
      %2377 = vmatpush1.bf16.msra.mxu0 0
      %2378 = vmatprep.subr.bf16.mxu0 0
      %2379 = vmatpush1.bf16.msra.mxu0 0
      %2380 = vmatprep.subr.bf16.mxu0 0
      %2381 = vmatpush1.bf16.msra.mxu0 0
      %2382 = vmatprep.subr.bf16.mxu0 0
      %2383 = vmatpush1.bf16.msra.mxu0 0
      %2384 = vmatprep.subr.bf16.mxu0 0
      %2385 = vmatpush1.bf16.msra.mxu0 0
      %2386 = vmatprep.subr.bf16.mxu0 0
      %2387 = vmatpush1.bf16.msra.mxu0 0
      %2388 = vmatprep.subr.bf16.mxu0 0
      %2389 = vmatpush1.bf16.msra.mxu0 0
      %2390 = vmatprep.subr.bf16.mxu0 0
      %2391 = vmatpush1.bf16.msra.mxu0 0
      %2392 = vmatprep.subr.bf16.mxu0 0
      %2393 = vmatpush1.bf16.msra.mxu0 0
      %2394 = vmatprep.mubr.bf16.mxu0 0
      %2395 = vmatmul.mubr.bf16.gmra.mrb[0].mxu0 %v2310
      %v2396 = vpop.f32.mrb[0].mxu0
      %v2397 = vadd.f32 0.0, %v2396
      %v2398 = vpop.f32.mrb[0].mxu0
      %v2399 = vpop.f32.mrb[0].mxu0
      %v2400 = vpop.f32.mrb[0].mxu0
      %2401 = vdwg.mxu0
      %v2402 = vadd.f32 %v2274, %v2356
      %v2403 = vadd.f32 %v2275, %v2358
      %v2404 = vadd.f32 %v2276, %v2397
      %v2405 = vld [vmem:[%s355] sm:$0xff]
      %s2406 = scalar_lea.vmem %s5, 20
      %v2407 = vld [vmem:[%s2406] sm:$0xf]
      %v2409 = vcombine.high %v2405, %v2405
      %v2411 = vunpack.c.l.s4 1983009808
      %v2412 = vunpack.c.0.s8 %v2411
      %v2413 = vlaneseq
      %v2414 = vshrl.u32 %v2413, 7
      %v2415 = vsub.s32 %v2412, %v2414
      %v2416 = vrot.slane %v2405, %v2415
      %v2418 = vunpack.c.l.s4 1983009808
      %v2419 = vunpack.c.0.s8 %v2418
      %v2420 = vlaneseq
      %v2421 = vshrl.u32 %v2420, 7
      %v2422 = vsub.s32 %v2419, %v2421
      %v2423 = vrot.slane %v2409, %v2422
      %v2424 = vcombine.high %v2416, %v2416
      %v2425 = vcombine.high %v2423, %v2423
      %2426 = vrot.lane.b32.xlu0 %v2416, 108
      %v2427 = vpop.permute.xlu0 %2426
      %2428 = vrot.lane.b32.xlu0 %v2424, 108
      %v2429 = vpop.permute.xlu0 %2428
      %2430 = vrot.lane.b32.xlu0 %v2423, 108
      %v2431 = vpop.permute.xlu0 %2430
      %2432 = vrot.lane.b32.xlu0 %v2425, 108
      %v2433 = vpop.permute.xlu0 %2432
      %v2434 = vsel %vm783, %v2427, %v2429
      %v2435 = vsel %vm783, %v2429, %v2431
      %v2436 = vsel %vm783, %v2431, %v2433
      %v2438 = vsel %vm403, %v2407, 0
      %v2441 = vsel %vm407, %v2434, 0
      %v2444 = vsel %vm407, %v2435, 0
      %v2447 = vsel %vm407, %v2436, 0
      %2449 = vmatprep.subr.bf16.mxu0 %v2444
      %2450 = vmatpush1.bf16.msra.mxu0 %v2441
      %2451 = vmatprep.subr.bf16.mxu0 0
      %2452 = vmatpush1.bf16.msra.mxu0 0
      %2453 = vmatprep.subr.bf16.mxu0 0
      %2454 = vmatpush1.bf16.msra.mxu0 0
      %2455 = vmatprep.subr.bf16.mxu0 0
      %2456 = vmatpush1.bf16.msra.mxu0 0
      %2457 = vmatprep.subr.bf16.mxu0 0
      %2458 = vmatpush1.bf16.msra.mxu0 0
      %2459 = vmatprep.subr.bf16.mxu0 0
      %2460 = vmatpush1.bf16.msra.mxu0 0
      %2461 = vmatprep.subr.bf16.mxu0 0
      %2462 = vmatpush1.bf16.msra.mxu0 0
      %2463 = vmatprep.subr.bf16.mxu0 0
      %2464 = vmatpush1.bf16.msra.mxu0 0
      %2465 = vmatprep.subr.bf16.mxu0 0
      %2466 = vmatpush1.bf16.msra.mxu0 0
      %2467 = vmatprep.subr.bf16.mxu0 0
      %2468 = vmatpush1.bf16.msra.mxu0 0
      %2469 = vmatprep.subr.bf16.mxu0 0
      %2470 = vmatpush1.bf16.msra.mxu0 0
      %2471 = vmatprep.subr.bf16.mxu0 0
      %2472 = vmatpush1.bf16.msra.mxu0 0
      %2473 = vmatprep.subr.bf16.mxu0 0
      %2474 = vmatpush1.bf16.msra.mxu0 0
      %2475 = vmatprep.subr.bf16.mxu0 0
      %2476 = vmatpush1.bf16.msra.mxu0 0
      %2477 = vmatprep.subr.bf16.mxu0 0
      %2478 = vmatpush1.bf16.msra.mxu0 0
      %2479 = vmatprep.subr.bf16.mxu0 0
      %2480 = vmatpush1.bf16.msra.mxu0 0
      %2481 = vmatprep.mubr.bf16.mxu0 0
      %2482 = vmatmul.mubr.bf16.gmra.mrb[0].mxu0 %v2438
      %v2483 = vpop.f32.mrb[0].mxu0
      %v2484 = vadd.f32 0.0, %v2483
      %v2485 = vpop.f32.mrb[0].mxu0
      %v2486 = vadd.f32 0.0, %v2485
      %v2487 = vpop.f32.mrb[0].mxu0
      %v2488 = vpop.f32.mrb[0].mxu0
      %2489 = vdwg.mxu0
      %2490 = vmatprep.subr.bf16.mxu0 0
      %2491 = vmatpush1.bf16.msra.mxu0 %v2447
      %2492 = vmatprep.subr.bf16.mxu0 0
      %2493 = vmatpush1.bf16.msra.mxu0 0
      %2494 = vmatprep.subr.bf16.mxu0 0
      %2495 = vmatpush1.bf16.msra.mxu0 0
      %2496 = vmatprep.subr.bf16.mxu0 0
      %2497 = vmatpush1.bf16.msra.mxu0 0
      %2498 = vmatprep.subr.bf16.mxu0 0
      %2499 = vmatpush1.bf16.msra.mxu0 0
      %2500 = vmatprep.subr.bf16.mxu0 0
      %2501 = vmatpush1.bf16.msra.mxu0 0
      %2502 = vmatprep.subr.bf16.mxu0 0
      %2503 = vmatpush1.bf16.msra.mxu0 0
      %2504 = vmatprep.subr.bf16.mxu0 0
      %2505 = vmatpush1.bf16.msra.mxu0 0
      %2506 = vmatprep.subr.bf16.mxu0 0
      %2507 = vmatpush1.bf16.msra.mxu0 0
      %2508 = vmatprep.subr.bf16.mxu0 0
      %2509 = vmatpush1.bf16.msra.mxu0 0
      %2510 = vmatprep.subr.bf16.mxu0 0
      %2511 = vmatpush1.bf16.msra.mxu0 0
      %2512 = vmatprep.subr.bf16.mxu0 0
      %2513 = vmatpush1.bf16.msra.mxu0 0
      %2514 = vmatprep.subr.bf16.mxu0 0
      %2515 = vmatpush1.bf16.msra.mxu0 0
      %2516 = vmatprep.subr.bf16.mxu0 0
      %2517 = vmatpush1.bf16.msra.mxu0 0
      %2518 = vmatprep.subr.bf16.mxu0 0
      %2519 = vmatpush1.bf16.msra.mxu0 0
      %2520 = vmatprep.subr.bf16.mxu0 0
      %2521 = vmatpush1.bf16.msra.mxu0 0
      %2522 = vmatprep.mubr.bf16.mxu0 0
      %2523 = vmatmul.mubr.bf16.gmra.mrb[0].mxu0 %v2438
      %v2524 = vpop.f32.mrb[0].mxu0
      %v2525 = vadd.f32 0.0, %v2524
      %v2526 = vpop.f32.mrb[0].mxu0
      %v2527 = vpop.f32.mrb[0].mxu0
      %v2528 = vpop.f32.mrb[0].mxu0
      %2529 = vdwg.mxu0
      %v2530 = vadd.f32 %v2402, %v2484
      %v2531 = vadd.f32 %v2403, %v2486
      %v2532 = vadd.f32 %v2404, %v2525
      %v2533 = vld [vmem:[%s355] sm:$0xff]
      %s2534 = scalar_lea.vmem %s5, 24
      %v2535 = vld [vmem:[%s2534] sm:$0xf]
      %v2537 = vcombine.high %v2533, %v2533
      %v2539 = vunpack.c.l.s4 1983009808
      %v2540 = vunpack.c.0.s8 %v2539
      %v2541 = vlaneseq
      %v2542 = vshrl.u32 %v2541, 7
      %v2543 = vsub.s32 %v2540, %v2542
      %v2544 = vrot.slane %v2533, %v2543
      %v2546 = vunpack.c.l.s4 1983009808
      %v2547 = vunpack.c.0.s8 %v2546
      %v2548 = vlaneseq
      %v2549 = vshrl.u32 %v2548, 7
      %v2550 = vsub.s32 %v2547, %v2549
      %v2551 = vrot.slane %v2537, %v2550
      %v2552 = vcombine.high %v2544, %v2544
      %v2553 = vcombine.high %v2551, %v2551
      %2554 = vrot.lane.b32.xlu0 %v2544, 92
      %v2555 = vpop.permute.xlu0 %2554
      %2556 = vrot.lane.b32.xlu0 %v2552, 92
      %v2557 = vpop.permute.xlu0 %2556
      %2558 = vrot.lane.b32.xlu0 %v2551, 92
      %v2559 = vpop.permute.xlu0 %2558
      %2560 = vrot.lane.b32.xlu0 %v2553, 92
      %v2561 = vpop.permute.xlu0 %2560
      %v2562 = vsel %vm864, %v2555, %v2557
      %v2563 = vsel %vm864, %v2557, %v2559
      %v2564 = vsel %vm864, %v2559, %v2561
      %v2566 = vsel %vm403, %v2535, 0
      %v2569 = vsel %vm407, %v2562, 0
      %v2572 = vsel %vm407, %v2563, 0
      %v2575 = vsel %vm407, %v2564, 0
      %2577 = vmatprep.subr.bf16.mxu0 %v2572
      %2578 = vmatpush1.bf16.msra.mxu0 %v2569
      %2579 = vmatprep.subr.bf16.mxu0 0
      %2580 = vmatpush1.bf16.msra.mxu0 0
      %2581 = vmatprep.subr.bf16.mxu0 0
      %2582 = vmatpush1.bf16.msra.mxu0 0
      %2583 = vmatprep.subr.bf16.mxu0 0
      %2584 = vmatpush1.bf16.msra.mxu0 0
      %2585 = vmatprep.subr.bf16.mxu0 0
      %2586 = vmatpush1.bf16.msra.mxu0 0
      %2587 = vmatprep.subr.bf16.mxu0 0
      %2588 = vmatpush1.bf16.msra.mxu0 0
      %2589 = vmatprep.subr.bf16.mxu0 0
      %2590 = vmatpush1.bf16.msra.mxu0 0
      %2591 = vmatprep.subr.bf16.mxu0 0
      %2592 = vmatpush1.bf16.msra.mxu0 0
      %2593 = vmatprep.subr.bf16.mxu0 0
      %2594 = vmatpush1.bf16.msra.mxu0 0
      %2595 = vmatprep.subr.bf16.mxu0 0
      %2596 = vmatpush1.bf16.msra.mxu0 0
      %2597 = vmatprep.subr.bf16.mxu0 0
      %2598 = vmatpush1.bf16.msra.mxu0 0
      %2599 = vmatprep.subr.bf16.mxu0 0
      %2600 = vmatpush1.bf16.msra.mxu0 0
      %2601 = vmatprep.subr.bf16.mxu0 0
      %2602 = vmatpush1.bf16.msra.mxu0 0
      %2603 = vmatprep.subr.bf16.mxu0 0
      %2604 = vmatpush1.bf16.msra.mxu0 0
      %2605 = vmatprep.subr.bf16.mxu0 0
      %2606 = vmatpush1.bf16.msra.mxu0 0
      %2607 = vmatprep.subr.bf16.mxu0 0
      %2608 = vmatpush1.bf16.msra.mxu0 0
      %2609 = vmatprep.mubr.bf16.mxu0 0
      %2610 = vmatmul.mubr.bf16.gmra.mrb[0].mxu0 %v2566
      %v2611 = vpop.f32.mrb[0].mxu0
      %v2612 = vadd.f32 0.0, %v2611
      %v2613 = vpop.f32.mrb[0].mxu0
      %v2614 = vadd.f32 0.0, %v2613
      %v2615 = vpop.f32.mrb[0].mxu0
      %v2616 = vpop.f32.mrb[0].mxu0
      %2617 = vdwg.mxu0
      %2618 = vmatprep.subr.bf16.mxu0 0
      %2619 = vmatpush1.bf16.msra.mxu0 %v2575
      %2620 = vmatprep.subr.bf16.mxu0 0
      %2621 = vmatpush1.bf16.msra.mxu0 0
      %2622 = vmatprep.subr.bf16.mxu0 0
      %2623 = vmatpush1.bf16.msra.mxu0 0
      %2624 = vmatprep.subr.bf16.mxu0 0
      %2625 = vmatpush1.bf16.msra.mxu0 0
      %2626 = vmatprep.subr.bf16.mxu0 0
      %2627 = vmatpush1.bf16.msra.mxu0 0
      %2628 = vmatprep.subr.bf16.mxu0 0
      %2629 = vmatpush1.bf16.msra.mxu0 0
      %2630 = vmatprep.subr.bf16.mxu0 0
      %2631 = vmatpush1.bf16.msra.mxu0 0
      %2632 = vmatprep.subr.bf16.mxu0 0
      %2633 = vmatpush1.bf16.msra.mxu0 0
      %2634 = vmatprep.subr.bf16.mxu0 0
      %2635 = vmatpush1.bf16.msra.mxu0 0
      %2636 = vmatprep.subr.bf16.mxu0 0
      %2637 = vmatpush1.bf16.msra.mxu0 0
      %2638 = vmatprep.subr.bf16.mxu0 0
      %2639 = vmatpush1.bf16.msra.mxu0 0
      %2640 = vmatprep.subr.bf16.mxu0 0
      %2641 = vmatpush1.bf16.msra.mxu0 0
      %2642 = vmatprep.subr.bf16.mxu0 0
      %2643 = vmatpush1.bf16.msra.mxu0 0
      %2644 = vmatprep.subr.bf16.mxu0 0
      %2645 = vmatpush1.bf16.msra.mxu0 0
      %2646 = vmatprep.subr.bf16.mxu0 0
      %2647 = vmatpush1.bf16.msra.mxu0 0
      %2648 = vmatprep.subr.bf16.mxu0 0
      %2649 = vmatpush1.bf16.msra.mxu0 0
      %2650 = vmatprep.mubr.bf16.mxu0 0
      %2651 = vmatmul.mubr.bf16.gmra.mrb[0].mxu0 %v2566
      %v2652 = vpop.f32.mrb[0].mxu0
      %v2653 = vadd.f32 0.0, %v2652
      %v2654 = vpop.f32.mrb[0].mxu0
      %v2655 = vpop.f32.mrb[0].mxu0
      %v2656 = vpop.f32.mrb[0].mxu0
      %2657 = vdwg.mxu0
      %v2658 = vadd.f32 %v2530, %v2612
      %v2659 = vadd.f32 %v2531, %v2614
      %v2660 = vadd.f32 %v2532, %v2653
      %v2661 = vld [vmem:[%s355] sm:$0xff]
      %s2662 = scalar_lea.vmem %s5, 28
      %v2663 = vld [vmem:[%s2662] sm:$0xf]
      %v2665 = vcombine.high %v2661, %v2661
      %v2667 = vunpack.c.l.s4 1983009808
      %v2668 = vunpack.c.0.s8 %v2667
      %v2669 = vlaneseq
      %v2670 = vshrl.u32 %v2669, 7
      %v2671 = vsub.s32 %v2668, %v2670
      %v2672 = vrot.slane %v2661, %v2671
      %v2674 = vunpack.c.l.s4 1983009808
      %v2675 = vunpack.c.0.s8 %v2674
      %v2676 = vlaneseq
      %v2677 = vshrl.u32 %v2676, 7
      %v2678 = vsub.s32 %v2675, %v2677
      %v2679 = vrot.slane %v2665, %v2678
      %v2680 = vcombine.high %v2672, %v2672
      %v2681 = vcombine.high %v2679, %v2679
      %2682 = vrot.lane.b32.xlu0 %v2672, 91
      %v2683 = vpop.permute.xlu0 %2682
      %2684 = vrot.lane.b32.xlu0 %v2680, 91
      %v2685 = vpop.permute.xlu0 %2684
      %2686 = vrot.lane.b32.xlu0 %v2679, 91
      %v2687 = vpop.permute.xlu0 %2686
      %2688 = vrot.lane.b32.xlu0 %v2681, 91
      %v2689 = vpop.permute.xlu0 %2688
      %v2690 = vsel %vm945, %v2683, %v2685
      %v2691 = vsel %vm945, %v2685, %v2687
      %v2692 = vsel %vm945, %v2687, %v2689
      %v2694 = vsel %vm403, %v2663, 0
      %v2697 = vsel %vm407, %v2690, 0
      %v2700 = vsel %vm407, %v2691, 0
      %v2703 = vsel %vm407, %v2692, 0
      %2705 = vmatprep.subr.bf16.mxu0 %v2700
      %2706 = vmatpush1.bf16.msra.mxu0 %v2697
      %2707 = vmatprep.subr.bf16.mxu0 0
      %2708 = vmatpush1.bf16.msra.mxu0 0
      %2709 = vmatprep.subr.bf16.mxu0 0
      %2710 = vmatpush1.bf16.msra.mxu0 0
      %2711 = vmatprep.subr.bf16.mxu0 0
      %2712 = vmatpush1.bf16.msra.mxu0 0
      %2713 = vmatprep.subr.bf16.mxu0 0
      %2714 = vmatpush1.bf16.msra.mxu0 0
      %2715 = vmatprep.subr.bf16.mxu0 0
      %2716 = vmatpush1.bf16.msra.mxu0 0
      %2717 = vmatprep.subr.bf16.mxu0 0
      %2718 = vmatpush1.bf16.msra.mxu0 0
      %2719 = vmatprep.subr.bf16.mxu0 0
      %2720 = vmatpush1.bf16.msra.mxu0 0
      %2721 = vmatprep.subr.bf16.mxu0 0
      %2722 = vmatpush1.bf16.msra.mxu0 0
      %2723 = vmatprep.subr.bf16.mxu0 0
      %2724 = vmatpush1.bf16.msra.mxu0 0
      %2725 = vmatprep.subr.bf16.mxu0 0
      %2726 = vmatpush1.bf16.msra.mxu0 0
      %2727 = vmatprep.subr.bf16.mxu0 0
      %2728 = vmatpush1.bf16.msra.mxu0 0
      %2729 = vmatprep.subr.bf16.mxu0 0
      %2730 = vmatpush1.bf16.msra.mxu0 0
      %2731 = vmatprep.subr.bf16.mxu0 0
      %2732 = vmatpush1.bf16.msra.mxu0 0
      %2733 = vmatprep.subr.bf16.mxu0 0
      %2734 = vmatpush1.bf16.msra.mxu0 0
      %2735 = vmatprep.subr.bf16.mxu0 0
      %2736 = vmatpush1.bf16.msra.mxu0 0
      %2737 = vmatprep.mubr.bf16.mxu0 0
      %2738 = vmatmul.mubr.bf16.gmra.mrb[0].mxu0 %v2694
      %v2739 = vpop.f32.mrb[0].mxu0
      %v2740 = vadd.f32 0.0, %v2739
      %v2741 = vpop.f32.mrb[0].mxu0
      %v2742 = vadd.f32 0.0, %v2741
      %v2743 = vpop.f32.mrb[0].mxu0
      %v2744 = vpop.f32.mrb[0].mxu0
      %2745 = vdwg.mxu0
      %2746 = vmatprep.subr.bf16.mxu0 0
      %2747 = vmatpush1.bf16.msra.mxu0 %v2703
      %2748 = vmatprep.subr.bf16.mxu0 0
      %2749 = vmatpush1.bf16.msra.mxu0 0
      %2750 = vmatprep.subr.bf16.mxu0 0
      %2751 = vmatpush1.bf16.msra.mxu0 0
      %2752 = vmatprep.subr.bf16.mxu0 0
      %2753 = vmatpush1.bf16.msra.mxu0 0
      %2754 = vmatprep.subr.bf16.mxu0 0
      %2755 = vmatpush1.bf16.msra.mxu0 0
      %2756 = vmatprep.subr.bf16.mxu0 0
      %2757 = vmatpush1.bf16.msra.mxu0 0
      %2758 = vmatprep.subr.bf16.mxu0 0
      %2759 = vmatpush1.bf16.msra.mxu0 0
      %2760 = vmatprep.subr.bf16.mxu0 0
      %2761 = vmatpush1.bf16.msra.mxu0 0
      %2762 = vmatprep.subr.bf16.mxu0 0
      %2763 = vmatpush1.bf16.msra.mxu0 0
      %2764 = vmatprep.subr.bf16.mxu0 0
      %2765 = vmatpush1.bf16.msra.mxu0 0
      %2766 = vmatprep.subr.bf16.mxu0 0
      %2767 = vmatpush1.bf16.msra.mxu0 0
      %2768 = vmatprep.subr.bf16.mxu0 0
      %2769 = vmatpush1.bf16.msra.mxu0 0
      %2770 = vmatprep.subr.bf16.mxu0 0
      %2771 = vmatpush1.bf16.msra.mxu0 0
      %2772 = vmatprep.subr.bf16.mxu0 0
      %2773 = vmatpush1.bf16.msra.mxu0 0
      %2774 = vmatprep.subr.bf16.mxu0 0
      %2775 = vmatpush1.bf16.msra.mxu0 0
      %2776 = vmatprep.subr.bf16.mxu0 0
      %2777 = vmatpush1.bf16.msra.mxu0 0
      %2778 = vmatprep.mubr.bf16.mxu0 0
      %2779 = vmatmul.mubr.bf16.gmra.mrb[0].mxu0 %v2694
      %v2780 = vpop.f32.mrb[0].mxu0
      %v2781 = vadd.f32 0.0, %v2780
      %v2782 = vpop.f32.mrb[0].mxu0
      %v2783 = vpop.f32.mrb[0].mxu0
      %v2784 = vpop.f32.mrb[0].mxu0
      %2785 = vdwg.mxu0
      %v2786 = vadd.f32 %v2658, %v2740
      %v2787 = vadd.f32 %v2659, %v2742
      %v2788 = vadd.f32 %v2660, %v2781
      %v2789 = vld [vmem:[%s355] sm:$0xff]
      %s2790 = scalar_lea.vmem %s5, 32
      %v2791 = vld [vmem:[%s2790] sm:$0xf]
      %v2793 = vcombine.high %v2789, %v2789
      %v2795 = vunpack.c.l.s4 1983009808
      %v2796 = vunpack.c.0.s8 %v2795
      %v2797 = vlaneseq
      %v2798 = vshrl.u32 %v2797, 7
      %v2799 = vsub.s32 %v2796, %v2798
      %v2800 = vrot.slane %v2789, %v2799
      %v2802 = vunpack.c.l.s4 1983009808
      %v2803 = vunpack.c.0.s8 %v2802
      %v2804 = vlaneseq
      %v2805 = vshrl.u32 %v2804, 7
      %v2806 = vsub.s32 %v2803, %v2805
      %v2807 = vrot.slane %v2793, %v2806
      %v2808 = vcombine.high %v2800, %v2800
      %v2809 = vcombine.high %v2807, %v2807
      %2810 = vrot.lane.b32.xlu0 %v2800, 90
      %v2811 = vpop.permute.xlu0 %2810
      %2812 = vrot.lane.b32.xlu0 %v2808, 90
      %v2813 = vpop.permute.xlu0 %2812
      %2814 = vrot.lane.b32.xlu0 %v2807, 90
      %v2815 = vpop.permute.xlu0 %2814
      %2816 = vrot.lane.b32.xlu0 %v2809, 90
      %v2817 = vpop.permute.xlu0 %2816
      %v2818 = vsel %vm1026, %v2811, %v2813
      %v2819 = vsel %vm1026, %v2813, %v2815
      %v2820 = vsel %vm1026, %v2815, %v2817
      %v2822 = vsel %vm403, %v2791, 0
      %v2825 = vsel %vm407, %v2818, 0
      %v2828 = vsel %vm407, %v2819, 0
      %v2831 = vsel %vm407, %v2820, 0
      %2833 = vmatprep.subr.bf16.mxu0 %v2828
      %2834 = vmatpush1.bf16.msra.mxu0 %v2825
      %2835 = vmatprep.subr.bf16.mxu0 0
      %2836 = vmatpush1.bf16.msra.mxu0 0
      %2837 = vmatprep.subr.bf16.mxu0 0
      %2838 = vmatpush1.bf16.msra.mxu0 0
      %2839 = vmatprep.subr.bf16.mxu0 0
      %2840 = vmatpush1.bf16.msra.mxu0 0
      %2841 = vmatprep.subr.bf16.mxu0 0
      %2842 = vmatpush1.bf16.msra.mxu0 0
      %2843 = vmatprep.subr.bf16.mxu0 0
      %2844 = vmatpush1.bf16.msra.mxu0 0
      %2845 = vmatprep.subr.bf16.mxu0 0
      %2846 = vmatpush1.bf16.msra.mxu0 0
      %2847 = vmatprep.subr.bf16.mxu0 0
      %2848 = vmatpush1.bf16.msra.mxu0 0
      %2849 = vmatprep.subr.bf16.mxu0 0
      %2850 = vmatpush1.bf16.msra.mxu0 0
      %2851 = vmatprep.subr.bf16.mxu0 0
      %2852 = vmatpush1.bf16.msra.mxu0 0
      %2853 = vmatprep.subr.bf16.mxu0 0
      %2854 = vmatpush1.bf16.msra.mxu0 0
      %2855 = vmatprep.subr.bf16.mxu0 0
      %2856 = vmatpush1.bf16.msra.mxu0 0
      %2857 = vmatprep.subr.bf16.mxu0 0
      %2858 = vmatpush1.bf16.msra.mxu0 0
      %2859 = vmatprep.subr.bf16.mxu0 0
      %2860 = vmatpush1.bf16.msra.mxu0 0
      %2861 = vmatprep.subr.bf16.mxu0 0
      %2862 = vmatpush1.bf16.msra.mxu0 0
      %2863 = vmatprep.subr.bf16.mxu0 0
      %2864 = vmatpush1.bf16.msra.mxu0 0
      %2865 = vmatprep.mubr.bf16.mxu0 0
      %2866 = vmatmul.mubr.bf16.gmra.mrb[0].mxu0 %v2822
      %v2867 = vpop.f32.mrb[0].mxu0
      %v2868 = vadd.f32 0.0, %v2867
      %v2869 = vpop.f32.mrb[0].mxu0
      %v2870 = vadd.f32 0.0, %v2869
      %v2871 = vpop.f32.mrb[0].mxu0
      %v2872 = vpop.f32.mrb[0].mxu0
      %2873 = vdwg.mxu0
      %2874 = vmatprep.subr.bf16.mxu0 0
      %2875 = vmatpush1.bf16.msra.mxu0 %v2831
      %2876 = vmatprep.subr.bf16.mxu0 0
      %2877 = vmatpush1.bf16.msra.mxu0 0
      %2878 = vmatprep.subr.bf16.mxu0 0
      %2879 = vmatpush1.bf16.msra.mxu0 0
      %2880 = vmatprep.subr.bf16.mxu0 0
      %2881 = vmatpush1.bf16.msra.mxu0 0
      %2882 = vmatprep.subr.bf16.mxu0 0
      %2883 = vmatpush1.bf16.msra.mxu0 0
      %2884 = vmatprep.subr.bf16.mxu0 0
      %2885 = vmatpush1.bf16.msra.mxu0 0
      %2886 = vmatprep.subr.bf16.mxu0 0
      %2887 = vmatpush1.bf16.msra.mxu0 0
      %2888 = vmatprep.subr.bf16.mxu0 0
      %2889 = vmatpush1.bf16.msra.mxu0 0
      %2890 = vmatprep.subr.bf16.mxu0 0
      %2891 = vmatpush1.bf16.msra.mxu0 0
      %2892 = vmatprep.subr.bf16.mxu0 0
      %2893 = vmatpush1.bf16.msra.mxu0 0
      %2894 = vmatprep.subr.bf16.mxu0 0
      %2895 = vmatpush1.bf16.msra.mxu0 0
      %2896 = vmatprep.subr.bf16.mxu0 0
      %2897 = vmatpush1.bf16.msra.mxu0 0
      %2898 = vmatprep.subr.bf16.mxu0 0
      %2899 = vmatpush1.bf16.msra.mxu0 0
      %2900 = vmatprep.subr.bf16.mxu0 0
      %2901 = vmatpush1.bf16.msra.mxu0 0
      %2902 = vmatprep.subr.bf16.mxu0 0
      %2903 = vmatpush1.bf16.msra.mxu0 0
      %2904 = vmatprep.subr.bf16.mxu0 0
      %2905 = vmatpush1.bf16.msra.mxu0 0
      %2906 = vmatprep.mubr.bf16.mxu0 0
      %2907 = vmatmul.mubr.bf16.gmra.mrb[0].mxu0 %v2822
      %v2908 = vpop.f32.mrb[0].mxu0
      %v2909 = vadd.f32 0.0, %v2908
      %v2910 = vpop.f32.mrb[0].mxu0
      %v2911 = vpop.f32.mrb[0].mxu0
      %v2912 = vpop.f32.mrb[0].mxu0
      %2913 = vdwg.mxu0
      %v2914 = vadd.f32 %v2786, %v2868
      %v2915 = vadd.f32 %v2787, %v2870
      %v2916 = vadd.f32 %v2788, %v2909
      %2917 = vst [vmem:[%s370] sm:$0xff] %v2914
      %2918 = vst [vmem:[%s370 + $0x8] sm:$0xff] %v2915
      %2919 = vst [vmem:[%s370 + $0x10] sm:$0xff] %v2916
      %p2920 = scmp.lt.s32.totalorder %s20, 1
      %s2921 = scalar_select %p2920, %s20, 1
      %s2922 = smul.addr %s2921, 2
      %s2923 = smul.addr %s2922, 8
      %s2924 = scalar_lea.vmem %s6, %s2923
      %p2925 = scmp.lt.s32.totalorder %s20, 1
      %s2926 = scalar_select %p2925, %s20, 1
      %s2927 = smul.addr %s2926, 2
      %s2928 = smul.addr %s2927, 8
      %s2929 = scalar_lea.vmem %s7, %s2928
      %p2930 = scmp.lt.s32.totalorder %s20, 1
      %s2931 = scalar_select %p2930, %s20, 1
      %s2932 = smul.addr %s2931, 3
      %s2933 = smul.addr %s2932, 8
      %s2934 = scalar_lea.vmem %s8, %s2933
      // Predicated region
      $region45: #{custom_conv3d_forward.3} parent=43 // pred_check
        %p2935 = pneg %p179
      $region46: #{custom_conv3d_forward.3} parent=43 // pred_check_branch
        %2937 = sbr.rel (%p2935) target = $region48
      $region47: #{custom_conv3d_forward.3} parent=43 // pred_region
        _
      $region48: #{custom_conv3d_forward.3} parent=43 // pred_fallthru
        _
      // Predicated region
      $region49: #{custom_conv3d_forward.3} parent=43 // pred_check
        %p2938 = pneg %p205
      $region50: #{custom_conv3d_forward.3} parent=43 // pred_check_branch
        %2940 = sbr.rel (%p2938) target = $region52
      $region51: #{custom_conv3d_forward.3} parent=43 // pred_region
        _
      $region52: #{custom_conv3d_forward.3} parent=43 // pred_fallthru
        _
      // Predicated region
      $region53: #{custom_conv3d_forward.3} parent=43 // pred_check
        %p2941 = pneg %p231
      $region54: #{custom_conv3d_forward.3} parent=43 // pred_check_branch
        %2943 = sbr.rel (%p2941) target = $region56
      $region55: #{custom_conv3d_forward.3} parent=43 // pred_region
        _
      $region56: #{custom_conv3d_forward.3} parent=43 // pred_fallthru
        _
    $region44: #{custom_conv3d_forward.3} parent=5 // pred_fallthru
      _
    %p2944 = scmp.le.s32.totalorder 2, %s15
    // Predicated region
    $region57: #{custom_conv3d_forward.3} parent=5 // pred_check
      %p2945 = pneg %p2944
    $region58: #{custom_conv3d_forward.3} parent=5 // pred_check_branch
      %2947 = sbr.rel (%p2945) target = $region60
    $region59: #{custom_conv3d_forward.3} parent=5 // pred_region
      %s2948 = ssub.s32 %s15, 2
      // Predicated region
      $region61: #{custom_conv3d_forward.3} parent=59 // pred_check
        %p2949 = pneg %p185
      $region62: #{custom_conv3d_forward.3} parent=59 // pred_check_branch
        %2951 = sbr.rel (%p2949) target = $region64
      $region63: #{custom_conv3d_forward.3} parent=59 // pred_region
        %p2952 = scmp.lt.s32.totalorder %s21, 1
        %s2953 = scalar_select %p2952, %s21, 1
        %s2954 = smul.addr %s2953, 2
        %s2955 = smul.addr %s2954, 8
        %s2956 = scalar_lea.vmem %s6, %s2955
      $region64: #{custom_conv3d_forward.3} parent=59 // pred_fallthru
        _
      // Predicated region
      $region65: #{custom_conv3d_forward.3} parent=59 // pred_check
        %p2957 = pneg %p211
      $region66: #{custom_conv3d_forward.3} parent=59 // pred_check_branch
        %2959 = sbr.rel (%p2957) target = $region68
      $region67: #{custom_conv3d_forward.3} parent=59 // pred_region
        %p2960 = scmp.lt.s32.totalorder %s21, 1
        %s2961 = scalar_select %p2960, %s21, 1
        %s2962 = smul.addr %s2961, 2
        %s2963 = smul.addr %s2962, 8
        %s2964 = scalar_lea.vmem %s7, %s2963
      $region68: #{custom_conv3d_forward.3} parent=59 // pred_fallthru
        _
      // Predicated region
      $region69: #{custom_conv3d_forward.3} parent=59 // pred_check
        %p2965 = pneg %p237
      $region70: #{custom_conv3d_forward.3} parent=59 // pred_check_branch
        %2967 = sbr.rel (%p2965) target = $region72
      $region71: #{custom_conv3d_forward.3} parent=59 // pred_region
        %p2968 = scmp.lt.s32.totalorder %s21, 1
        %s2969 = scalar_select %p2968, %s21, 1
        %s2970 = smul.addr %s2969, 3
        %s2971 = smul.addr %s2970, 8
        %s2972 = scalar_lea.vmem %s8, %s2971
      $region72: #{custom_conv3d_forward.3} parent=59 // pred_fallthru
        _
    $region60: #{custom_conv3d_forward.3} parent=5 // pred_fallthru
      _
  $region6: #{custom_conv3d_forward.3} parent=0 // loop_footer
    %s19 = sadd.s32 1, %s15
  $region7: #{custom_conv3d_forward.3} parent=0 // loop_footer_branch
    %14 = sbr.rel target = $region3
  $region8: #{custom_conv3d_forward.3} parent=0 // loop_exit
    _

</llo_original>
